<compile_context>
chip_gen: v7x
topology: tpu7x:2x2x1
jax: 0.10.0
libtpu: 0.0.40
codegen_flags: <defaults>
</compile_context>

<pallas_src>
import functools

import jax
import jax.numpy as jnp
from jax.experimental import pallas as pl
from jax.experimental.pallas import tpu as pltpu


LEAKY_SLOPE = 0.2
BN_EPS = 1e-5
VMEM_LIMIT = 32 * 1024 * 1024  # explicit; safe on v5e/v6e (128 MiB) and v7x (64 MiB)


def _leaky(x):
    return jnp.where(x > 0, x, LEAKY_SLOPE * x)


def _round_up(x, m):
    return ((x + m - 1) // m) * m


def _pad_last(arr, to):
    pad = to - arr.shape[-1]
    if pad == 0:
        return arr
    widths = [(0, 0)] * (arr.ndim - 1) + [(0, pad)]
    return jnp.pad(arr, widths)


# ----------------------------------------------------------------------------
# Pallas kernels
# ----------------------------------------------------------------------------
def _conv_bias_leaky_kernel(a_ref, w_ref, b_ref, o_ref):
    """o = leaky_relu(a @ w + b).  a:(tm,K) bf16, w:(K,C) bf16, b:(1,C) f32."""
    acc = jnp.dot(a_ref[...], w_ref[...], preferred_element_type=jnp.float32)
    acc = acc + b_ref[...]
    o_ref[...] = _leaky(acc).astype(o_ref.dtype)


def _gemm_stats_kernel(a_ref, w_ref, z_ref, stats_ref):
    """Pass 1: z = a @ w (no bias; it cancels under BN) + per-tile channel
    sum / sum-of-squares partials.  Padded (zero) patch rows contribute 0."""
    z = jnp.dot(a_ref[...], w_ref[...], preferred_element_type=jnp.float32)
    z_ref[...] = z
    zsum = jnp.sum(z, axis=0, keepdims=True)        # (1, C)
    zsq = jnp.sum(z * z, axis=0, keepdims=True)     # (1, C)
    stats_ref[...] = jnp.concatenate([zsum, zsq], axis=0).reshape(1, 2, z.shape[1])


def _affine_leaky_kernel(z_ref, sc_ref, sh_ref, o_ref):
    """Pass 2: o = leaky_relu(z * scale + shift)  (BN folded into scale/shift)."""
    y = z_ref[...] * sc_ref[...] + sh_ref[...]
    o_ref[...] = _leaky(y).astype(o_ref.dtype)


def _affine_leaky_head_kernel(z_ref, sc_ref, sh_ref, w4_ref, b4_ref, o_ref):
    """conv3 pass 2 (affine + leaky) fused with conv4 (4x4 valid, Cout=1)
    and exact sigmoid.  z:(ns*16, C) f32, w4:(16, C) f32, b4 in SMEM."""
    ns = o_ref.shape[0]
    nc = z_ref.shape[1]
    y = _leaky(z_ref[...] * sc_ref[...] + sh_ref[...])       # (ns*16, C) f32
    prod = y.reshape(ns, 16, nc) * w4_ref[...]               # broadcast (16, C)
    s = jnp.sum(prod, axis=2)                                # (ns, 16)
    val = jnp.sum(s, axis=1, keepdims=True) + b4_ref[0, 0]   # (ns, 1)
    o_ref[...] = 1.0 / (1.0 + jnp.exp(-val))                 # exact sigmoid


# ----------------------------------------------------------------------------
# pallas_call wrappers
# ----------------------------------------------------------------------------
def conv_bias_leaky(patches, w_mat, b_row, *, tm=1024):
    m, k = patches.shape
    _, nc = w_mat.shape
    tm = min(tm, m)
    mp = _round_up(m, tm)
    if mp != m:
        patches = jnp.pad(patches, ((0, mp - m), (0, 0)))
    grid_m = mp // tm
    return pl.pallas_call(
        _conv_bias_leaky_kernel,
        out_shape=jax.ShapeDtypeStruct((mp, nc), jnp.bfloat16),
        grid_spec=pltpu.PrefetchScalarGridSpec(
            num_scalar_prefetch=0,
            grid=(grid_m,),
            in_specs=[
                pl.BlockSpec((tm, k), lambda i: (i, 0)),
                pl.BlockSpec((k, nc), lambda i: (0, 0)),
                pl.BlockSpec((1, nc), lambda i: (0, 0)),
            ],
            out_specs=pl.BlockSpec((tm, nc), lambda i: (i, 0)),
        ),
        compiler_params=pltpu.CompilerParams(
            dimension_semantics=("parallel",),
            vmem_limit_bytes=VMEM_LIMIT),
    )(patches, w_mat, b_row)


def conv_gemm_stats(patches, w_mat, *, tm):
    """Pass 1: returns (z (mp, C) f32, per-tile stats (grid, 2, C) f32)."""
    m, k = patches.shape
    _, nc = w_mat.shape
    mp = _round_up(m, tm)
    if mp != m:
        patches = jnp.pad(patches, ((0, mp - m), (0, 0)))
    grid_m = mp // tm
    return pl.pallas_call(
        _gemm_stats_kernel,
        out_shape=(jax.ShapeDtypeStruct((mp, nc), jnp.float32),
                   jax.ShapeDtypeStruct((grid_m, 2, nc), jnp.float32)),
        grid_spec=pltpu.PrefetchScalarGridSpec(
            num_scalar_prefetch=0,
            grid=(grid_m,),
            in_specs=[
                pl.BlockSpec((tm, k), lambda i: (i, 0)),
                pl.BlockSpec((k, nc), lambda i: (0, 0)),
            ],
            out_specs=[
                pl.BlockSpec((tm, nc), lambda i: (i, 0)),
                pl.BlockSpec((1, 2, nc), lambda i: (i, 0, 0)),
            ],
        ),
        compiler_params=pltpu.CompilerParams(
            dimension_semantics=("parallel",),
            vmem_limit_bytes=VMEM_LIMIT),
    )(patches, w_mat)


def affine_leaky(z, scale_row, shift_row, *, tm):
    mp, nc = z.shape
    grid_m = mp // tm
    return pl.pallas_call(
        _affine_leaky_kernel,
        out_shape=jax.ShapeDtypeStruct((mp, nc), jnp.bfloat16),
        grid_spec=pltpu.PrefetchScalarGridSpec(
            num_scalar_prefetch=0,
            grid=(grid_m,),
            in_specs=[
                pl.BlockSpec((tm, nc), lambda i: (i, 0)),
                pl.BlockSpec((1, nc), lambda i: (0, 0)),
                pl.BlockSpec((1, nc), lambda i: (0, 0)),
            ],
            out_specs=pl.BlockSpec((tm, nc), lambda i: (i, 0)),
        ),
        compiler_params=pltpu.CompilerParams(
            dimension_semantics=("parallel",),
            vmem_limit_bytes=VMEM_LIMIT),
    )(z, scale_row, shift_row)


def affine_leaky_head(z, scale_row, shift_row, w4_mat, b4, *, ns):
    mp, nc = z.shape          # mp is a multiple of 16 * ns
    npad = mp // 16
    grid = npad // ns
    return pl.pallas_call(
        _affine_leaky_head_kernel,
        out_shape=jax.ShapeDtypeStruct((npad, 1), jnp.float32),
        grid_spec=pltpu.PrefetchScalarGridSpec(
            num_scalar_prefetch=0,
            grid=(grid,),
            in_specs=[
                pl.BlockSpec((ns * 16, nc), lambda i: (i, 0)),
                pl.BlockSpec((1, nc), lambda i: (0, 0)),
                pl.BlockSpec((1, nc), lambda i: (0, 0)),
                pl.BlockSpec((16, nc), lambda i: (0, 0)),
                pl.BlockSpec(memory_space=pltpu.MemorySpace.SMEM),
            ],
            out_specs=pl.BlockSpec((ns, 1), lambda i: (i, 0)),
        ),
        compiler_params=pltpu.CompilerParams(
            dimension_semantics=("parallel",),
            vmem_limit_bytes=VMEM_LIMIT),
    )(z, scale_row, shift_row, w4_mat, b4)


# ----------------------------------------------------------------------------
# Host-side helpers (tiny XLA glue between pallas_calls)
# ----------------------------------------------------------------------------
def _bn_scale_shift(stats, m_real, gamma, beta):
    """Reduce per-tile partials -> BN scale/shift rows (training-mode batch stats,
    biased variance, exactly like nn.BatchNorm2d normalization)."""
    tot = jnp.sum(stats, axis=0)                       # (2, C)
    mean = tot[0] / m_real
    var = jnp.maximum(tot[1] / m_real - mean * mean, 0.0)
    scale = gamma * jax.lax.rsqrt(var + BN_EPS)        # padded channels: gamma=0 -> 0
    shift = beta - mean * scale
    return scale.reshape(1, -1), shift.reshape(1, -1)


def _im2col_nhwc(x, k, stride, pad):
    """Channel-last im2col.  Rows ordered (n, oy, ox); columns (ky, kx, ci)."""
    # TODO(synk): fold this strided window gather into the kernels (pl.ds stride
    # reads) to remove the 4x patch materialization in HBM.
    n, h, w, c = x.shape
    if pad:
        x = jnp.pad(x, ((0, 0), (pad, pad), (pad, pad), (0, 0)))
    oh = (h + 2 * pad - k) // stride + 1
    ow = (w + 2 * pad - k) // stride + 1
    cols = []
    for ky in range(k):
        for kx in range(k):
            cols.append(x[:, ky:ky + stride * oh:stride,
                          kx:kx + stride * ow:stride, :])
    patches = jnp.stack(cols, axis=3)                  # (N, OH, OW, K*K, C)
    return patches.reshape(n * oh * ow, k * k * c), (n, oh, ow)


# ----------------------------------------------------------------------------
# Parameter preparation: permute / pad / cast once, outside the hot path.
# ----------------------------------------------------------------------------
def _prep_conv_w(weight, cin_pad, cout_pad):
    cout, cin, kh, kw = weight.shape
    w = jnp.transpose(weight, (2, 3, 1, 0))            # (KH, KW, Cin, Cout)
    w = jnp.pad(w, ((0, 0), (0, 0), (0, cin_pad - cin), (0, cout_pad - cout)))
    return w.reshape(kh * kw * cin_pad, cout_pad).astype(jnp.bfloat16)


def prepare_params(raw, d, in_ch=1):
    c1, c2, c3 = d, 2 * d, 4 * d
    c1p, c2p, c3p = (_round_up(c, 128) for c in (c1, c2, c3))
    w1m = _prep_conv_w(raw["w1"], in_ch, c1p)
    b1r = _pad_last(raw["b1"].reshape(1, -1), c1p).astype(jnp.float32)
    # conv2/conv3 weights: K rows padded to cover the padded input channels of
    # the previous (lane-dense) activation; conv2/conv3 biases cancel under BN.
    w2m = _prep_conv_w(raw["w2"], c1p, c2p)
    w3m = _prep_conv_w(raw["w3"], c2p, c3p)
    g2 = _pad_last(raw["g2"], c2p).astype(jnp.float32)
    be2 = _pad_last(raw["be2"], c2p).astype(jnp.float32)
    g3 = _pad_last(raw["g3"], c3p).astype(jnp.float32)
    be3 = _pad_last(raw["be3"], c3p).astype(jnp.float32)
    # conv4 weight (1, 4d, 4, 4) -> (KH*KW, 4d) row (ky*4+kx) x channel, padded.
    w4 = jnp.transpose(raw["w4"][0], (1, 2, 0)).reshape(16, c3)
    w4m = _pad_last(w4, c3p).astype(jnp.float32)
    b4 = raw["b4"].reshape(1, 1).astype(jnp.float32)
    return dict(w1m=w1m, b1r=b1r, w2m=w2m, w3m=w3m,
                g2=g2, be2=be2, g3=g3, be3=be3, w4m=w4m, b4=b4)


# ----------------------------------------------------------------------------
# Discriminator forward (img_size=32, mnist: 1 input channel)
# ----------------------------------------------------------------------------
def discriminator_forward(x_nchw, params, *, d):
    n = x_nchw.shape[0]
    c1p = _round_up(d, 128)
    c2p = _round_up(2 * d, 128)

    x = jnp.transpose(x_nchw, (0, 2, 3, 1)).astype(jnp.bfloat16)   # NHWC, once

    # conv1 + leaky_relu (M-tiled GEMM, lane-dense padded Cout)
    p1, (_, oh1, ow1) = _im2col_nhwc(x, 4, 2, 1)
    m1 = p1.shape[0]
    a1 = conv_bias_leaky(p1, params["w1m"], params["b1r"], tm=1024)
    a1 = a1[:m1] if a1.shape[0] != m1 else a1
    x1 = a1.reshape(n, oh1, ow1, c1p)                  # padded channels stay 0

    # conv2 + BN(batch stats) + leaky_relu  (two-pass, M-tiled, parallel)
    p2, (_, oh2, ow2) = _im2col_nhwc(x1, 4, 2, 1)
    m2 = p2.shape[0]
    tm2 = min(512, m2)
    z2, st2 = conv_gemm_stats(p2, params["w2m"], tm=tm2)
    sc2, sh2 = _bn_scale_shift(st2, m2, params["g2"], params["be2"])
    a2 = affine_leaky(z2, sc2, sh2, tm=tm2)
    a2 = a2[:m2] if a2.shape[0] != m2 else a2
    x2 = a2.reshape(n, oh2, ow2, c2p)

    # conv3 + BN + leaky, with conv4 + sigmoid fused into the pass-2 kernel
    p3, _ = _im2col_nhwc(x2, 4, 2, 1)
    m3 = p3.shape[0]                                   # 16 * n
    ns3 = min(32, n)                                   # samples per head tile
    tm3 = 16 * ns3
    z3, st3 = conv_gemm_stats(p3, params["w3m"], tm=tm3)
    sc3, sh3 = _bn_scale_shift(st3, m3, params["g3"], params["be3"])
    out = affine_leaky_head(z3, sc3, sh3, params["w4m"], params["b4"], ns=ns3)
    out = out[:n] if out.shape[0] != n else out
    return out.reshape(n, 1, 1, 1)


def init_params(key, d=32, in_ch=1):
    ks = jax.random.split(key, 4)
    mk = lambda k, co, ci: 0.02 * jax.random.normal(k, (co, ci, 4, 4), jnp.float32)
    return {
        "w1": mk(ks[0], d, in_ch),     "b1": jnp.zeros((d,), jnp.float32),
        "w2": mk(ks[1], 2 * d, d),     "b2": jnp.zeros((2 * d,), jnp.float32),
        "g2": jnp.ones((2 * d,), jnp.float32), "be2": jnp.zeros((2 * d,), jnp.float32),
        "w3": mk(ks[2], 4 * d, 2 * d), "b3": jnp.zeros((4 * d,), jnp.float32),
        "g3": jnp.ones((4 * d,), jnp.float32), "be3": jnp.zeros((4 * d,), jnp.float32),
        "w4": mk(ks[3], 1, 4 * d),     "b4": jnp.zeros((1,), jnp.float32),
    }


if __name__ == "__main__":
    key = jax.random.PRNGKey(0)
    k_in, k_par = jax.random.split(key)
    d = 32           # small width for the test (PyTorch default d=128 also works)
    batch = 2
    x = jax.random.normal(k_in, (batch, 1, 32, 32), jnp.float32)   # NCHW input
    raw = init_params(k_par, d=d, in_ch=1)
    params = prepare_params(raw, d=d, in_ch=1)

    fwd = jax.jit(functools.partial(discriminator_forward, d=d))
    out = jax.block_until_ready(fwd(x, params))
    assert out.shape == (batch, 1, 1, 1), out.shape
    assert bool(jnp.all(jnp.isfinite(out)))
    assert bool(jnp.all((out >= 0.0) & (out <= 1.0)))
    print("KERNEL_OK")
</pallas_src>

<mosaic_0001>
module attributes {stable_mosaic.version = 11 : i64} {
  func.func @_conv_bias_leaky_kernel(%arg0: i32, %arg1: memref<512x16xbf16, #tpu.memory_space<vmem>>, %arg2: memref<16x128xbf16, #tpu.memory_space<vmem>>, %arg3: memref<1x128xf32, #tpu.memory_space<vmem>>, %arg4: memref<512x128xbf16, #tpu.memory_space<vmem>>) attributes {dimension_semantics = [#tpu.dimension_semantics<parallel>], iteration_bounds = array<i64: 1>, scalar_prefetch = 0 : i64, scratch_operands = 0 : i64, tpu.core_type = #tpu.core_type<tc>, window_params = [{transform_indices = @transform_0, window_bounds = array<i64: 512, 16>}, {pipeline_mode = #tpu.pipeline_mode<synchronous>, transform_indices = @transform_1, window_bounds = array<i64: 16, 128>}, {pipeline_mode = #tpu.pipeline_mode<synchronous>, transform_indices = @transform_2, window_bounds = array<i64: 1, 128>}, {transform_indices = @transform_3, window_bounds = array<i64: 512, 128>}]} {
    %c0 = arith.constant 0 : index
    %c0_0 = arith.constant 0 : index
    %0 = vector.load %arg1[%c0, %c0_0] : memref<512x16xbf16, #tpu.memory_space<vmem>>, vector<512x16xbf16>
    %c0_1 = arith.constant 0 : index
    %c0_2 = arith.constant 0 : index
    %1 = vector.load %arg2[%c0_1, %c0_2] : memref<16x128xbf16, #tpu.memory_space<vmem>>, vector<16x128xbf16>
    %cst = arith.constant dense<0.000000e+00> : vector<512x128xf32>
    %2 = tpu.matmul %0, %1, %cst {dimension_numbers = #tpu.dot_dimension_numbers<[1], [0], [0], [1], [0, 0, 1, 1], [], []>} : vector<512x16xbf16>, vector<16x128xbf16>, vector<512x128xf32> -> vector<512x128xf32>
    %c0_3 = arith.constant 0 : index
    %c0_4 = arith.constant 0 : index
    %3 = vector.load %arg3[%c0_3, %c0_4] : memref<1x128xf32, #tpu.memory_space<vmem>>, vector<1x128xf32>
    %4 = vector.broadcast %3 : vector<1x128xf32> to vector<512x128xf32>
    %5 = arith.addf %2, %4 : vector<512x128xf32>
    %cst_5 = arith.constant 0.000000e+00 : f32
    %6 = vector.broadcast %cst_5 : f32 to vector<512x128xf32>
    %7 = arith.cmpf ogt, %5, %6 : vector<512x128xf32>
    %cst_6 = arith.constant 2.000000e-01 : f32
    %8 = vector.broadcast %cst_6 : f32 to vector<512x128xf32>
    %9 = arith.mulf %8, %5 : vector<512x128xf32>
    %10 = arith.select %7, %5, %9 : vector<512x128xi1>, vector<512x128xf32>
    %11 = arith.truncf %10 : vector<512x128xf32> to vector<512x128xbf16>
    %c0_7 = arith.constant 0 : index
    %c0_8 = arith.constant 0 : index
    %12 = vector.load %arg4[%c0_7, %c0_8] : memref<512x128xbf16, #tpu.memory_space<vmem>>, vector<512x128xbf16>
    tpu.vector_store %arg4[%c0_7, %c0_8], %11 {strides = array<i32>} : memref<512x128xbf16, #tpu.memory_space<vmem>>, vector<512x128xbf16>,
    return
  }
  func.func @transform_0(%arg0: i32) -> (i32, i32) {
    %c0_i32 = arith.constant 0 : i32
    %c0_i32_0 = arith.constant 0 : i32
    return %arg0, %c0_i32 : i32, i32
  }
  func.func @transform_1(%arg0: i32) -> (i32, i32) {
    %c0_i32 = arith.constant 0 : i32
    %c0_i32_0 = arith.constant 0 : i32
    %c0_i32_1 = arith.constant 0 : i32
    return %c0_i32, %c0_i32_0 : i32, i32
  }
  func.func @transform_2(%arg0: i32) -> (i32, i32) {
    %c0_i32 = arith.constant 0 : i32
    %c0_i32_0 = arith.constant 0 : i32
    %c0_i32_1 = arith.constant 0 : i32
    return %c0_i32, %c0_i32_0 : i32, i32
  }
  func.func @transform_3(%arg0: i32) -> (i32, i32) {
    %c0_i32 = arith.constant 0 : i32
    %c0_i32_0 = arith.constant 0 : i32
    return %arg0, %c0_i32 : i32, i32
  }
}

module attributes {stable_mosaic.version = 11 : i64} {
  func.func @_gemm_stats_kernel(%arg0: i32, %arg1: memref<128x2048xbf16, #tpu.memory_space<vmem>>, %arg2: memref<2048x128xbf16, #tpu.memory_space<vmem>>, %arg3: memref<128x128xf32, #tpu.memory_space<vmem>>, %arg4: memref<1x2x128xf32, #tpu.memory_space<vmem>>) attributes {dimension_semantics = [#tpu.dimension_semantics<parallel>], iteration_bounds = array<i64: 1>, scalar_prefetch = 0 : i64, scratch_operands = 0 : i64, tpu.core_type = #tpu.core_type<tc>, window_params = [{transform_indices = @transform_0, window_bounds = array<i64: 128, 2048>}, {pipeline_mode = #tpu.pipeline_mode<synchronous>, transform_indices = @transform_1, window_bounds = array<i64: 2048, 128>}, {transform_indices = @transform_2, window_bounds = array<i64: 128, 128>}, {transform_indices = @transform_3, window_bounds = array<i64: 1, 2, 128>}]} {
    %c0 = arith.constant 0 : index
    %c0_0 = arith.constant 0 : index
    %0 = vector.load %arg1[%c0, %c0_0] : memref<128x2048xbf16, #tpu.memory_space<vmem>>, vector<128x2048xbf16>
    %c0_1 = arith.constant 0 : index
    %c0_2 = arith.constant 0 : index
    %1 = vector.load %arg2[%c0_1, %c0_2] : memref<2048x128xbf16, #tpu.memory_space<vmem>>, vector<2048x128xbf16>
    %cst = arith.constant dense<0.000000e+00> : vector<128x128xf32>
    %2 = tpu.matmul %0, %1, %cst {dimension_numbers = #tpu.dot_dimension_numbers<[1], [0], [0], [1], [0, 0, 1, 1], [], []>} : vector<128x2048xbf16>, vector<2048x128xbf16>, vector<128x128xf32> -> vector<128x128xf32>
    %c0_3 = arith.constant 0 : index
    %c0_4 = arith.constant 0 : index
    %3 = vector.load %arg3[%c0_3, %c0_4] : memref<128x128xf32, #tpu.memory_space<vmem>>, vector<128x128xf32>
    tpu.vector_store %arg3[%c0_3, %c0_4], %2 {strides = array<i32>} : memref<128x128xf32, #tpu.memory_space<vmem>>, vector<128x128xf32>,
    %cst_5 = arith.constant dense<0.000000e+00> : vector<128xf32>
    %4 = vector.multi_reduction <add>, %2, %cst_5 [0] : vector<128x128xf32> to vector<128xf32>
    %5 = vector.shape_cast %4 : vector<128xf32> to vector<1x128xf32>
    %6 = arith.mulf %2, %2 : vector<128x128xf32>
    %cst_6 = arith.constant dense<0.000000e+00> : vector<128xf32>
    %7 = vector.multi_reduction <add>, %6, %cst_6 [0] : vector<128x128xf32> to vector<128xf32>
    %8 = vector.shape_cast %7 : vector<128xf32> to vector<1x128xf32>
    %9 = tpu.concatenate %5, %8 in 0 : vector<1x128xf32>, vector<1x128xf32> -> vector<2x128xf32>
    %10 = vector.shape_cast %9 : vector<2x128xf32> to vector<1x2x128xf32>
    %c0_7 = arith.constant 0 : index
    %c0_8 = arith.constant 0 : index
    %c0_9 = arith.constant 0 : index
    %11 = vector.load %arg4[%c0_7, %c0_8, %c0_9] : memref<1x2x128xf32, #tpu.memory_space<vmem>>, vector<1x2x128xf32>
    tpu.vector_store %arg4[%c0_7, %c0_8, %c0_9], %10 {strides = array<i32>} : memref<1x2x128xf32, #tpu.memory_space<vmem>>, vector<1x2x128xf32>,
    return
  }
  func.func @transform_0(%arg0: i32) -> (i32, i32) {
    %c0_i32 = arith.constant 0 : i32
    %c0_i32_0 = arith.constant 0 : i32
    return %arg0, %c0_i32 : i32, i32
  }
  func.func @transform_1(%arg0: i32) -> (i32, i32) {
    %c0_i32 = arith.constant 0 : i32
    %c0_i32_0 = arith.constant 0 : i32
    %c0_i32_1 = arith.constant 0 : i32
    return %c0_i32, %c0_i32_0 : i32, i32
  }
  func.func @transform_2(%arg0: i32) -> (i32, i32) {
    %c0_i32 = arith.constant 0 : i32
    %c0_i32_0 = arith.constant 0 : i32
    return %arg0, %c0_i32 : i32, i32
  }
  func.func @transform_3(%arg0: i32) -> (i32, i32, i32) {
    %c0_i32 = arith.constant 0 : i32
    %c0_i32_0 = arith.constant 0 : i32
    %c0_i32_1 = arith.constant 0 : i32
    return %arg0, %c0_i32, %c0_i32_0 : i32, i32, i32
  }
}

module attributes {stable_mosaic.version = 11 : i64} {
  func.func @_affine_leaky_kernel(%arg0: i32, %arg1: memref<128x128xf32, #tpu.memory_space<vmem>>, %arg2: memref<1x128xf32, #tpu.memory_space<vmem>>, %arg3: memref<1x128xf32, #tpu.memory_space<vmem>>, %arg4: memref<128x128xbf16, #tpu.memory_space<vmem>>) attributes {dimension_semantics = [#tpu.dimension_semantics<parallel>], iteration_bounds = array<i64: 1>, scalar_prefetch = 0 : i64, scratch_operands = 0 : i64, tpu.core_type = #tpu.core_type<tc>, window_params = [{transform_indices = @transform_0, window_bounds = array<i64: 128, 128>}, {pipeline_mode = #tpu.pipeline_mode<synchronous>, transform_indices = @transform_1, window_bounds = array<i64: 1, 128>}, {pipeline_mode = #tpu.pipeline_mode<synchronous>, transform_indices = @transform_2, window_bounds = array<i64: 1, 128>}, {transform_indices = @transform_3, window_bounds = array<i64: 128, 128>}]} {
    %c0 = arith.constant 0 : index
    %c0_0 = arith.constant 0 : index
    %0 = vector.load %arg1[%c0, %c0_0] : memref<128x128xf32, #tpu.memory_space<vmem>>, vector<128x128xf32>
    %c0_1 = arith.constant 0 : index
    %c0_2 = arith.constant 0 : index
    %1 = vector.load %arg2[%c0_1, %c0_2] : memref<1x128xf32, #tpu.memory_space<vmem>>, vector<1x128xf32>
    %2 = vector.broadcast %1 : vector<1x128xf32> to vector<128x128xf32>
    %3 = arith.mulf %0, %2 : vector<128x128xf32>
    %c0_3 = arith.constant 0 : index
    %c0_4 = arith.constant 0 : index
    %4 = vector.load %arg3[%c0_3, %c0_4] : memref<1x128xf32, #tpu.memory_space<vmem>>, vector<1x128xf32>
    %5 = vector.broadcast %4 : vector<1x128xf32> to vector<128x128xf32>
    %6 = arith.addf %3, %5 : vector<128x128xf32>
    %cst = arith.constant 0.000000e+00 : f32
    %7 = vector.broadcast %cst : f32 to vector<128x128xf32>
    %8 = arith.cmpf ogt, %6, %7 : vector<128x128xf32>
    %cst_5 = arith.constant 2.000000e-01 : f32
    %9 = vector.broadcast %cst_5 : f32 to vector<128x128xf32>
    %10 = arith.mulf %9, %6 : vector<128x128xf32>
    %11 = arith.select %8, %6, %10 : vector<128x128xi1>, vector<128x128xf32>
    %12 = arith.truncf %11 : vector<128x128xf32> to vector<128x128xbf16>
    %c0_6 = arith.constant 0 : index
    %c0_7 = arith.constant 0 : index
    %13 = vector.load %arg4[%c0_6, %c0_7] : memref<128x128xbf16, #tpu.memory_space<vmem>>, vector<128x128xbf16>
    tpu.vector_store %arg4[%c0_6, %c0_7], %12 {strides = array<i32>} : memref<128x128xbf16, #tpu.memory_space<vmem>>, vector<128x128xbf16>,
    return
  }
  func.func @transform_0(%arg0: i32) -> (i32, i32) {
    %c0_i32 = arith.constant 0 : i32
    %c0_i32_0 = arith.constant 0 : i32
    return %arg0, %c0_i32 : i32, i32
  }
  func.func @transform_1(%arg0: i32) -> (i32, i32) {
    %c0_i32 = arith.constant 0 : i32
    %c0_i32_0 = arith.constant 0 : i32
    %c0_i32_1 = arith.constant 0 : i32
    return %c0_i32, %c0_i32_0 : i32, i32
  }
  func.func @transform_2(%arg0: i32) -> (i32, i32) {
    %c0_i32 = arith.constant 0 : i32
    %c0_i32_0 = arith.constant 0 : i32
    %c0_i32_1 = arith.constant 0 : i32
    return %c0_i32, %c0_i32_0 : i32, i32
  }
  func.func @transform_3(%arg0: i32) -> (i32, i32) {
    %c0_i32 = arith.constant 0 : i32
    %c0_i32_0 = arith.constant 0 : i32
    return %arg0, %c0_i32 : i32, i32
  }
}

module attributes {stable_mosaic.version = 11 : i64} {
  func.func @_gemm_stats_kernel(%arg0: i32, %arg1: memref<32x2048xbf16, #tpu.memory_space<vmem>>, %arg2: memref<2048x128xbf16, #tpu.memory_space<vmem>>, %arg3: memref<32x128xf32, #tpu.memory_space<vmem>>, %arg4: memref<1x2x128xf32, #tpu.memory_space<vmem>>) attributes {dimension_semantics = [#tpu.dimension_semantics<parallel>], iteration_bounds = array<i64: 1>, scalar_prefetch = 0 : i64, scratch_operands = 0 : i64, tpu.core_type = #tpu.core_type<tc>, window_params = [{transform_indices = @transform_0, window_bounds = array<i64: 32, 2048>}, {pipeline_mode = #tpu.pipeline_mode<synchronous>, transform_indices = @transform_1, window_bounds = array<i64: 2048, 128>}, {transform_indices = @transform_2, window_bounds = array<i64: 32, 128>}, {transform_indices = @transform_3, window_bounds = array<i64: 1, 2, 128>}]} {
    %c0 = arith.constant 0 : index
    %c0_0 = arith.constant 0 : index
    %0 = vector.load %arg1[%c0, %c0_0] : memref<32x2048xbf16, #tpu.memory_space<vmem>>, vector<32x2048xbf16>
    %c0_1 = arith.constant 0 : index
    %c0_2 = arith.constant 0 : index
    %1 = vector.load %arg2[%c0_1, %c0_2] : memref<2048x128xbf16, #tpu.memory_space<vmem>>, vector<2048x128xbf16>
    %cst = arith.constant dense<0.000000e+00> : vector<32x128xf32>
    %2 = tpu.matmul %0, %1, %cst {dimension_numbers = #tpu.dot_dimension_numbers<[1], [0], [0], [1], [0, 0, 1, 1], [], []>} : vector<32x2048xbf16>, vector<2048x128xbf16>, vector<32x128xf32> -> vector<32x128xf32>
    %c0_3 = arith.constant 0 : index
    %c0_4 = arith.constant 0 : index
    %3 = vector.load %arg3[%c0_3, %c0_4] : memref<32x128xf32, #tpu.memory_space<vmem>>, vector<32x128xf32>
    tpu.vector_store %arg3[%c0_3, %c0_4], %2 {strides = array<i32>} : memref<32x128xf32, #tpu.memory_space<vmem>>, vector<32x128xf32>,
    %cst_5 = arith.constant dense<0.000000e+00> : vector<128xf32>
    %4 = vector.multi_reduction <add>, %2, %cst_5 [0] : vector<32x128xf32> to vector<128xf32>
    %5 = vector.shape_cast %4 : vector<128xf32> to vector<1x128xf32>
    %6 = arith.mulf %2, %2 : vector<32x128xf32>
    %cst_6 = arith.constant dense<0.000000e+00> : vector<128xf32>
    %7 = vector.multi_reduction <add>, %6, %cst_6 [0] : vector<32x128xf32> to vector<128xf32>
    %8 = vector.shape_cast %7 : vector<128xf32> to vector<1x128xf32>
    %9 = tpu.concatenate %5, %8 in 0 : vector<1x128xf32>, vector<1x128xf32> -> vector<2x128xf32>
    %10 = vector.shape_cast %9 : vector<2x128xf32> to vector<1x2x128xf32>
    %c0_7 = arith.constant 0 : index
    %c0_8 = arith.constant 0 : index
    %c0_9 = arith.constant 0 : index
    %11 = vector.load %arg4[%c0_7, %c0_8, %c0_9] : memref<1x2x128xf32, #tpu.memory_space<vmem>>, vector<1x2x128xf32>
    tpu.vector_store %arg4[%c0_7, %c0_8, %c0_9], %10 {strides = array<i32>} : memref<1x2x128xf32, #tpu.memory_space<vmem>>, vector<1x2x128xf32>,
    return
  }
  func.func @transform_0(%arg0: i32) -> (i32, i32) {
    %c0_i32 = arith.constant 0 : i32
    %c0_i32_0 = arith.constant 0 : i32
    return %arg0, %c0_i32 : i32, i32
  }
  func.func @transform_1(%arg0: i32) -> (i32, i32) {
    %c0_i32 = arith.constant 0 : i32
    %c0_i32_0 = arith.constant 0 : i32
    %c0_i32_1 = arith.constant 0 : i32
    return %c0_i32, %c0_i32_0 : i32, i32
  }
  func.func @transform_2(%arg0: i32) -> (i32, i32) {
    %c0_i32 = arith.constant 0 : i32
    %c0_i32_0 = arith.constant 0 : i32
    return %arg0, %c0_i32 : i32, i32
  }
  func.func @transform_3(%arg0: i32) -> (i32, i32, i32) {
    %c0_i32 = arith.constant 0 : i32
    %c0_i32_0 = arith.constant 0 : i32
    %c0_i32_1 = arith.constant 0 : i32
    return %arg0, %c0_i32, %c0_i32_0 : i32, i32, i32
  }
}

module attributes {stable_mosaic.version = 11 : i64} {
  func.func @_affine_leaky_head_kernel(%arg0: i32, %arg1: memref<32x128xf32, #tpu.memory_space<vmem>>, %arg2: memref<1x128xf32, #tpu.memory_space<vmem>>, %arg3: memref<1x128xf32, #tpu.memory_space<vmem>>, %arg4: memref<16x128xf32, #tpu.memory_space<vmem>>, %arg5: memref<1x1xf32, #tpu.memory_space<smem>>, %arg6: memref<2x1xf32, #tpu.memory_space<vmem>>) attributes {dimension_semantics = [#tpu.dimension_semantics<parallel>], iteration_bounds = array<i64: 1>, scalar_prefetch = 0 : i64, scratch_operands = 0 : i64, tpu.core_type = #tpu.core_type<tc>, window_params = [{transform_indices = @transform_0, window_bounds = array<i64: 32, 128>}, {pipeline_mode = #tpu.pipeline_mode<synchronous>, transform_indices = @transform_1, window_bounds = array<i64: 1, 128>}, {pipeline_mode = #tpu.pipeline_mode<synchronous>, transform_indices = @transform_2, window_bounds = array<i64: 1, 128>}, {pipeline_mode = #tpu.pipeline_mode<synchronous>, transform_indices = @transform_3, window_bounds = array<i64: 16, 128>}, {transform_indices = @transform_4, window_bounds = array<i64: 1, 1>}, {transform_indices = @transform_5, window_bounds = array<i64: 2, 1>}]} {
    %c0 = arith.constant 0 : index
    %c0_0 = arith.constant 0 : index
    %0 = vector.load %arg1[%c0, %c0_0] : memref<32x128xf32, #tpu.memory_space<vmem>>, vector<32x128xf32>
    %c0_1 = arith.constant 0 : index
    %c0_2 = arith.constant 0 : index
    %1 = vector.load %arg2[%c0_1, %c0_2] : memref<1x128xf32, #tpu.memory_space<vmem>>, vector<1x128xf32>
    %2 = vector.broadcast %1 : vector<1x128xf32> to vector<32x128xf32>
    %3 = arith.mulf %0, %2 : vector<32x128xf32>
    %c0_3 = arith.constant 0 : index
    %c0_4 = arith.constant 0 : index
    %4 = vector.load %arg3[%c0_3, %c0_4] : memref<1x128xf32, #tpu.memory_space<vmem>>, vector<1x128xf32>
    %5 = vector.broadcast %4 : vector<1x128xf32> to vector<32x128xf32>
    %6 = arith.addf %3, %5 : vector<32x128xf32>
    %cst = arith.constant 0.000000e+00 : f32
    %7 = vector.broadcast %cst : f32 to vector<32x128xf32>
    %8 = arith.cmpf ogt, %6, %7 : vector<32x128xf32>
    %cst_5 = arith.constant 2.000000e-01 : f32
    %9 = vector.broadcast %cst_5 : f32 to vector<32x128xf32>
    %10 = arith.mulf %9, %6 : vector<32x128xf32>
    %11 = arith.select %8, %6, %10 : vector<32x128xi1>, vector<32x128xf32>
    %12 = vector.shape_cast %11 : vector<32x128xf32> to vector<2x16x128xf32>
    %c0_6 = arith.constant 0 : index
    %c0_7 = arith.constant 0 : index
    %13 = vector.load %arg4[%c0_6, %c0_7] : memref<16x128xf32, #tpu.memory_space<vmem>>, vector<16x128xf32>
    %14 = vector.shape_cast %13 : vector<16x128xf32> to vector<1x16x128xf32>
    %15 = vector.broadcast %14 : vector<1x16x128xf32> to vector<2x16x128xf32>
    %16 = arith.mulf %12, %15 : vector<2x16x128xf32>
    %cst_8 = arith.constant dense<0.000000e+00> : vector<2x16xf32>
    %17 = vector.multi_reduction <add>, %16, %cst_8 [2] : vector<2x16x128xf32> to vector<2x16xf32>
    %cst_9 = arith.constant dense<0.000000e+00> : vector<2xf32>
    %18 = vector.multi_reduction <add>, %17, %cst_9 [1] : vector<2x16xf32> to vector<2xf32>
    %19 = vector.shape_cast %18 : vector<2xf32> to vector<2x1xf32>
    %c0_10 = arith.constant 0 : index
    %c0_11 = arith.constant 0 : index
    %20 = memref.load %arg5[%c0_10, %c0_11] : memref<1x1xf32, #tpu.memory_space<smem>>
    %21 = vector.broadcast %20 : f32 to vector<2x1xf32>
    %22 = arith.addf %19, %21 : vector<2x1xf32>
    %cst_12 = arith.constant 0.000000e+00 : f32
    %23 = vector.broadcast %cst_12 : f32 to vector<2x1xf32>
    %24 = arith.subf %23, %22 : vector<2x1xf32>
    %25 = math.exp %24 : vector<2x1xf32>
    %cst_13 = arith.constant 1.000000e+00 : f32
    %26 = vector.broadcast %cst_13 : f32 to vector<2x1xf32>
    %27 = arith.addf %26, %25 : vector<2x1xf32>
    %cst_14 = arith.constant 1.000000e+00 : f32
    %28 = vector.broadcast %cst_14 : f32 to vector<2x1xf32>
    %29 = arith.divf %28, %27 : vector<2x1xf32>
    %c0_15 = arith.constant 0 : index
    %c0_16 = arith.constant 0 : index
    %30 = vector.load %arg6[%c0_15, %c0_16] : memref<2x1xf32, #tpu.memory_space<vmem>>, vector<2x1xf32>
    tpu.vector_store %arg6[%c0_15, %c0_16], %29 {strides = array<i32>} : memref<2x1xf32, #tpu.memory_space<vmem>>, vector<2x1xf32>,
    return
  }
  func.func @transform_0(%arg0: i32) -> (i32, i32) {
    %c0_i32 = arith.constant 0 : i32
    %c0_i32_0 = arith.constant 0 : i32
    return %arg0, %c0_i32 : i32, i32
  }
  func.func @transform_1(%arg0: i32) -> (i32, i32) {
    %c0_i32 = arith.constant 0 : i32
    %c0_i32_0 = arith.constant 0 : i32
    %c0_i32_1 = arith.constant 0 : i32
    return %c0_i32, %c0_i32_0 : i32, i32
  }
  func.func @transform_2(%arg0: i32) -> (i32, i32) {
    %c0_i32 = arith.constant 0 : i32
    %c0_i32_0 = arith.constant 0 : i32
    %c0_i32_1 = arith.constant 0 : i32
    return %c0_i32, %c0_i32_0 : i32, i32
  }
  func.func @transform_3(%arg0: i32) -> (i32, i32) {
    %c0_i32 = arith.constant 0 : i32
    %c0_i32_0 = arith.constant 0 : i32
    %c0_i32_1 = arith.constant 0 : i32
    return %c0_i32, %c0_i32_0 : i32, i32
  }
  func.func @transform_4(%arg0: i32) -> (i32, i32) {
    %c0_i32 = arith.constant 0 : i32
    %c0_i32_0 = arith.constant 0 : i32
    %c0_i32_1 = arith.constant 0 : i32
    return %c0_i32, %c0_i32_0 : i32, i32
  }
  func.func @transform_5(%arg0: i32) -> (i32, i32) {
    %c0_i32 = arith.constant 0 : i32
    %c0_i32_0 = arith.constant 0 : i32
    return %arg0, %c0_i32 : i32, i32
  }
}

</mosaic_0001>

<llo_original>
// kernel: discriminator_forward.5
$region0: #{discriminator_forward.5}
  #allocation0 [shape = 'u32[]', space=smem, size = 0x4, offset = 0x4, fixed_abs, tag = 'smem constant byte address 0x4 - core index']
  #allocation1 [shape = 'u32[144,128]{1,0:T(1,128)}', space=vmem, size = 0x12000, scoped, tag = 'internal scratch']
  %s0 = inlined_call_operand.vmem [shape: bf16[512,16], index: 0, kind: input, shape index: {}]
  %s1 = inlined_call_operand.vmem [shape: bf16[16,128], index: 1, kind: input, shape index: {}]
  %s2 = inlined_call_operand.vmem [shape: f32[1,128], index: 2, kind: input, shape index: {}]
  %s3 = inlined_call_operand.vmem [shape: bf16[512,128], index: 3, kind: output, shape index: {}]
  %s4 = sld [smem:[#allocation0]]
  $region22: #{discriminator_forward.5} parent=0
    _
  %s6 = ssub.s32 1, %s4
  %s7 = scalar_select 0, %s6, %s4
  // Predicated region
  $region2: #{discriminator_forward.5} parent=0 // pred_check
    _
  $region3: #{discriminator_forward.5} parent=0 // pred_check_branch
    %9 = sbr.rel (0) target = $region5
  $region4: #{discriminator_forward.5} parent=0 // pred_region
    _
  $region5: #{discriminator_forward.5} parent=0 // pred_fallthru
    _
  // Predicated region
  $region6: #{discriminator_forward.5} parent=0 // pred_check
    _
  $region7: #{discriminator_forward.5} parent=0 // pred_check_branch
    %11 = sbr.rel (0) target = $region9
  $region8: #{discriminator_forward.5} parent=0 // pred_region
    _
  $region9: #{discriminator_forward.5} parent=0 // pred_fallthru
    _
  // Predicated region
  $region10: #{discriminator_forward.5} parent=0 // pred_check
    _
  $region11: #{discriminator_forward.5} parent=0 // pred_check_branch
    %13 = sbr.rel (0) target = $region13
  $region12: #{discriminator_forward.5} parent=0 // pred_region
    _
  $region13: #{discriminator_forward.5} parent=0 // pred_fallthru
    _
  %v15 = vld [vmem:[%s0] sm:$0xf]
  %v16 = vld [vmem:[%s0 + $0x4] sm:$0xf]
  %v17 = vld [vmem:[%s0 + $0x8] sm:$0xf]
  %v18 = vld [vmem:[%s0 + $0xc] sm:$0xf]
  %v19 = vld [vmem:[%s0 + $0x10] sm:$0xf]
  %v20 = vld [vmem:[%s0 + $0x14] sm:$0xf]
  %v21 = vld [vmem:[%s0 + $0x18] sm:$0xf]
  %v22 = vld [vmem:[%s0 + $0x1c] sm:$0xf]
  %v23 = vld [vmem:[%s0 + $0x20] sm:$0xf]
  %v24 = vld [vmem:[%s0 + $0x24] sm:$0xf]
  %v25 = vld [vmem:[%s0 + $0x28] sm:$0xf]
  %v26 = vld [vmem:[%s0 + $0x2c] sm:$0xf]
  %v27 = vld [vmem:[%s0 + $0x30] sm:$0xf]
  %v28 = vld [vmem:[%s0 + $0x34] sm:$0xf]
  %v29 = vld [vmem:[%s0 + $0x38] sm:$0xf]
  %v30 = vld [vmem:[%s0 + $0x3c] sm:$0xf]
  %v31 = vld [vmem:[%s0 + $0x40] sm:$0xf]
  %v32 = vld [vmem:[%s0 + $0x44] sm:$0xf]
  %v33 = vld [vmem:[%s0 + $0x48] sm:$0xf]
  %v34 = vld [vmem:[%s0 + $0x4c] sm:$0xf]
  %v35 = vld [vmem:[%s0 + $0x50] sm:$0xf]
  %v36 = vld [vmem:[%s0 + $0x54] sm:$0xf]
  %v37 = vld [vmem:[%s0 + $0x58] sm:$0xf]
  %v38 = vld [vmem:[%s0 + $0x5c] sm:$0xf]
  %v39 = vld [vmem:[%s0 + $0x60] sm:$0xf]
  %v40 = vld [vmem:[%s0 + $0x64] sm:$0xf]
  %v41 = vld [vmem:[%s0 + $0x68] sm:$0xf]
  %v42 = vld [vmem:[%s0 + $0x6c] sm:$0xf]
  %v43 = vld [vmem:[%s0 + $0x70] sm:$0xf]
  %v44 = vld [vmem:[%s0 + $0x74] sm:$0xf]
  %v45 = vld [vmem:[%s0 + $0x78] sm:$0xf]
  %v46 = vld [vmem:[%s0 + $0x7c] sm:$0xf]
  %v47 = vld [vmem:[%s0 + $0x80] sm:$0xf]
  %v48 = vld [vmem:[%s0 + $0x84] sm:$0xf]
  %v49 = vld [vmem:[%s0 + $0x88] sm:$0xf]
  %v50 = vld [vmem:[%s0 + $0x8c] sm:$0xf]
  %v51 = vld [vmem:[%s0 + $0x90] sm:$0xf]
  %v52 = vld [vmem:[%s0 + $0x94] sm:$0xf]
  %v53 = vld [vmem:[%s0 + $0x98] sm:$0xf]
  %v54 = vld [vmem:[%s0 + $0x9c] sm:$0xf]
  %v55 = vld [vmem:[%s0 + $0xa0] sm:$0xf]
  %v56 = vld [vmem:[%s0 + $0xa4] sm:$0xf]
  %v57 = vld [vmem:[%s0 + $0xa8] sm:$0xf]
  %v58 = vld [vmem:[%s0 + $0xac] sm:$0xf]
  %v59 = vld [vmem:[%s0 + $0xb0] sm:$0xf]
  %v60 = vld [vmem:[%s0 + $0xb4] sm:$0xf]
  %v61 = vld [vmem:[%s0 + $0xb8] sm:$0xf]
  %v62 = vld [vmem:[%s0 + $0xbc] sm:$0xf]
  %v63 = vld [vmem:[%s0 + $0xc0] sm:$0xf]
  %v64 = vld [vmem:[%s0 + $0xc4] sm:$0xf]
  %v65 = vld [vmem:[%s0 + $0xc8] sm:$0xf]
  %v66 = vld [vmem:[%s0 + $0xcc] sm:$0xf]
  %v67 = vld [vmem:[%s0 + $0xd0] sm:$0xf]
  %v68 = vld [vmem:[%s0 + $0xd4] sm:$0xf]
  %v69 = vld [vmem:[%s0 + $0xd8] sm:$0xf]
  %v70 = vld [vmem:[%s0 + $0xdc] sm:$0xf]
  %v71 = vld [vmem:[%s0 + $0xe0] sm:$0xf]
  %v72 = vld [vmem:[%s0 + $0xe4] sm:$0xf]
  %v73 = vld [vmem:[%s0 + $0xe8] sm:$0xf]
  %v74 = vld [vmem:[%s0 + $0xec] sm:$0xf]
  %v75 = vld [vmem:[%s0 + $0xf0] sm:$0xf]
  %v76 = vld [vmem:[%s0 + $0xf4] sm:$0xf]
  %v77 = vld [vmem:[%s0 + $0xf8] sm:$0xf]
  %v78 = vld [vmem:[%s0 + $0xfc] sm:$0xf]
  %v79 = vld [vmem:[%s1] sm:$0xf]
  %v80 = vld [vmem:[%s1 + $0x4] sm:$0xf]
  %v81 = vld [vmem:[%s2] sm:$0x1]
  %v83 = vlaneseq
  %v84 = vshrl.u32 %v83, 7
  %v85 = vsub.s32 0, %v84
  %v86 = vrot.slane %v81, %v85
  %v152 = vunpack.c.l.b16 %v15
  %v153 = vunpack.c.l.b16 %v16
  %v154 = vunpack.c.l.b16 %v17
  %v155 = vunpack.c.l.b16 %v18
  %v156 = vunpack.c.l.b16 %v19
  %v157 = vunpack.c.l.b16 %v20
  %v158 = vunpack.c.l.b16 %v21
  %v159 = vunpack.c.l.b16 %v22
  %v160 = vunpack.c.l.b16 %v23
  %v161 = vunpack.c.l.b16 %v24
  %v162 = vunpack.c.l.b16 %v25
  %v163 = vunpack.c.l.b16 %v26
  %v164 = vunpack.c.l.b16 %v27
  %v165 = vunpack.c.l.b16 %v28
  %v166 = vunpack.c.l.b16 %v29
  %v167 = vunpack.c.l.b16 %v30
  %v168 = vunpack.c.l.b16 %v31
  %v169 = vunpack.c.l.b16 %v32
  %v170 = vunpack.c.l.b16 %v33
  %v171 = vunpack.c.l.b16 %v34
  %v172 = vunpack.c.l.b16 %v35
  %v173 = vunpack.c.l.b16 %v36
  %v174 = vunpack.c.l.b16 %v37
  %v175 = vunpack.c.l.b16 %v38
  %v176 = vunpack.c.l.b16 %v39
  %v177 = vunpack.c.l.b16 %v40
  %v178 = vunpack.c.l.b16 %v41
  %v179 = vunpack.c.l.b16 %v42
  %v180 = vunpack.c.l.b16 %v43
  %v181 = vunpack.c.l.b16 %v44
  %v182 = vunpack.c.l.b16 %v45
  %v183 = vunpack.c.l.b16 %v46
  %v184 = vunpack.c.l.b16 %v47
  %v185 = vunpack.c.l.b16 %v48
  %v186 = vunpack.c.l.b16 %v49
  %v187 = vunpack.c.l.b16 %v50
  %v188 = vunpack.c.l.b16 %v51
  %v189 = vunpack.c.l.b16 %v52
  %v190 = vunpack.c.l.b16 %v53
  %v191 = vunpack.c.l.b16 %v54
  %v192 = vunpack.c.l.b16 %v55
  %v193 = vunpack.c.l.b16 %v56
  %v194 = vunpack.c.l.b16 %v57
  %v195 = vunpack.c.l.b16 %v58
  %v196 = vunpack.c.l.b16 %v59
  %v197 = vunpack.c.l.b16 %v60
  %v198 = vunpack.c.l.b16 %v61
  %v199 = vunpack.c.l.b16 %v62
  %v200 = vunpack.c.l.b16 %v63
  %v201 = vunpack.c.l.b16 %v64
  %v202 = vunpack.c.l.b16 %v65
  %v203 = vunpack.c.l.b16 %v66
  %v204 = vunpack.c.l.b16 %v67
  %v205 = vunpack.c.l.b16 %v68
  %v206 = vunpack.c.l.b16 %v69
  %v207 = vunpack.c.l.b16 %v70
  %v208 = vunpack.c.l.b16 %v71
  %v209 = vunpack.c.l.b16 %v72
  %v210 = vunpack.c.l.b16 %v73
  %v211 = vunpack.c.l.b16 %v74
  %v212 = vunpack.c.l.b16 %v75
  %v213 = vunpack.c.l.b16 %v76
  %v214 = vunpack.c.l.b16 %v77
  %v215 = vunpack.c.l.b16 %v78
  %v216 = vpack.c.b16 %v153, %v152
  %v217 = vpack.c.b16 %v155, %v154
  %v218 = vpack.c.b16 %v157, %v156
  %v219 = vpack.c.b16 %v159, %v158
  %v220 = vpack.c.b16 %v161, %v160
  %v221 = vpack.c.b16 %v163, %v162
  %v222 = vpack.c.b16 %v165, %v164
  %v223 = vpack.c.b16 %v167, %v166
  %v224 = vpack.c.b16 %v169, %v168
  %v225 = vpack.c.b16 %v171, %v170
  %v226 = vpack.c.b16 %v173, %v172
  %v227 = vpack.c.b16 %v175, %v174
  %v228 = vpack.c.b16 %v177, %v176
  %v229 = vpack.c.b16 %v179, %v178
  %v230 = vpack.c.b16 %v181, %v180
  %v231 = vpack.c.b16 %v183, %v182
  %v232 = vpack.c.b16 %v185, %v184
  %v233 = vpack.c.b16 %v187, %v186
  %v234 = vpack.c.b16 %v189, %v188
  %v235 = vpack.c.b16 %v191, %v190
  %v236 = vpack.c.b16 %v193, %v192
  %v237 = vpack.c.b16 %v195, %v194
  %v238 = vpack.c.b16 %v197, %v196
  %v239 = vpack.c.b16 %v199, %v198
  %v240 = vpack.c.b16 %v201, %v200
  %v241 = vpack.c.b16 %v203, %v202
  %v242 = vpack.c.b16 %v205, %v204
  %v243 = vpack.c.b16 %v207, %v206
  %v244 = vpack.c.b16 %v209, %v208
  %v245 = vpack.c.b16 %v211, %v210
  %v246 = vpack.c.b16 %v213, %v212
  %v247 = vpack.c.b16 %v215, %v214
  %v250 = vunpack.c.l.b16 %v79
  %v251 = vunpack.c.l.b16 %v80
  %v252 = vpack.c.b16 %v251, %v250
  %vm254 = vcmask 130048
  %v256 = vsel %vm254, %v216, 0
  %v259 = vsel %vm254, %v217, 0
  %v262 = vsel %vm254, %v218, 0
  %v265 = vsel %vm254, %v219, 0
  %v268 = vsel %vm254, %v220, 0
  %v271 = vsel %vm254, %v221, 0
  %v274 = vsel %vm254, %v222, 0
  %v277 = vsel %vm254, %v223, 0
  %v280 = vsel %vm254, %v224, 0
  %v283 = vsel %vm254, %v225, 0
  %v286 = vsel %vm254, %v226, 0
  %v289 = vsel %vm254, %v227, 0
  %v292 = vsel %vm254, %v228, 0
  %v295 = vsel %vm254, %v229, 0
  %v298 = vsel %vm254, %v230, 0
  %v301 = vsel %vm254, %v231, 0
  %v304 = vsel %vm254, %v232, 0
  %v307 = vsel %vm254, %v233, 0
  %v310 = vsel %vm254, %v234, 0
  %v313 = vsel %vm254, %v235, 0
  %v316 = vsel %vm254, %v236, 0
  %v319 = vsel %vm254, %v237, 0
  %v322 = vsel %vm254, %v238, 0
  %v325 = vsel %vm254, %v239, 0
  %v328 = vsel %vm254, %v240, 0
  %v331 = vsel %vm254, %v241, 0
  %v334 = vsel %vm254, %v242, 0
  %v337 = vsel %vm254, %v243, 0
  %v340 = vsel %vm254, %v244, 0
  %v343 = vsel %vm254, %v245, 0
  %v346 = vsel %vm254, %v246, 0
  %v349 = vsel %vm254, %v247, 0
  %351 = vmatprep.subr.bf16.mxu0 0
  %352 = vmatpush1.bf16.msra.mxu0 %v252
  %353 = vmatprep.subr.bf16.mxu0 0
  %354 = vmatpush1.bf16.msra.mxu0 0
  %355 = vmatprep.subr.bf16.mxu0 0
  %356 = vmatpush1.bf16.msra.mxu0 0
  %357 = vmatprep.subr.bf16.mxu0 0
  %358 = vmatpush1.bf16.msra.mxu0 0
  %359 = vmatprep.subr.bf16.mxu0 0
  %360 = vmatpush1.bf16.msra.mxu0 0
  %361 = vmatprep.subr.bf16.mxu0 0
  %362 = vmatpush1.bf16.msra.mxu0 0
  %363 = vmatprep.subr.bf16.mxu0 0
  %364 = vmatpush1.bf16.msra.mxu0 0
  %365 = vmatprep.subr.bf16.mxu0 0
  %366 = vmatpush1.bf16.msra.mxu0 0
  %367 = vmatprep.subr.bf16.mxu0 0
  %368 = vmatpush1.bf16.msra.mxu0 0
  %369 = vmatprep.subr.bf16.mxu0 0
  %370 = vmatpush1.bf16.msra.mxu0 0
  %371 = vmatprep.subr.bf16.mxu0 0
  %372 = vmatpush1.bf16.msra.mxu0 0
  %373 = vmatprep.subr.bf16.mxu0 0
  %374 = vmatpush1.bf16.msra.mxu0 0
  %375 = vmatprep.subr.bf16.mxu0 0
  %376 = vmatpush1.bf16.msra.mxu0 0
  %377 = vmatprep.subr.bf16.mxu0 0
  %378 = vmatpush1.bf16.msra.mxu0 0
  %379 = vmatprep.subr.bf16.mxu0 0
  %380 = vmatpush1.bf16.msra.mxu0 0
  %381 = vmatprep.subr.bf16.mxu0 0
  %382 = vmatpush1.bf16.msra.mxu0 0
  %383 = vmatprep.mubr.bf16.mxu0 0
  %384 = vmatmul.mubr.bf16.gmra.mrb[0].mxu0 %v256
  %v385 = vpop.f32.mrb[0].mxu0
  %v386 = vadd.f32 %v86, %v385
  %v387 = vpop.f32.mrb[0].mxu0
  %v388 = vpop.f32.mrb[0].mxu0
  %v389 = vadd.f32 %v86, %v388
  %v390 = vpop.f32.mrb[0].mxu0
  %391 = vmatprep.mubr.bf16.mxu0 0
  %392 = vmatmul.mubr.bf16.gmra.mrb[0].mxu0 %v259
  %v393 = vpop.f32.mrb[0].mxu0
  %v394 = vadd.f32 %v86, %v393
  %v395 = vpop.f32.mrb[0].mxu0
  %v396 = vpop.f32.mrb[0].mxu0
  %v397 = vadd.f32 %v86, %v396
  %v398 = vpop.f32.mrb[0].mxu0
  %399 = vmatprep.mubr.bf16.mxu0 0
  %400 = vmatmul.mubr.bf16.gmra.mrb[0].mxu0 %v262
  %v401 = vpop.f32.mrb[0].mxu0
  %v402 = vadd.f32 %v86, %v401
  %v403 = vpop.f32.mrb[0].mxu0
  %v404 = vpop.f32.mrb[0].mxu0
  %v405 = vadd.f32 %v86, %v404
  %v406 = vpop.f32.mrb[0].mxu0
  %407 = vmatprep.mubr.bf16.mxu0 0
  %408 = vmatmul.mubr.bf16.gmra.mrb[0].mxu0 %v265
  %v409 = vpop.f32.mrb[0].mxu0
  %v410 = vadd.f32 %v86, %v409
  %v411 = vpop.f32.mrb[0].mxu0
  %v412 = vpop.f32.mrb[0].mxu0
  %v413 = vadd.f32 %v86, %v412
  %v414 = vpop.f32.mrb[0].mxu0
  %415 = vmatprep.mubr.bf16.mxu0 0
  %416 = vmatmul.mubr.bf16.gmra.mrb[0].mxu0 %v268
  %v417 = vpop.f32.mrb[0].mxu0
  %v418 = vadd.f32 %v86, %v417
  %v419 = vpop.f32.mrb[0].mxu0
  %v420 = vpop.f32.mrb[0].mxu0
  %v421 = vadd.f32 %v86, %v420
  %v422 = vpop.f32.mrb[0].mxu0
  %423 = vmatprep.mubr.bf16.mxu0 0
  %424 = vmatmul.mubr.bf16.gmra.mrb[0].mxu0 %v271
  %v425 = vpop.f32.mrb[0].mxu0
  %v426 = vadd.f32 %v86, %v425
  %v427 = vpop.f32.mrb[0].mxu0
  %v428 = vpop.f32.mrb[0].mxu0
  %v429 = vadd.f32 %v86, %v428
  %v430 = vpop.f32.mrb[0].mxu0
  %431 = vmatprep.mubr.bf16.mxu0 0
  %432 = vmatmul.mubr.bf16.gmra.mrb[0].mxu0 %v274
  %v433 = vpop.f32.mrb[0].mxu0
  %v434 = vadd.f32 %v86, %v433
  %v435 = vpop.f32.mrb[0].mxu0
  %v436 = vpop.f32.mrb[0].mxu0
  %v437 = vadd.f32 %v86, %v436
  %v438 = vpop.f32.mrb[0].mxu0
  %439 = vmatprep.mubr.bf16.mxu0 0
  %440 = vmatmul.mubr.bf16.gmra.mrb[0].mxu0 %v277
  %v441 = vpop.f32.mrb[0].mxu0
  %v442 = vadd.f32 %v86, %v441
  %v443 = vpop.f32.mrb[0].mxu0
  %v444 = vpop.f32.mrb[0].mxu0
  %v445 = vadd.f32 %v86, %v444
  %v446 = vpop.f32.mrb[0].mxu0
  %447 = vmatprep.mubr.bf16.mxu0 0
  %448 = vmatmul.mubr.bf16.gmra.mrb[0].mxu0 %v280
  %v449 = vpop.f32.mrb[0].mxu0
  %v450 = vadd.f32 %v86, %v449
  %v451 = vpop.f32.mrb[0].mxu0
  %v452 = vpop.f32.mrb[0].mxu0
  %v453 = vadd.f32 %v86, %v452
  %v454 = vpop.f32.mrb[0].mxu0
  %455 = vmatprep.mubr.bf16.mxu0 0
  %456 = vmatmul.mubr.bf16.gmra.mrb[0].mxu0 %v283
  %v457 = vpop.f32.mrb[0].mxu0
  %v458 = vadd.f32 %v86, %v457
  %v459 = vpop.f32.mrb[0].mxu0
  %v460 = vpop.f32.mrb[0].mxu0
  %v461 = vadd.f32 %v86, %v460
  %v462 = vpop.f32.mrb[0].mxu0
  %463 = vmatprep.mubr.bf16.mxu0 0
  %464 = vmatmul.mubr.bf16.gmra.mrb[0].mxu0 %v286
  %v465 = vpop.f32.mrb[0].mxu0
  %v466 = vadd.f32 %v86, %v465
  %v467 = vpop.f32.mrb[0].mxu0
  %v468 = vpop.f32.mrb[0].mxu0
  %v469 = vadd.f32 %v86, %v468
  %v470 = vpop.f32.mrb[0].mxu0
  %471 = vmatprep.mubr.bf16.mxu0 0
  %472 = vmatmul.mubr.bf16.gmra.mrb[0].mxu0 %v289
  %v473 = vpop.f32.mrb[0].mxu0
  %v474 = vadd.f32 %v86, %v473
  %v475 = vpop.f32.mrb[0].mxu0
  %v476 = vpop.f32.mrb[0].mxu0
  %v477 = vadd.f32 %v86, %v476
  %v478 = vpop.f32.mrb[0].mxu0
  %479 = vmatprep.mubr.bf16.mxu0 0
  %480 = vmatmul.mubr.bf16.gmra.mrb[0].mxu0 %v292
  %v481 = vpop.f32.mrb[0].mxu0
  %v482 = vadd.f32 %v86, %v481
  %v483 = vpop.f32.mrb[0].mxu0
  %v484 = vpop.f32.mrb[0].mxu0
  %v485 = vadd.f32 %v86, %v484
  %v486 = vpop.f32.mrb[0].mxu0
  %487 = vmatprep.mubr.bf16.mxu0 0
  %488 = vmatmul.mubr.bf16.gmra.mrb[0].mxu0 %v295
  %v489 = vpop.f32.mrb[0].mxu0
  %v490 = vadd.f32 %v86, %v489
  %v491 = vpop.f32.mrb[0].mxu0
  %v492 = vpop.f32.mrb[0].mxu0
  %v493 = vadd.f32 %v86, %v492
  %v494 = vpop.f32.mrb[0].mxu0
  %495 = vmatprep.mubr.bf16.mxu0 0
  %496 = vmatmul.mubr.bf16.gmra.mrb[0].mxu0 %v298
  %v497 = vpop.f32.mrb[0].mxu0
  %v498 = vadd.f32 %v86, %v497
  %v499 = vpop.f32.mrb[0].mxu0
  %v500 = vpop.f32.mrb[0].mxu0
  %v501 = vadd.f32 %v86, %v500
  %v502 = vpop.f32.mrb[0].mxu0
  %503 = vmatprep.mubr.bf16.mxu0 0
  %504 = vmatmul.mubr.bf16.gmra.mrb[0].mxu0 %v301
  %v505 = vpop.f32.mrb[0].mxu0
  %v506 = vadd.f32 %v86, %v505
  %v507 = vpop.f32.mrb[0].mxu0
  %v508 = vpop.f32.mrb[0].mxu0
  %v509 = vadd.f32 %v86, %v508
  %v510 = vpop.f32.mrb[0].mxu0
  %511 = vmatprep.mubr.bf16.mxu0 0
  %512 = vmatmul.mubr.bf16.gmra.mrb[0].mxu0 %v304
  %v513 = vpop.f32.mrb[0].mxu0
  %v514 = vadd.f32 %v86, %v513
  %v515 = vpop.f32.mrb[0].mxu0
  %v516 = vpop.f32.mrb[0].mxu0
  %v517 = vadd.f32 %v86, %v516
  %v518 = vpop.f32.mrb[0].mxu0
  %519 = vmatprep.mubr.bf16.mxu0 0
  %520 = vmatmul.mubr.bf16.gmra.mrb[0].mxu0 %v307
  %v521 = vpop.f32.mrb[0].mxu0
  %v522 = vadd.f32 %v86, %v521
  %v523 = vpop.f32.mrb[0].mxu0
  %v524 = vpop.f32.mrb[0].mxu0
  %v525 = vadd.f32 %v86, %v524
  %v526 = vpop.f32.mrb[0].mxu0
  %527 = vmatprep.mubr.bf16.mxu0 0
  %528 = vmatmul.mubr.bf16.gmra.mrb[0].mxu0 %v310
  %v529 = vpop.f32.mrb[0].mxu0
  %v530 = vadd.f32 %v86, %v529
  %v531 = vpop.f32.mrb[0].mxu0
  %v532 = vpop.f32.mrb[0].mxu0
  %v533 = vadd.f32 %v86, %v532
  %v534 = vpop.f32.mrb[0].mxu0
  %535 = vmatprep.mubr.bf16.mxu0 0
  %536 = vmatmul.mubr.bf16.gmra.mrb[0].mxu0 %v313
  %v537 = vpop.f32.mrb[0].mxu0
  %v538 = vadd.f32 %v86, %v537
  %v539 = vpop.f32.mrb[0].mxu0
  %v540 = vpop.f32.mrb[0].mxu0
  %v541 = vadd.f32 %v86, %v540
  %v542 = vpop.f32.mrb[0].mxu0
  %543 = vmatprep.mubr.bf16.mxu0 0
  %544 = vmatmul.mubr.bf16.gmra.mrb[0].mxu0 %v316
  %v545 = vpop.f32.mrb[0].mxu0
  %v546 = vadd.f32 %v86, %v545
  %v547 = vpop.f32.mrb[0].mxu0
  %v548 = vpop.f32.mrb[0].mxu0
  %v549 = vadd.f32 %v86, %v548
  %v550 = vpop.f32.mrb[0].mxu0
  %551 = vmatprep.mubr.bf16.mxu0 0
  %552 = vmatmul.mubr.bf16.gmra.mrb[0].mxu0 %v319
  %v553 = vpop.f32.mrb[0].mxu0
  %v554 = vadd.f32 %v86, %v553
  %v555 = vpop.f32.mrb[0].mxu0
  %v556 = vpop.f32.mrb[0].mxu0
  %v557 = vadd.f32 %v86, %v556
  %v558 = vpop.f32.mrb[0].mxu0
  %559 = vmatprep.mubr.bf16.mxu0 0
  %560 = vmatmul.mubr.bf16.gmra.mrb[0].mxu0 %v322
  %v561 = vpop.f32.mrb[0].mxu0
  %v562 = vadd.f32 %v86, %v561
  %v563 = vpop.f32.mrb[0].mxu0
  %v564 = vpop.f32.mrb[0].mxu0
  %v565 = vadd.f32 %v86, %v564
  %v566 = vpop.f32.mrb[0].mxu0
  %567 = vmatprep.mubr.bf16.mxu0 0
  %568 = vmatmul.mubr.bf16.gmra.mrb[0].mxu0 %v325
  %v569 = vpop.f32.mrb[0].mxu0
  %v570 = vadd.f32 %v86, %v569
  %v571 = vpop.f32.mrb[0].mxu0
  %v572 = vpop.f32.mrb[0].mxu0
  %v573 = vadd.f32 %v86, %v572
  %v574 = vpop.f32.mrb[0].mxu0
  %575 = vmatprep.mubr.bf16.mxu0 0
  %576 = vmatmul.mubr.bf16.gmra.mrb[0].mxu0 %v328
  %v577 = vpop.f32.mrb[0].mxu0
  %v578 = vadd.f32 %v86, %v577
  %v579 = vpop.f32.mrb[0].mxu0
  %v580 = vpop.f32.mrb[0].mxu0
  %v581 = vadd.f32 %v86, %v580
  %v582 = vpop.f32.mrb[0].mxu0
  %583 = vmatprep.mubr.bf16.mxu0 0
  %584 = vmatmul.mubr.bf16.gmra.mrb[0].mxu0 %v331
  %v585 = vpop.f32.mrb[0].mxu0
  %v586 = vadd.f32 %v86, %v585
  %v587 = vpop.f32.mrb[0].mxu0
  %v588 = vpop.f32.mrb[0].mxu0
  %v589 = vadd.f32 %v86, %v588
  %v590 = vpop.f32.mrb[0].mxu0
  %591 = vmatprep.mubr.bf16.mxu0 0
  %592 = vmatmul.mubr.bf16.gmra.mrb[0].mxu0 %v334
  %v593 = vpop.f32.mrb[0].mxu0
  %v594 = vadd.f32 %v86, %v593
  %v595 = vpop.f32.mrb[0].mxu0
  %v596 = vpop.f32.mrb[0].mxu0
  %v597 = vadd.f32 %v86, %v596
  %v598 = vpop.f32.mrb[0].mxu0
  %599 = vmatprep.mubr.bf16.mxu0 0
  %600 = vmatmul.mubr.bf16.gmra.mrb[0].mxu0 %v337
  %v601 = vpop.f32.mrb[0].mxu0
  %v602 = vadd.f32 %v86, %v601
  %v603 = vpop.f32.mrb[0].mxu0
  %v604 = vpop.f32.mrb[0].mxu0
  %v605 = vadd.f32 %v86, %v604
  %v606 = vpop.f32.mrb[0].mxu0
  %607 = vmatprep.mubr.bf16.mxu0 0
  %608 = vmatmul.mubr.bf16.gmra.mrb[0].mxu0 %v340
  %v609 = vpop.f32.mrb[0].mxu0
  %v610 = vadd.f32 %v86, %v609
  %v611 = vpop.f32.mrb[0].mxu0
  %v612 = vpop.f32.mrb[0].mxu0
  %v613 = vadd.f32 %v86, %v612
  %v614 = vpop.f32.mrb[0].mxu0
  %615 = vmatprep.mubr.bf16.mxu0 0
  %616 = vmatmul.mubr.bf16.gmra.mrb[0].mxu0 %v343
  %v617 = vpop.f32.mrb[0].mxu0
  %v618 = vadd.f32 %v86, %v617
  %v619 = vpop.f32.mrb[0].mxu0
  %v620 = vpop.f32.mrb[0].mxu0
  %v621 = vadd.f32 %v86, %v620
  %v622 = vpop.f32.mrb[0].mxu0
  %623 = vmatprep.mubr.bf16.mxu0 0
  %624 = vmatmul.mubr.bf16.gmra.mrb[0].mxu0 %v346
  %v625 = vpop.f32.mrb[0].mxu0
  %v626 = vadd.f32 %v86, %v625
  %v627 = vpop.f32.mrb[0].mxu0
  %v628 = vpop.f32.mrb[0].mxu0
  %v629 = vadd.f32 %v86, %v628
  %v630 = vpop.f32.mrb[0].mxu0
  %631 = vmatprep.mubr.bf16.mxu0 0
  %632 = vmatmul.mubr.bf16.gmra.mrb[0].mxu0 %v349
  %v633 = vpop.f32.mrb[0].mxu0
  %v634 = vadd.f32 %v86, %v633
  %v635 = vpop.f32.mrb[0].mxu0
  %v636 = vpop.f32.mrb[0].mxu0
  %v637 = vadd.f32 %v86, %v636
  %v638 = vpop.f32.mrb[0].mxu0
  %639 = vdwg.mxu0
  %vm640 = vcmp.gt.f32.partialorder %v386, 0.0
  %vm641 = vcmp.gt.f32.partialorder %v389, 0.0
  %vm642 = vcmp.gt.f32.partialorder %v394, 0.0
  %vm643 = vcmp.gt.f32.partialorder %v397, 0.0
  %vm644 = vcmp.gt.f32.partialorder %v402, 0.0
  %vm645 = vcmp.gt.f32.partialorder %v405, 0.0
  %vm646 = vcmp.gt.f32.partialorder %v410, 0.0
  %vm647 = vcmp.gt.f32.partialorder %v413, 0.0
  %vm648 = vcmp.gt.f32.partialorder %v418, 0.0
  %vm649 = vcmp.gt.f32.partialorder %v421, 0.0
  %vm650 = vcmp.gt.f32.partialorder %v426, 0.0
  %vm651 = vcmp.gt.f32.partialorder %v429, 0.0
  %vm652 = vcmp.gt.f32.partialorder %v434, 0.0
  %vm653 = vcmp.gt.f32.partialorder %v437, 0.0
  %vm654 = vcmp.gt.f32.partialorder %v442, 0.0
  %vm655 = vcmp.gt.f32.partialorder %v445, 0.0
  %vm656 = vcmp.gt.f32.partialorder %v450, 0.0
  %vm657 = vcmp.gt.f32.partialorder %v453, 0.0
  %vm658 = vcmp.gt.f32.partialorder %v458, 0.0
  %vm659 = vcmp.gt.f32.partialorder %v461, 0.0
  %vm660 = vcmp.gt.f32.partialorder %v466, 0.0
  %vm661 = vcmp.gt.f32.partialorder %v469, 0.0
  %vm662 = vcmp.gt.f32.partialorder %v474, 0.0
  %vm663 = vcmp.gt.f32.partialorder %v477, 0.0
  %vm664 = vcmp.gt.f32.partialorder %v482, 0.0
  %vm665 = vcmp.gt.f32.partialorder %v485, 0.0
  %vm666 = vcmp.gt.f32.partialorder %v490, 0.0
  %vm667 = vcmp.gt.f32.partialorder %v493, 0.0
  %vm668 = vcmp.gt.f32.partialorder %v498, 0.0
  %vm669 = vcmp.gt.f32.partialorder %v501, 0.0
  %vm670 = vcmp.gt.f32.partialorder %v506, 0.0
  %vm671 = vcmp.gt.f32.partialorder %v509, 0.0
  %vm672 = vcmp.gt.f32.partialorder %v514, 0.0
  %vm673 = vcmp.gt.f32.partialorder %v517, 0.0
  %vm674 = vcmp.gt.f32.partialorder %v522, 0.0
  %vm675 = vcmp.gt.f32.partialorder %v525, 0.0
  %vm676 = vcmp.gt.f32.partialorder %v530, 0.0
  %vm677 = vcmp.gt.f32.partialorder %v533, 0.0
  %vm678 = vcmp.gt.f32.partialorder %v538, 0.0
  %vm679 = vcmp.gt.f32.partialorder %v541, 0.0
  %vm680 = vcmp.gt.f32.partialorder %v546, 0.0
  %vm681 = vcmp.gt.f32.partialorder %v549, 0.0
  %vm682 = vcmp.gt.f32.partialorder %v554, 0.0
  %vm683 = vcmp.gt.f32.partialorder %v557, 0.0
  %vm684 = vcmp.gt.f32.partialorder %v562, 0.0
  %vm685 = vcmp.gt.f32.partialorder %v565, 0.0
  %vm686 = vcmp.gt.f32.partialorder %v570, 0.0
  %vm687 = vcmp.gt.f32.partialorder %v573, 0.0
  %vm688 = vcmp.gt.f32.partialorder %v578, 0.0
  %vm689 = vcmp.gt.f32.partialorder %v581, 0.0
  %vm690 = vcmp.gt.f32.partialorder %v586, 0.0
  %vm691 = vcmp.gt.f32.partialorder %v589, 0.0
  %vm692 = vcmp.gt.f32.partialorder %v594, 0.0
  %vm693 = vcmp.gt.f32.partialorder %v597, 0.0
  %vm694 = vcmp.gt.f32.partialorder %v602, 0.0
  %vm695 = vcmp.gt.f32.partialorder %v605, 0.0
  %vm696 = vcmp.gt.f32.partialorder %v610, 0.0
  %vm697 = vcmp.gt.f32.partialorder %v613, 0.0
  %vm698 = vcmp.gt.f32.partialorder %v618, 0.0
  %vm699 = vcmp.gt.f32.partialorder %v621, 0.0
  %vm700 = vcmp.gt.f32.partialorder %v626, 0.0
  %vm701 = vcmp.gt.f32.partialorder %v629, 0.0
  %vm702 = vcmp.gt.f32.partialorder %v634, 0.0
  %vm703 = vcmp.gt.f32.partialorder %v637, 0.0
  %v704 = vmul.f32 %v386, 0.2
  %v705 = vmul.f32 %v389, 0.2
  %v706 = vmul.f32 %v394, 0.2
  %v707 = vmul.f32 %v397, 0.2
  %v708 = vmul.f32 %v402, 0.2
  %v709 = vmul.f32 %v405, 0.2
  %v710 = vmul.f32 %v410, 0.2
  %v711 = vmul.f32 %v413, 0.2
  %v712 = vmul.f32 %v418, 0.2
  %v713 = vmul.f32 %v421, 0.2
  %v714 = vmul.f32 %v426, 0.2
  %v715 = vmul.f32 %v429, 0.2
  %v716 = vmul.f32 %v434, 0.2
  %v717 = vmul.f32 %v437, 0.2
  %v718 = vmul.f32 %v442, 0.2
  %v719 = vmul.f32 %v445, 0.2
  %v720 = vmul.f32 %v450, 0.2
  %v721 = vmul.f32 %v453, 0.2
  %v722 = vmul.f32 %v458, 0.2
  %v723 = vmul.f32 %v461, 0.2
  %v724 = vmul.f32 %v466, 0.2
  %v725 = vmul.f32 %v469, 0.2
  %v726 = vmul.f32 %v474, 0.2
  %v727 = vmul.f32 %v477, 0.2
  %v728 = vmul.f32 %v482, 0.2
  %v729 = vmul.f32 %v485, 0.2
  %v730 = vmul.f32 %v490, 0.2
  %v731 = vmul.f32 %v493, 0.2
  %v732 = vmul.f32 %v498, 0.2
  %v733 = vmul.f32 %v501, 0.2
  %v734 = vmul.f32 %v506, 0.2
  %v735 = vmul.f32 %v509, 0.2
  %v736 = vmul.f32 %v514, 0.2
  %v737 = vmul.f32 %v517, 0.2
  %v738 = vmul.f32 %v522, 0.2
  %v739 = vmul.f32 %v525, 0.2
  %v740 = vmul.f32 %v530, 0.2
  %v741 = vmul.f32 %v533, 0.2
  %v742 = vmul.f32 %v538, 0.2
  %v743 = vmul.f32 %v541, 0.2
  %v744 = vmul.f32 %v546, 0.2
  %v745 = vmul.f32 %v549, 0.2
  %v746 = vmul.f32 %v554, 0.2
  %v747 = vmul.f32 %v557, 0.2
  %v748 = vmul.f32 %v562, 0.2
  %v749 = vmul.f32 %v565, 0.2
  %v750 = vmul.f32 %v570, 0.2
  %v751 = vmul.f32 %v573, 0.2
  %v752 = vmul.f32 %v578, 0.2
  %v753 = vmul.f32 %v581, 0.2
  %v754 = vmul.f32 %v586, 0.2
  %v755 = vmul.f32 %v589, 0.2
  %v756 = vmul.f32 %v594, 0.2
  %v757 = vmul.f32 %v597, 0.2
  %v758 = vmul.f32 %v602, 0.2
  %v759 = vmul.f32 %v605, 0.2
  %v760 = vmul.f32 %v610, 0.2
  %v761 = vmul.f32 %v613, 0.2
  %v762 = vmul.f32 %v618, 0.2
  %v763 = vmul.f32 %v621, 0.2
  %v764 = vmul.f32 %v626, 0.2
  %v765 = vmul.f32 %v629, 0.2
  %v766 = vmul.f32 %v634, 0.2
  %v767 = vmul.f32 %v637, 0.2
  %v768 = vsel %vm640, %v386, %v704
  %v769 = vsel %vm641, %v389, %v705
  %v770 = vsel %vm642, %v394, %v706
  %v771 = vsel %vm643, %v397, %v707
  %v772 = vsel %vm644, %v402, %v708
  %v773 = vsel %vm645, %v405, %v709
  %v774 = vsel %vm646, %v410, %v710
  %v775 = vsel %vm647, %v413, %v711
  %v776 = vsel %vm648, %v418, %v712
  %v777 = vsel %vm649, %v421, %v713
  %v778 = vsel %vm650, %v426, %v714
  %v779 = vsel %vm651, %v429, %v715
  %v780 = vsel %vm652, %v434, %v716
  %v781 = vsel %vm653, %v437, %v717
  %v782 = vsel %vm654, %v442, %v718
  %v783 = vsel %vm655, %v445, %v719
  %v784 = vsel %vm656, %v450, %v720
  %v785 = vsel %vm657, %v453, %v721
  %v786 = vsel %vm658, %v458, %v722
  %v787 = vsel %vm659, %v461, %v723
  %v788 = vsel %vm660, %v466, %v724
  %v789 = vsel %vm661, %v469, %v725
  %v790 = vsel %vm662, %v474, %v726
  %v791 = vsel %vm663, %v477, %v727
  %v792 = vsel %vm664, %v482, %v728
  %v793 = vsel %vm665, %v485, %v729
  %v794 = vsel %vm666, %v490, %v730
  %v795 = vsel %vm667, %v493, %v731
  %v796 = vsel %vm668, %v498, %v732
  %v797 = vsel %vm669, %v501, %v733
  %v798 = vsel %vm670, %v506, %v734
  %v799 = vsel %vm671, %v509, %v735
  %v800 = vsel %vm672, %v514, %v736
  %v801 = vsel %vm673, %v517, %v737
  %v802 = vsel %vm674, %v522, %v738
  %v803 = vsel %vm675, %v525, %v739
  %v804 = vsel %vm676, %v530, %v740
  %v805 = vsel %vm677, %v533, %v741
  %v806 = vsel %vm678, %v538, %v742
  %v807 = vsel %vm679, %v541, %v743
  %v808 = vsel %vm680, %v546, %v744
  %v809 = vsel %vm681, %v549, %v745
  %v810 = vsel %vm682, %v554, %v746
  %v811 = vsel %vm683, %v557, %v747
  %v812 = vsel %vm684, %v562, %v748
  %v813 = vsel %vm685, %v565, %v749
  %v814 = vsel %vm686, %v570, %v750
  %v815 = vsel %vm687, %v573, %v751
  %v816 = vsel %vm688, %v578, %v752
  %v817 = vsel %vm689, %v581, %v753
  %v818 = vsel %vm690, %v586, %v754
  %v819 = vsel %vm691, %v589, %v755
  %v820 = vsel %vm692, %v594, %v756
  %v821 = vsel %vm693, %v597, %v757
  %v822 = vsel %vm694, %v602, %v758
  %v823 = vsel %vm695, %v605, %v759
  %v824 = vsel %vm696, %v610, %v760
  %v825 = vsel %vm697, %v613, %v761
  %v826 = vsel %vm698, %v618, %v762
  %v827 = vsel %vm699, %v621, %v763
  %v828 = vsel %vm700, %v626, %v764
  %v829 = vsel %vm701, %v629, %v765
  %v830 = vsel %vm702, %v634, %v766
  %v831 = vsel %vm703, %v637, %v767
  %v832 = vpack.c.bf16 %v769, %v768
  %v833 = vpack.c.bf16 %v771, %v770
  %v834 = vpack.c.bf16 %v773, %v772
  %v835 = vpack.c.bf16 %v775, %v774
  %v836 = vpack.c.bf16 %v777, %v776
  %v837 = vpack.c.bf16 %v779, %v778
  %v838 = vpack.c.bf16 %v781, %v780
  %v839 = vpack.c.bf16 %v783, %v782
  %v840 = vpack.c.bf16 %v785, %v784
  %v841 = vpack.c.bf16 %v787, %v786
  %v842 = vpack.c.bf16 %v789, %v788
  %v843 = vpack.c.bf16 %v791, %v790
  %v844 = vpack.c.bf16 %v793, %v792
  %v845 = vpack.c.bf16 %v795, %v794
  %v846 = vpack.c.bf16 %v797, %v796
  %v847 = vpack.c.bf16 %v799, %v798
  %v848 = vpack.c.bf16 %v801, %v800
  %v849 = vpack.c.bf16 %v803, %v802
  %v850 = vpack.c.bf16 %v805, %v804
  %v851 = vpack.c.bf16 %v807, %v806
  %v852 = vpack.c.bf16 %v809, %v808
  %v853 = vpack.c.bf16 %v811, %v810
  %v854 = vpack.c.bf16 %v813, %v812
  %v855 = vpack.c.bf16 %v815, %v814
  %v856 = vpack.c.bf16 %v817, %v816
  %v857 = vpack.c.bf16 %v819, %v818
  %v858 = vpack.c.bf16 %v821, %v820
  %v859 = vpack.c.bf16 %v823, %v822
  %v860 = vpack.c.bf16 %v825, %v824
  %v861 = vpack.c.bf16 %v827, %v826
  %v862 = vpack.c.bf16 %v829, %v828
  %v863 = vpack.c.bf16 %v831, %v830
  %v896 = vunpack.c.l.b16 %v832
  %v897 = vunpack.c.h.b16 %v832
  %v898 = vunpack.c.l.b16 %v833
  %v899 = vunpack.c.h.b16 %v833
  %v900 = vunpack.c.l.b16 %v834
  %v901 = vunpack.c.h.b16 %v834
  %v902 = vunpack.c.l.b16 %v835
  %v903 = vunpack.c.h.b16 %v835
  %v904 = vunpack.c.l.b16 %v836
  %v905 = vunpack.c.h.b16 %v836
  %v906 = vunpack.c.l.b16 %v837
  %v907 = vunpack.c.h.b16 %v837
  %v908 = vunpack.c.l.b16 %v838
  %v909 = vunpack.c.h.b16 %v838
  %v910 = vunpack.c.l.b16 %v839
  %v911 = vunpack.c.h.b16 %v839
  %v912 = vunpack.c.l.b16 %v840
  %v913 = vunpack.c.h.b16 %v840
  %v914 = vunpack.c.l.b16 %v841
  %v915 = vunpack.c.h.b16 %v841
  %v916 = vunpack.c.l.b16 %v842
  %v917 = vunpack.c.h.b16 %v842
  %v918 = vunpack.c.l.b16 %v843
  %v919 = vunpack.c.h.b16 %v843
  %v920 = vunpack.c.l.b16 %v844
  %v921 = vunpack.c.h.b16 %v844
  %v922 = vunpack.c.l.b16 %v845
  %v923 = vunpack.c.h.b16 %v845
  %v924 = vunpack.c.l.b16 %v846
  %v925 = vunpack.c.h.b16 %v846
  %v926 = vunpack.c.l.b16 %v847
  %v927 = vunpack.c.h.b16 %v847
  %v928 = vunpack.c.l.b16 %v848
  %v929 = vunpack.c.h.b16 %v848
  %v930 = vunpack.c.l.b16 %v849
  %v931 = vunpack.c.h.b16 %v849
  %v932 = vunpack.c.l.b16 %v850
  %v933 = vunpack.c.h.b16 %v850
  %v934 = vunpack.c.l.b16 %v851
  %v935 = vunpack.c.h.b16 %v851
  %v936 = vunpack.c.l.b16 %v852
  %v937 = vunpack.c.h.b16 %v852
  %v938 = vunpack.c.l.b16 %v853
  %v939 = vunpack.c.h.b16 %v853
  %v940 = vunpack.c.l.b16 %v854
  %v941 = vunpack.c.h.b16 %v854
  %v942 = vunpack.c.l.b16 %v855
  %v943 = vunpack.c.h.b16 %v855
  %v944 = vunpack.c.l.b16 %v856
  %v945 = vunpack.c.h.b16 %v856
  %v946 = vunpack.c.l.b16 %v857
  %v947 = vunpack.c.h.b16 %v857
  %v948 = vunpack.c.l.b16 %v858
  %v949 = vunpack.c.h.b16 %v858
  %v950 = vunpack.c.l.b16 %v859
  %v951 = vunpack.c.h.b16 %v859
  %v952 = vunpack.c.l.b16 %v860
  %v953 = vunpack.c.h.b16 %v860
  %v954 = vunpack.c.l.b16 %v861
  %v955 = vunpack.c.h.b16 %v861
  %v956 = vunpack.c.l.b16 %v862
  %v957 = vunpack.c.h.b16 %v862
  %v958 = vunpack.c.l.b16 %v863
  %v959 = vunpack.c.h.b16 %v863
  %v960 = vpack.c.b16 %v896, %v896
  %v961 = vpack.c.b16 %v897, %v897
  %v962 = vpack.c.b16 %v898, %v898
  %v963 = vpack.c.b16 %v899, %v899
  %v964 = vpack.c.b16 %v900, %v900
  %v965 = vpack.c.b16 %v901, %v901
  %v966 = vpack.c.b16 %v902, %v902
  %v967 = vpack.c.b16 %v903, %v903
  %v968 = vpack.c.b16 %v904, %v904
  %v969 = vpack.c.b16 %v905, %v905
  %v970 = vpack.c.b16 %v906, %v906
  %v971 = vpack.c.b16 %v907, %v907
  %v972 = vpack.c.b16 %v908, %v908
  %v973 = vpack.c.b16 %v909, %v909
  %v974 = vpack.c.b16 %v910, %v910
  %v975 = vpack.c.b16 %v911, %v911
  %v976 = vpack.c.b16 %v912, %v912
  %v977 = vpack.c.b16 %v913, %v913
  %v978 = vpack.c.b16 %v914, %v914
  %v979 = vpack.c.b16 %v915, %v915
  %v980 = vpack.c.b16 %v916, %v916
  %v981 = vpack.c.b16 %v917, %v917
  %v982 = vpack.c.b16 %v918, %v918
  %v983 = vpack.c.b16 %v919, %v919
  %v984 = vpack.c.b16 %v920, %v920
  %v985 = vpack.c.b16 %v921, %v921
  %v986 = vpack.c.b16 %v922, %v922
  %v987 = vpack.c.b16 %v923, %v923
  %v988 = vpack.c.b16 %v924, %v924
  %v989 = vpack.c.b16 %v925, %v925
  %v990 = vpack.c.b16 %v926, %v926
  %v991 = vpack.c.b16 %v927, %v927
  %v992 = vpack.c.b16 %v928, %v928
  %v993 = vpack.c.b16 %v929, %v929
  %v994 = vpack.c.b16 %v930, %v930
  %v995 = vpack.c.b16 %v931, %v931
  %v996 = vpack.c.b16 %v932, %v932
  %v997 = vpack.c.b16 %v933, %v933
  %v998 = vpack.c.b16 %v934, %v934
  %v999 = vpack.c.b16 %v935, %v935
  %v1000 = vpack.c.b16 %v936, %v936
  %v1001 = vpack.c.b16 %v937, %v937
  %v1002 = vpack.c.b16 %v938, %v938
  %v1003 = vpack.c.b16 %v939, %v939
  %v1004 = vpack.c.b16 %v940, %v940
  %v1005 = vpack.c.b16 %v941, %v941
  %v1006 = vpack.c.b16 %v942, %v942
  %v1007 = vpack.c.b16 %v943, %v943
  %v1008 = vpack.c.b16 %v944, %v944
  %v1009 = vpack.c.b16 %v945, %v945
  %v1010 = vpack.c.b16 %v946, %v946
  %v1011 = vpack.c.b16 %v947, %v947
  %v1012 = vpack.c.b16 %v948, %v948
  %v1013 = vpack.c.b16 %v949, %v949
  %v1014 = vpack.c.b16 %v950, %v950
  %v1015 = vpack.c.b16 %v951, %v951
  %v1016 = vpack.c.b16 %v952, %v952
  %v1017 = vpack.c.b16 %v953, %v953
  %v1018 = vpack.c.b16 %v954, %v954
  %v1019 = vpack.c.b16 %v955, %v955
  %v1020 = vpack.c.b16 %v956, %v956
  %v1021 = vpack.c.b16 %v957, %v957
  %v1022 = vpack.c.b16 %v958, %v958
  %v1023 = vpack.c.b16 %v959, %v959
  %1088 = vst [vmem:[%s3] sm:$0xf] %v960
  %1089 = vst [vmem:[%s3 + $0x4] sm:$0xf] %v961
  %1090 = vst [vmem:[%s3 + $0x8] sm:$0xf] %v962
  %1091 = vst [vmem:[%s3 + $0xc] sm:$0xf] %v963
  %1092 = vst [vmem:[%s3 + $0x10] sm:$0xf] %v964
  %1093 = vst [vmem:[%s3 + $0x14] sm:$0xf] %v965
  %1094 = vst [vmem:[%s3 + $0x18] sm:$0xf] %v966
  %1095 = vst [vmem:[%s3 + $0x1c] sm:$0xf] %v967
  %1096 = vst [vmem:[%s3 + $0x20] sm:$0xf] %v968
  %1097 = vst [vmem:[%s3 + $0x24] sm:$0xf] %v969
  %1098 = vst [vmem:[%s3 + $0x28] sm:$0xf] %v970
  %1099 = vst [vmem:[%s3 + $0x2c] sm:$0xf] %v971
  %1100 = vst [vmem:[%s3 + $0x30] sm:$0xf] %v972
  %1101 = vst [vmem:[%s3 + $0x34] sm:$0xf] %v973
  %1102 = vst [vmem:[%s3 + $0x38] sm:$0xf] %v974
  %1103 = vst [vmem:[%s3 + $0x3c] sm:$0xf] %v975
  %1104 = vst [vmem:[%s3 + $0x40] sm:$0xf] %v976
  %1105 = vst [vmem:[%s3 + $0x44] sm:$0xf] %v977
  %1106 = vst [vmem:[%s3 + $0x48] sm:$0xf] %v978
  %1107 = vst [vmem:[%s3 + $0x4c] sm:$0xf] %v979
  %1108 = vst [vmem:[%s3 + $0x50] sm:$0xf] %v980
  %1109 = vst [vmem:[%s3 + $0x54] sm:$0xf] %v981
  %1110 = vst [vmem:[%s3 + $0x58] sm:$0xf] %v982
  %1111 = vst [vmem:[%s3 + $0x5c] sm:$0xf] %v983
  %1112 = vst [vmem:[%s3 + $0x60] sm:$0xf] %v984
  %1113 = vst [vmem:[%s3 + $0x64] sm:$0xf] %v985
  %1114 = vst [vmem:[%s3 + $0x68] sm:$0xf] %v986
  %1115 = vst [vmem:[%s3 + $0x6c] sm:$0xf] %v987
  %1116 = vst [vmem:[%s3 + $0x70] sm:$0xf] %v988
  %1117 = vst [vmem:[%s3 + $0x74] sm:$0xf] %v989
  %1118 = vst [vmem:[%s3 + $0x78] sm:$0xf] %v990
  %1119 = vst [vmem:[%s3 + $0x7c] sm:$0xf] %v991
  %1120 = vst [vmem:[%s3 + $0x80] sm:$0xf] %v992
  %1121 = vst [vmem:[%s3 + $0x84] sm:$0xf] %v993
  %1122 = vst [vmem:[%s3 + $0x88] sm:$0xf] %v994
  %1123 = vst [vmem:[%s3 + $0x8c] sm:$0xf] %v995
  %1124 = vst [vmem:[%s3 + $0x90] sm:$0xf] %v996
  %1125 = vst [vmem:[%s3 + $0x94] sm:$0xf] %v997
  %1126 = vst [vmem:[%s3 + $0x98] sm:$0xf] %v998
  %1127 = vst [vmem:[%s3 + $0x9c] sm:$0xf] %v999
  %1128 = vst [vmem:[%s3 + $0xa0] sm:$0xf] %v1000
  %1129 = vst [vmem:[%s3 + $0xa4] sm:$0xf] %v1001
  %1130 = vst [vmem:[%s3 + $0xa8] sm:$0xf] %v1002
  %1131 = vst [vmem:[%s3 + $0xac] sm:$0xf] %v1003
  %1132 = vst [vmem:[%s3 + $0xb0] sm:$0xf] %v1004
  %1133 = vst [vmem:[%s3 + $0xb4] sm:$0xf] %v1005
  %1134 = vst [vmem:[%s3 + $0xb8] sm:$0xf] %v1006
  %1135 = vst [vmem:[%s3 + $0xbc] sm:$0xf] %v1007
  %1136 = vst [vmem:[%s3 + $0xc0] sm:$0xf] %v1008
  %1137 = vst [vmem:[%s3 + $0xc4] sm:$0xf] %v1009
  %1138 = vst [vmem:[%s3 + $0xc8] sm:$0xf] %v1010
  %1139 = vst [vmem:[%s3 + $0xcc] sm:$0xf] %v1011
  %1140 = vst [vmem:[%s3 + $0xd0] sm:$0xf] %v1012
  %1141 = vst [vmem:[%s3 + $0xd4] sm:$0xf] %v1013
  %1142 = vst [vmem:[%s3 + $0xd8] sm:$0xf] %v1014
  %1143 = vst [vmem:[%s3 + $0xdc] sm:$0xf] %v1015
  %1144 = vst [vmem:[%s3 + $0xe0] sm:$0xf] %v1016
  %1145 = vst [vmem:[%s3 + $0xe4] sm:$0xf] %v1017
  %1146 = vst [vmem:[%s3 + $0xe8] sm:$0xf] %v1018
  %1147 = vst [vmem:[%s3 + $0xec] sm:$0xf] %v1019
  %1148 = vst [vmem:[%s3 + $0xf0] sm:$0xf] %v1020
  %1149 = vst [vmem:[%s3 + $0xf4] sm:$0xf] %v1021
  %1150 = vst [vmem:[%s3 + $0xf8] sm:$0xf] %v1022
  %1151 = vst [vmem:[%s3 + $0xfc] sm:$0xf] %v1023
  // Predicated region
  $region14: #{discriminator_forward.5} parent=0 // pred_check
    _
  $region15: #{discriminator_forward.5} parent=0 // pred_check_branch
    %1153 = sbr.rel (0) target = $region17
  $region16: #{discriminator_forward.5} parent=0 // pred_region
    _
  $region17: #{discriminator_forward.5} parent=0 // pred_fallthru
    _
  // Predicated region
  $region18: #{discriminator_forward.5} parent=0 // pred_check
    _
  $region19: #{discriminator_forward.5} parent=0 // pred_check_branch
    %1155 = sbr.rel (0) target = $region21
  $region20: #{discriminator_forward.5} parent=0 // pred_region
    _
  $region21: #{discriminator_forward.5} parent=0 // pred_fallthru
    _

// kernel: discriminator_forward.7
$region0: #{discriminator_forward.7}
  #allocation0 [shape = 'u32[]', space=smem, size = 0x4, offset = 0x4, fixed_abs, tag = 'smem constant byte address 0x4 - core index']
  #allocation1 [shape = 'u32[144,128]{1,0:T(1,128)}', space=vmem, size = 0x12000, scoped, tag = 'internal scratch']
  %s0 = inlined_call_operand.vmem [shape: f32[128,128], index: 0, kind: input, shape index: {}]
  %s1 = inlined_call_operand.vmem [shape: f32[1,128], index: 1, kind: input, shape index: {}]
  %s2 = inlined_call_operand.vmem [shape: f32[1,128], index: 2, kind: input, shape index: {}]
  %s3 = inlined_call_operand.vmem [shape: bf16[128,128], index: 3, kind: output, shape index: {}]
  %s4 = sld [smem:[#allocation0]]
  $region22: #{discriminator_forward.7} parent=0
    _
  %s6 = ssub.s32 1, %s4
  %s7 = scalar_select 0, %s6, %s4
  // Predicated region
  $region2: #{discriminator_forward.7} parent=0 // pred_check
    _
  $region3: #{discriminator_forward.7} parent=0 // pred_check_branch
    %9 = sbr.rel (0) target = $region5
  $region4: #{discriminator_forward.7} parent=0 // pred_region
    _
  $region5: #{discriminator_forward.7} parent=0 // pred_fallthru
    _
  // Predicated region
  $region6: #{discriminator_forward.7} parent=0 // pred_check
    _
  $region7: #{discriminator_forward.7} parent=0 // pred_check_branch
    %11 = sbr.rel (0) target = $region9
  $region8: #{discriminator_forward.7} parent=0 // pred_region
    _
  $region9: #{discriminator_forward.7} parent=0 // pred_fallthru
    _
  // Predicated region
  $region10: #{discriminator_forward.7} parent=0 // pred_check
    _
  $region11: #{discriminator_forward.7} parent=0 // pred_check_branch
    %13 = sbr.rel (0) target = $region13
  $region12: #{discriminator_forward.7} parent=0 // pred_region
    _
  $region13: #{discriminator_forward.7} parent=0 // pred_fallthru
    _
  %v14 = vld [vmem:[%s0] sm:$0xff]
  %v15 = vld [vmem:[%s0 + $0x8] sm:$0xff]
  %v16 = vld [vmem:[%s0 + $0x10] sm:$0xff]
  %v17 = vld [vmem:[%s0 + $0x18] sm:$0xff]
  %v18 = vld [vmem:[%s0 + $0x20] sm:$0xff]
  %v19 = vld [vmem:[%s0 + $0x28] sm:$0xff]
  %v20 = vld [vmem:[%s0 + $0x30] sm:$0xff]
  %v21 = vld [vmem:[%s0 + $0x38] sm:$0xff]
  %v22 = vld [vmem:[%s0 + $0x40] sm:$0xff]
  %v23 = vld [vmem:[%s0 + $0x48] sm:$0xff]
  %v24 = vld [vmem:[%s0 + $0x50] sm:$0xff]
  %v25 = vld [vmem:[%s0 + $0x58] sm:$0xff]
  %v26 = vld [vmem:[%s0 + $0x60] sm:$0xff]
  %v27 = vld [vmem:[%s0 + $0x68] sm:$0xff]
  %v28 = vld [vmem:[%s0 + $0x70] sm:$0xff]
  %v29 = vld [vmem:[%s0 + $0x78] sm:$0xff]
  %v30 = vld [vmem:[%s1] sm:$0x1]
  %v32 = vlaneseq
  %v33 = vshrl.u32 %v32, 7
  %v34 = vsub.s32 0, %v33
  %v35 = vrot.slane %v30, %v34
  %v37 = vmul.f32 %v14, %v35
  %v38 = vmul.f32 %v15, %v35
  %v39 = vmul.f32 %v16, %v35
  %v40 = vmul.f32 %v17, %v35
  %v41 = vmul.f32 %v18, %v35
  %v42 = vmul.f32 %v19, %v35
  %v43 = vmul.f32 %v20, %v35
  %v44 = vmul.f32 %v21, %v35
  %v45 = vmul.f32 %v22, %v35
  %v46 = vmul.f32 %v23, %v35
  %v47 = vmul.f32 %v24, %v35
  %v48 = vmul.f32 %v25, %v35
  %v49 = vmul.f32 %v26, %v35
  %v50 = vmul.f32 %v27, %v35
  %v51 = vmul.f32 %v28, %v35
  %v52 = vmul.f32 %v29, %v35
  %v53 = vld [vmem:[%s2] sm:$0x1]
  %v55 = vlaneseq
  %v56 = vshrl.u32 %v55, 7
  %v57 = vsub.s32 0, %v56
  %v58 = vrot.slane %v53, %v57
  %v60 = vadd.f32 %v37, %v58
  %v61 = vadd.f32 %v38, %v58
  %v62 = vadd.f32 %v39, %v58
  %v63 = vadd.f32 %v40, %v58
  %v64 = vadd.f32 %v41, %v58
  %v65 = vadd.f32 %v42, %v58
  %v66 = vadd.f32 %v43, %v58
  %v67 = vadd.f32 %v44, %v58
  %v68 = vadd.f32 %v45, %v58
  %v69 = vadd.f32 %v46, %v58
  %v70 = vadd.f32 %v47, %v58
  %v71 = vadd.f32 %v48, %v58
  %v72 = vadd.f32 %v49, %v58
  %v73 = vadd.f32 %v50, %v58
  %v74 = vadd.f32 %v51, %v58
  %v75 = vadd.f32 %v52, %v58
  %vm76 = vcmp.gt.f32.partialorder %v60, 0.0
  %vm77 = vcmp.gt.f32.partialorder %v61, 0.0
  %vm78 = vcmp.gt.f32.partialorder %v62, 0.0
  %vm79 = vcmp.gt.f32.partialorder %v63, 0.0
  %vm80 = vcmp.gt.f32.partialorder %v64, 0.0
  %vm81 = vcmp.gt.f32.partialorder %v65, 0.0
  %vm82 = vcmp.gt.f32.partialorder %v66, 0.0
  %vm83 = vcmp.gt.f32.partialorder %v67, 0.0
  %vm84 = vcmp.gt.f32.partialorder %v68, 0.0
  %vm85 = vcmp.gt.f32.partialorder %v69, 0.0
  %vm86 = vcmp.gt.f32.partialorder %v70, 0.0
  %vm87 = vcmp.gt.f32.partialorder %v71, 0.0
  %vm88 = vcmp.gt.f32.partialorder %v72, 0.0
  %vm89 = vcmp.gt.f32.partialorder %v73, 0.0
  %vm90 = vcmp.gt.f32.partialorder %v74, 0.0
  %vm91 = vcmp.gt.f32.partialorder %v75, 0.0
  %v92 = vmul.f32 %v60, 0.2
  %v93 = vmul.f32 %v61, 0.2
  %v94 = vmul.f32 %v62, 0.2
  %v95 = vmul.f32 %v63, 0.2
  %v96 = vmul.f32 %v64, 0.2
  %v97 = vmul.f32 %v65, 0.2
  %v98 = vmul.f32 %v66, 0.2
  %v99 = vmul.f32 %v67, 0.2
  %v100 = vmul.f32 %v68, 0.2
  %v101 = vmul.f32 %v69, 0.2
  %v102 = vmul.f32 %v70, 0.2
  %v103 = vmul.f32 %v71, 0.2
  %v104 = vmul.f32 %v72, 0.2
  %v105 = vmul.f32 %v73, 0.2
  %v106 = vmul.f32 %v74, 0.2
  %v107 = vmul.f32 %v75, 0.2
  %v108 = vsel %vm76, %v60, %v92
  %v109 = vsel %vm77, %v61, %v93
  %v110 = vsel %vm78, %v62, %v94
  %v111 = vsel %vm79, %v63, %v95
  %v112 = vsel %vm80, %v64, %v96
  %v113 = vsel %vm81, %v65, %v97
  %v114 = vsel %vm82, %v66, %v98
  %v115 = vsel %vm83, %v67, %v99
  %v116 = vsel %vm84, %v68, %v100
  %v117 = vsel %vm85, %v69, %v101
  %v118 = vsel %vm86, %v70, %v102
  %v119 = vsel %vm87, %v71, %v103
  %v120 = vsel %vm88, %v72, %v104
  %v121 = vsel %vm89, %v73, %v105
  %v122 = vsel %vm90, %v74, %v106
  %v123 = vsel %vm91, %v75, %v107
  %v124 = vpack.c.bf16 %v109, %v108
  %v125 = vpack.c.bf16 %v111, %v110
  %v126 = vpack.c.bf16 %v113, %v112
  %v127 = vpack.c.bf16 %v115, %v114
  %v128 = vpack.c.bf16 %v117, %v116
  %v129 = vpack.c.bf16 %v119, %v118
  %v130 = vpack.c.bf16 %v121, %v120
  %v131 = vpack.c.bf16 %v123, %v122
  %v140 = vunpack.c.l.b16 %v124
  %v141 = vunpack.c.h.b16 %v124
  %v142 = vunpack.c.l.b16 %v125
  %v143 = vunpack.c.h.b16 %v125
  %v144 = vunpack.c.l.b16 %v126
  %v145 = vunpack.c.h.b16 %v126
  %v146 = vunpack.c.l.b16 %v127
  %v147 = vunpack.c.h.b16 %v127
  %v148 = vunpack.c.l.b16 %v128
  %v149 = vunpack.c.h.b16 %v128
  %v150 = vunpack.c.l.b16 %v129
  %v151 = vunpack.c.h.b16 %v129
  %v152 = vunpack.c.l.b16 %v130
  %v153 = vunpack.c.h.b16 %v130
  %v154 = vunpack.c.l.b16 %v131
  %v155 = vunpack.c.h.b16 %v131
  %v156 = vpack.c.b16 %v140, %v140
  %v157 = vpack.c.b16 %v141, %v141
  %v158 = vpack.c.b16 %v142, %v142
  %v159 = vpack.c.b16 %v143, %v143
  %v160 = vpack.c.b16 %v144, %v144
  %v161 = vpack.c.b16 %v145, %v145
  %v162 = vpack.c.b16 %v146, %v146
  %v163 = vpack.c.b16 %v147, %v147
  %v164 = vpack.c.b16 %v148, %v148
  %v165 = vpack.c.b16 %v149, %v149
  %v166 = vpack.c.b16 %v150, %v150
  %v167 = vpack.c.b16 %v151, %v151
  %v168 = vpack.c.b16 %v152, %v152
  %v169 = vpack.c.b16 %v153, %v153
  %v170 = vpack.c.b16 %v154, %v154
  %v171 = vpack.c.b16 %v155, %v155
  %188 = vst [vmem:[%s3] sm:$0xf] %v156
  %189 = vst [vmem:[%s3 + $0x4] sm:$0xf] %v157
  %190 = vst [vmem:[%s3 + $0x8] sm:$0xf] %v158
  %191 = vst [vmem:[%s3 + $0xc] sm:$0xf] %v159
  %192 = vst [vmem:[%s3 + $0x10] sm:$0xf] %v160
  %193 = vst [vmem:[%s3 + $0x14] sm:$0xf] %v161
  %194 = vst [vmem:[%s3 + $0x18] sm:$0xf] %v162
  %195 = vst [vmem:[%s3 + $0x1c] sm:$0xf] %v163
  %196 = vst [vmem:[%s3 + $0x20] sm:$0xf] %v164
  %197 = vst [vmem:[%s3 + $0x24] sm:$0xf] %v165
  %198 = vst [vmem:[%s3 + $0x28] sm:$0xf] %v166
  %199 = vst [vmem:[%s3 + $0x2c] sm:$0xf] %v167
  %200 = vst [vmem:[%s3 + $0x30] sm:$0xf] %v168
  %201 = vst [vmem:[%s3 + $0x34] sm:$0xf] %v169
  %202 = vst [vmem:[%s3 + $0x38] sm:$0xf] %v170
  %203 = vst [vmem:[%s3 + $0x3c] sm:$0xf] %v171
  // Predicated region
  $region14: #{discriminator_forward.7} parent=0 // pred_check
    _
  $region15: #{discriminator_forward.7} parent=0 // pred_check_branch
    %205 = sbr.rel (0) target = $region17
  $region16: #{discriminator_forward.7} parent=0 // pred_region
    _
  $region17: #{discriminator_forward.7} parent=0 // pred_fallthru
    _
  // Predicated region
  $region18: #{discriminator_forward.7} parent=0 // pred_check
    _
  $region19: #{discriminator_forward.7} parent=0 // pred_check_branch
    %207 = sbr.rel (0) target = $region21
  $region20: #{discriminator_forward.7} parent=0 // pred_region
    _
  $region21: #{discriminator_forward.7} parent=0 // pred_fallthru
    _

// kernel: discriminator_forward.6
$region0: #{discriminator_forward.6}
  #allocation0 [shape = 'u32[]', space=smem, size = 0x4, offset = 0x4, fixed_abs, tag = 'smem constant byte address 0x4 - core index']
  #allocation1 [shape = 'u32[144,128]{1,0:T(1,128)}', space=vmem, size = 0x12000, scoped, tag = 'internal scratch']
  %s0 = inlined_call_operand.vmem [shape: bf16[128,2048], index: 0, kind: input, shape index: {}]
  %s1 = inlined_call_operand.vmem [shape: bf16[2048,128], index: 1, kind: input, shape index: {}]
  %s2 = inlined_call_operand.vmem [shape: f32[128,128], index: 2, kind: output, shape index: {0}]
  %s3 = inlined_call_operand.vmem [shape: f32[1,2,128], index: 3, kind: output, shape index: {1}]
  %4 = xla_tuple %s2, %s3
  %s5 = sld [smem:[#allocation0]]
  $region26: #{discriminator_forward.6} parent=0
    _
  %s7 = ssub.s32 1, %s5
  %s8 = scalar_select 0, %s7, %s5
  // Predicated region
  $region2: #{discriminator_forward.6} parent=0 // pred_check
    _
  $region3: #{discriminator_forward.6} parent=0 // pred_check_branch
    %10 = sbr.rel (0) target = $region5
  $region4: #{discriminator_forward.6} parent=0 // pred_region
    _
  $region5: #{discriminator_forward.6} parent=0 // pred_fallthru
    _
  // Predicated region
  $region6: #{discriminator_forward.6} parent=0 // pred_check
    _
  $region7: #{discriminator_forward.6} parent=0 // pred_check_branch
    %12 = sbr.rel (0) target = $region9
  $region8: #{discriminator_forward.6} parent=0 // pred_region
    _
  $region9: #{discriminator_forward.6} parent=0 // pred_fallthru
    _
  %v14 = vld [vmem:[%s0] sm:$0xff]
  %v15 = vld [vmem:[%s0 + $0x8] sm:$0xff]
  %v16 = vld [vmem:[%s0 + $0x10] sm:$0xff]
  %v17 = vld [vmem:[%s0 + $0x18] sm:$0xff]
  %v18 = vld [vmem:[%s0 + $0x20] sm:$0xff]
  %v19 = vld [vmem:[%s0 + $0x28] sm:$0xff]
  %v20 = vld [vmem:[%s0 + $0x30] sm:$0xff]
  %v21 = vld [vmem:[%s0 + $0x38] sm:$0xff]
  %v22 = vld [vmem:[%s0 + $0x40] sm:$0xff]
  %v23 = vld [vmem:[%s0 + $0x48] sm:$0xff]
  %v24 = vld [vmem:[%s0 + $0x50] sm:$0xff]
  %v25 = vld [vmem:[%s0 + $0x58] sm:$0xff]
  %v26 = vld [vmem:[%s0 + $0x60] sm:$0xff]
  %v27 = vld [vmem:[%s0 + $0x68] sm:$0xff]
  %v28 = vld [vmem:[%s0 + $0x70] sm:$0xff]
  %v29 = vld [vmem:[%s0 + $0x78] sm:$0xff]
  %v30 = vld [vmem:[%s0 + $0x80] sm:$0xff]
  %v31 = vld [vmem:[%s0 + $0x88] sm:$0xff]
  %v32 = vld [vmem:[%s0 + $0x90] sm:$0xff]
  %v33 = vld [vmem:[%s0 + $0x98] sm:$0xff]
  %v34 = vld [vmem:[%s0 + $0xa0] sm:$0xff]
  %v35 = vld [vmem:[%s0 + $0xa8] sm:$0xff]
  %v36 = vld [vmem:[%s0 + $0xb0] sm:$0xff]
  %v37 = vld [vmem:[%s0 + $0xb8] sm:$0xff]
  %v38 = vld [vmem:[%s0 + $0xc0] sm:$0xff]
  %v39 = vld [vmem:[%s0 + $0xc8] sm:$0xff]
  %v40 = vld [vmem:[%s0 + $0xd0] sm:$0xff]
  %v41 = vld [vmem:[%s0 + $0xd8] sm:$0xff]
  %v42 = vld [vmem:[%s0 + $0xe0] sm:$0xff]
  %v43 = vld [vmem:[%s0 + $0xe8] sm:$0xff]
  %v44 = vld [vmem:[%s0 + $0xf0] sm:$0xff]
  %v45 = vld [vmem:[%s0 + $0xf8] sm:$0xff]
  %v46 = vld [vmem:[%s0 + $0x100] sm:$0xff]
  %v47 = vld [vmem:[%s0 + $0x108] sm:$0xff]
  %v48 = vld [vmem:[%s0 + $0x110] sm:$0xff]
  %v49 = vld [vmem:[%s0 + $0x118] sm:$0xff]
  %v50 = vld [vmem:[%s0 + $0x120] sm:$0xff]
  %v51 = vld [vmem:[%s0 + $0x128] sm:$0xff]
  %v52 = vld [vmem:[%s0 + $0x130] sm:$0xff]
  %v53 = vld [vmem:[%s0 + $0x138] sm:$0xff]
  %v54 = vld [vmem:[%s0 + $0x140] sm:$0xff]
  %v55 = vld [vmem:[%s0 + $0x148] sm:$0xff]
  %v56 = vld [vmem:[%s0 + $0x150] sm:$0xff]
  %v57 = vld [vmem:[%s0 + $0x158] sm:$0xff]
  %v58 = vld [vmem:[%s0 + $0x160] sm:$0xff]
  %v59 = vld [vmem:[%s0 + $0x168] sm:$0xff]
  %v60 = vld [vmem:[%s0 + $0x170] sm:$0xff]
  %v61 = vld [vmem:[%s0 + $0x178] sm:$0xff]
  %v62 = vld [vmem:[%s0 + $0x180] sm:$0xff]
  %v63 = vld [vmem:[%s0 + $0x188] sm:$0xff]
  %v64 = vld [vmem:[%s0 + $0x190] sm:$0xff]
  %v65 = vld [vmem:[%s0 + $0x198] sm:$0xff]
  %v66 = vld [vmem:[%s0 + $0x1a0] sm:$0xff]
  %v67 = vld [vmem:[%s0 + $0x1a8] sm:$0xff]
  %v68 = vld [vmem:[%s0 + $0x1b0] sm:$0xff]
  %v69 = vld [vmem:[%s0 + $0x1b8] sm:$0xff]
  %v70 = vld [vmem:[%s0 + $0x1c0] sm:$0xff]
  %v71 = vld [vmem:[%s0 + $0x1c8] sm:$0xff]
  %v72 = vld [vmem:[%s0 + $0x1d0] sm:$0xff]
  %v73 = vld [vmem:[%s0 + $0x1d8] sm:$0xff]
  %v74 = vld [vmem:[%s0 + $0x1e0] sm:$0xff]
  %v75 = vld [vmem:[%s0 + $0x1e8] sm:$0xff]
  %v76 = vld [vmem:[%s0 + $0x1f0] sm:$0xff]
  %v77 = vld [vmem:[%s0 + $0x1f8] sm:$0xff]
  %v78 = vld [vmem:[%s0 + $0x200] sm:$0xff]
  %v79 = vld [vmem:[%s0 + $0x208] sm:$0xff]
  %v80 = vld [vmem:[%s0 + $0x210] sm:$0xff]
  %v81 = vld [vmem:[%s0 + $0x218] sm:$0xff]
  %v82 = vld [vmem:[%s0 + $0x220] sm:$0xff]
  %v83 = vld [vmem:[%s0 + $0x228] sm:$0xff]
  %v84 = vld [vmem:[%s0 + $0x230] sm:$0xff]
  %v85 = vld [vmem:[%s0 + $0x238] sm:$0xff]
  %v86 = vld [vmem:[%s0 + $0x240] sm:$0xff]
  %v87 = vld [vmem:[%s0 + $0x248] sm:$0xff]
  %v88 = vld [vmem:[%s0 + $0x250] sm:$0xff]
  %v89 = vld [vmem:[%s0 + $0x258] sm:$0xff]
  %v90 = vld [vmem:[%s0 + $0x260] sm:$0xff]
  %v91 = vld [vmem:[%s0 + $0x268] sm:$0xff]
  %v92 = vld [vmem:[%s0 + $0x270] sm:$0xff]
  %v93 = vld [vmem:[%s0 + $0x278] sm:$0xff]
  %v94 = vld [vmem:[%s0 + $0x280] sm:$0xff]
  %v95 = vld [vmem:[%s0 + $0x288] sm:$0xff]
  %v96 = vld [vmem:[%s0 + $0x290] sm:$0xff]
  %v97 = vld [vmem:[%s0 + $0x298] sm:$0xff]
  %v98 = vld [vmem:[%s0 + $0x2a0] sm:$0xff]
  %v99 = vld [vmem:[%s0 + $0x2a8] sm:$0xff]
  %v100 = vld [vmem:[%s0 + $0x2b0] sm:$0xff]
  %v101 = vld [vmem:[%s0 + $0x2b8] sm:$0xff]
  %v102 = vld [vmem:[%s0 + $0x2c0] sm:$0xff]
  %v103 = vld [vmem:[%s0 + $0x2c8] sm:$0xff]
  %v104 = vld [vmem:[%s0 + $0x2d0] sm:$0xff]
  %v105 = vld [vmem:[%s0 + $0x2d8] sm:$0xff]
  %v106 = vld [vmem:[%s0 + $0x2e0] sm:$0xff]
  %v107 = vld [vmem:[%s0 + $0x2e8] sm:$0xff]
  %v108 = vld [vmem:[%s0 + $0x2f0] sm:$0xff]
  %v109 = vld [vmem:[%s0 + $0x2f8] sm:$0xff]
  %v110 = vld [vmem:[%s0 + $0x300] sm:$0xff]
  %v111 = vld [vmem:[%s0 + $0x308] sm:$0xff]
  %v112 = vld [vmem:[%s0 + $0x310] sm:$0xff]
  %v113 = vld [vmem:[%s0 + $0x318] sm:$0xff]
  %v114 = vld [vmem:[%s0 + $0x320] sm:$0xff]
  %v115 = vld [vmem:[%s0 + $0x328] sm:$0xff]
  %v116 = vld [vmem:[%s0 + $0x330] sm:$0xff]
  %v117 = vld [vmem:[%s0 + $0x338] sm:$0xff]
  %v118 = vld [vmem:[%s0 + $0x340] sm:$0xff]
  %v119 = vld [vmem:[%s0 + $0x348] sm:$0xff]
  %v120 = vld [vmem:[%s0 + $0x350] sm:$0xff]
  %v121 = vld [vmem:[%s0 + $0x358] sm:$0xff]
  %v122 = vld [vmem:[%s0 + $0x360] sm:$0xff]
  %v123 = vld [vmem:[%s0 + $0x368] sm:$0xff]
  %v124 = vld [vmem:[%s0 + $0x370] sm:$0xff]
  %v125 = vld [vmem:[%s0 + $0x378] sm:$0xff]
  %v126 = vld [vmem:[%s0 + $0x380] sm:$0xff]
  %v127 = vld [vmem:[%s0 + $0x388] sm:$0xff]
  %v128 = vld [vmem:[%s0 + $0x390] sm:$0xff]
  %v129 = vld [vmem:[%s0 + $0x398] sm:$0xff]
  %v130 = vld [vmem:[%s0 + $0x3a0] sm:$0xff]
  %v131 = vld [vmem:[%s0 + $0x3a8] sm:$0xff]
  %v132 = vld [vmem:[%s0 + $0x3b0] sm:$0xff]
  %v133 = vld [vmem:[%s0 + $0x3b8] sm:$0xff]
  %v134 = vld [vmem:[%s0 + $0x3c0] sm:$0xff]
  %v135 = vld [vmem:[%s0 + $0x3c8] sm:$0xff]
  %v136 = vld [vmem:[%s0 + $0x3d0] sm:$0xff]
  %v137 = vld [vmem:[%s0 + $0x3d8] sm:$0xff]
  %v138 = vld [vmem:[%s0 + $0x3e0] sm:$0xff]
  %v139 = vld [vmem:[%s0 + $0x3e8] sm:$0xff]
  %v140 = vld [vmem:[%s0 + $0x3f0] sm:$0xff]
  %v141 = vld [vmem:[%s0 + $0x3f8] sm:$0xff]
  %v142 = vld [vmem:[%s1] sm:$0xf]
  %v143 = vld [vmem:[%s1 + $0x4] sm:$0xf]
  %v144 = vld [vmem:[%s1 + $0x8] sm:$0xf]
  %v145 = vld [vmem:[%s1 + $0xc] sm:$0xf]
  %v146 = vld [vmem:[%s1 + $0x10] sm:$0xf]
  %v147 = vld [vmem:[%s1 + $0x14] sm:$0xf]
  %v148 = vld [vmem:[%s1 + $0x18] sm:$0xf]
  %v149 = vld [vmem:[%s1 + $0x1c] sm:$0xf]
  %v150 = vld [vmem:[%s1 + $0x20] sm:$0xf]
  %v151 = vld [vmem:[%s1 + $0x24] sm:$0xf]
  %v152 = vld [vmem:[%s1 + $0x28] sm:$0xf]
  %v153 = vld [vmem:[%s1 + $0x2c] sm:$0xf]
  %v154 = vld [vmem:[%s1 + $0x30] sm:$0xf]
  %v155 = vld [vmem:[%s1 + $0x34] sm:$0xf]
  %v156 = vld [vmem:[%s1 + $0x38] sm:$0xf]
  %v157 = vld [vmem:[%s1 + $0x3c] sm:$0xf]
  %v158 = vld [vmem:[%s1 + $0x40] sm:$0xf]
  %v159 = vld [vmem:[%s1 + $0x44] sm:$0xf]
  %v160 = vld [vmem:[%s1 + $0x48] sm:$0xf]
  %v161 = vld [vmem:[%s1 + $0x4c] sm:$0xf]
  %v162 = vld [vmem:[%s1 + $0x50] sm:$0xf]
  %v163 = vld [vmem:[%s1 + $0x54] sm:$0xf]
  %v164 = vld [vmem:[%s1 + $0x58] sm:$0xf]
  %v165 = vld [vmem:[%s1 + $0x5c] sm:$0xf]
  %v166 = vld [vmem:[%s1 + $0x60] sm:$0xf]
  %v167 = vld [vmem:[%s1 + $0x64] sm:$0xf]
  %v168 = vld [vmem:[%s1 + $0x68] sm:$0xf]
  %v169 = vld [vmem:[%s1 + $0x6c] sm:$0xf]
  %v170 = vld [vmem:[%s1 + $0x70] sm:$0xf]
  %v171 = vld [vmem:[%s1 + $0x74] sm:$0xf]
  %v172 = vld [vmem:[%s1 + $0x78] sm:$0xf]
  %v173 = vld [vmem:[%s1 + $0x7c] sm:$0xf]
  %v174 = vld [vmem:[%s1 + $0x80] sm:$0xf]
  %v175 = vld [vmem:[%s1 + $0x84] sm:$0xf]
  %v176 = vld [vmem:[%s1 + $0x88] sm:$0xf]
  %v177 = vld [vmem:[%s1 + $0x8c] sm:$0xf]
  %v178 = vld [vmem:[%s1 + $0x90] sm:$0xf]
  %v179 = vld [vmem:[%s1 + $0x94] sm:$0xf]
  %v180 = vld [vmem:[%s1 + $0x98] sm:$0xf]
  %v181 = vld [vmem:[%s1 + $0x9c] sm:$0xf]
  %v182 = vld [vmem:[%s1 + $0xa0] sm:$0xf]
  %v183 = vld [vmem:[%s1 + $0xa4] sm:$0xf]
  %v184 = vld [vmem:[%s1 + $0xa8] sm:$0xf]
  %v185 = vld [vmem:[%s1 + $0xac] sm:$0xf]
  %v186 = vld [vmem:[%s1 + $0xb0] sm:$0xf]
  %v187 = vld [vmem:[%s1 + $0xb4] sm:$0xf]
  %v188 = vld [vmem:[%s1 + $0xb8] sm:$0xf]
  %v189 = vld [vmem:[%s1 + $0xbc] sm:$0xf]
  %v190 = vld [vmem:[%s1 + $0xc0] sm:$0xf]
  %v191 = vld [vmem:[%s1 + $0xc4] sm:$0xf]
  %v192 = vld [vmem:[%s1 + $0xc8] sm:$0xf]
  %v193 = vld [vmem:[%s1 + $0xcc] sm:$0xf]
  %v194 = vld [vmem:[%s1 + $0xd0] sm:$0xf]
  %v195 = vld [vmem:[%s1 + $0xd4] sm:$0xf]
  %v196 = vld [vmem:[%s1 + $0xd8] sm:$0xf]
  %v197 = vld [vmem:[%s1 + $0xdc] sm:$0xf]
  %v198 = vld [vmem:[%s1 + $0xe0] sm:$0xf]
  %v199 = vld [vmem:[%s1 + $0xe4] sm:$0xf]
  %v200 = vld [vmem:[%s1 + $0xe8] sm:$0xf]
  %v201 = vld [vmem:[%s1 + $0xec] sm:$0xf]
  %v202 = vld [vmem:[%s1 + $0xf0] sm:$0xf]
  %v203 = vld [vmem:[%s1 + $0xf4] sm:$0xf]
  %v204 = vld [vmem:[%s1 + $0xf8] sm:$0xf]
  %v205 = vld [vmem:[%s1 + $0xfc] sm:$0xf]
  %v206 = vld [vmem:[%s1 + $0x100] sm:$0xf]
  %v207 = vld [vmem:[%s1 + $0x104] sm:$0xf]
  %v208 = vld [vmem:[%s1 + $0x108] sm:$0xf]
  %v209 = vld [vmem:[%s1 + $0x10c] sm:$0xf]
  %v210 = vld [vmem:[%s1 + $0x110] sm:$0xf]
  %v211 = vld [vmem:[%s1 + $0x114] sm:$0xf]
  %v212 = vld [vmem:[%s1 + $0x118] sm:$0xf]
  %v213 = vld [vmem:[%s1 + $0x11c] sm:$0xf]
  %v214 = vld [vmem:[%s1 + $0x120] sm:$0xf]
  %v215 = vld [vmem:[%s1 + $0x124] sm:$0xf]
  %v216 = vld [vmem:[%s1 + $0x128] sm:$0xf]
  %v217 = vld [vmem:[%s1 + $0x12c] sm:$0xf]
  %v218 = vld [vmem:[%s1 + $0x130] sm:$0xf]
  %v219 = vld [vmem:[%s1 + $0x134] sm:$0xf]
  %v220 = vld [vmem:[%s1 + $0x138] sm:$0xf]
  %v221 = vld [vmem:[%s1 + $0x13c] sm:$0xf]
  %v222 = vld [vmem:[%s1 + $0x140] sm:$0xf]
  %v223 = vld [vmem:[%s1 + $0x144] sm:$0xf]
  %v224 = vld [vmem:[%s1 + $0x148] sm:$0xf]
  %v225 = vld [vmem:[%s1 + $0x14c] sm:$0xf]
  %v226 = vld [vmem:[%s1 + $0x150] sm:$0xf]
  %v227 = vld [vmem:[%s1 + $0x154] sm:$0xf]
  %v228 = vld [vmem:[%s1 + $0x158] sm:$0xf]
  %v229 = vld [vmem:[%s1 + $0x15c] sm:$0xf]
  %v230 = vld [vmem:[%s1 + $0x160] sm:$0xf]
  %v231 = vld [vmem:[%s1 + $0x164] sm:$0xf]
  %v232 = vld [vmem:[%s1 + $0x168] sm:$0xf]
  %v233 = vld [vmem:[%s1 + $0x16c] sm:$0xf]
  %v234 = vld [vmem:[%s1 + $0x170] sm:$0xf]
  %v235 = vld [vmem:[%s1 + $0x174] sm:$0xf]
  %v236 = vld [vmem:[%s1 + $0x178] sm:$0xf]
  %v237 = vld [vmem:[%s1 + $0x17c] sm:$0xf]
  %v238 = vld [vmem:[%s1 + $0x180] sm:$0xf]
  %v239 = vld [vmem:[%s1 + $0x184] sm:$0xf]
  %v240 = vld [vmem:[%s1 + $0x188] sm:$0xf]
  %v241 = vld [vmem:[%s1 + $0x18c] sm:$0xf]
  %v242 = vld [vmem:[%s1 + $0x190] sm:$0xf]
  %v243 = vld [vmem:[%s1 + $0x194] sm:$0xf]
  %v244 = vld [vmem:[%s1 + $0x198] sm:$0xf]
  %v245 = vld [vmem:[%s1 + $0x19c] sm:$0xf]
  %v246 = vld [vmem:[%s1 + $0x1a0] sm:$0xf]
  %v247 = vld [vmem:[%s1 + $0x1a4] sm:$0xf]
  %v248 = vld [vmem:[%s1 + $0x1a8] sm:$0xf]
  %v249 = vld [vmem:[%s1 + $0x1ac] sm:$0xf]
  %v250 = vld [vmem:[%s1 + $0x1b0] sm:$0xf]
  %v251 = vld [vmem:[%s1 + $0x1b4] sm:$0xf]
  %v252 = vld [vmem:[%s1 + $0x1b8] sm:$0xf]
  %v253 = vld [vmem:[%s1 + $0x1bc] sm:$0xf]
  %v254 = vld [vmem:[%s1 + $0x1c0] sm:$0xf]
  %v255 = vld [vmem:[%s1 + $0x1c4] sm:$0xf]
  %v256 = vld [vmem:[%s1 + $0x1c8] sm:$0xf]
  %v257 = vld [vmem:[%s1 + $0x1cc] sm:$0xf]
  %v258 = vld [vmem:[%s1 + $0x1d0] sm:$0xf]
  %v259 = vld [vmem:[%s1 + $0x1d4] sm:$0xf]
  %v260 = vld [vmem:[%s1 + $0x1d8] sm:$0xf]
  %v261 = vld [vmem:[%s1 + $0x1dc] sm:$0xf]
  %v262 = vld [vmem:[%s1 + $0x1e0] sm:$0xf]
  %v263 = vld [vmem:[%s1 + $0x1e4] sm:$0xf]
  %v264 = vld [vmem:[%s1 + $0x1e8] sm:$0xf]
  %v265 = vld [vmem:[%s1 + $0x1ec] sm:$0xf]
  %v266 = vld [vmem:[%s1 + $0x1f0] sm:$0xf]
  %v267 = vld [vmem:[%s1 + $0x1f4] sm:$0xf]
  %v268 = vld [vmem:[%s1 + $0x1f8] sm:$0xf]
  %v269 = vld [vmem:[%s1 + $0x1fc] sm:$0xf]
  %v270 = vld [vmem:[%s1 + $0x200] sm:$0xf]
  %v271 = vld [vmem:[%s1 + $0x204] sm:$0xf]
  %v272 = vld [vmem:[%s1 + $0x208] sm:$0xf]
  %v273 = vld [vmem:[%s1 + $0x20c] sm:$0xf]
  %v274 = vld [vmem:[%s1 + $0x210] sm:$0xf]
  %v275 = vld [vmem:[%s1 + $0x214] sm:$0xf]
  %v276 = vld [vmem:[%s1 + $0x218] sm:$0xf]
  %v277 = vld [vmem:[%s1 + $0x21c] sm:$0xf]
  %v278 = vld [vmem:[%s1 + $0x220] sm:$0xf]
  %v279 = vld [vmem:[%s1 + $0x224] sm:$0xf]
  %v280 = vld [vmem:[%s1 + $0x228] sm:$0xf]
  %v281 = vld [vmem:[%s1 + $0x22c] sm:$0xf]
  %v282 = vld [vmem:[%s1 + $0x230] sm:$0xf]
  %v283 = vld [vmem:[%s1 + $0x234] sm:$0xf]
  %v284 = vld [vmem:[%s1 + $0x238] sm:$0xf]
  %v285 = vld [vmem:[%s1 + $0x23c] sm:$0xf]
  %v286 = vld [vmem:[%s1 + $0x240] sm:$0xf]
  %v287 = vld [vmem:[%s1 + $0x244] sm:$0xf]
  %v288 = vld [vmem:[%s1 + $0x248] sm:$0xf]
  %v289 = vld [vmem:[%s1 + $0x24c] sm:$0xf]
  %v290 = vld [vmem:[%s1 + $0x250] sm:$0xf]
  %v291 = vld [vmem:[%s1 + $0x254] sm:$0xf]
  %v292 = vld [vmem:[%s1 + $0x258] sm:$0xf]
  %v293 = vld [vmem:[%s1 + $0x25c] sm:$0xf]
  %v294 = vld [vmem:[%s1 + $0x260] sm:$0xf]
  %v295 = vld [vmem:[%s1 + $0x264] sm:$0xf]
  %v296 = vld [vmem:[%s1 + $0x268] sm:$0xf]
  %v297 = vld [vmem:[%s1 + $0x26c] sm:$0xf]
  %v298 = vld [vmem:[%s1 + $0x270] sm:$0xf]
  %v299 = vld [vmem:[%s1 + $0x274] sm:$0xf]
  %v300 = vld [vmem:[%s1 + $0x278] sm:$0xf]
  %v301 = vld [vmem:[%s1 + $0x27c] sm:$0xf]
  %v302 = vld [vmem:[%s1 + $0x280] sm:$0xf]
  %v303 = vld [vmem:[%s1 + $0x284] sm:$0xf]
  %v304 = vld [vmem:[%s1 + $0x288] sm:$0xf]
  %v305 = vld [vmem:[%s1 + $0x28c] sm:$0xf]
  %v306 = vld [vmem:[%s1 + $0x290] sm:$0xf]
  %v307 = vld [vmem:[%s1 + $0x294] sm:$0xf]
  %v308 = vld [vmem:[%s1 + $0x298] sm:$0xf]
  %v309 = vld [vmem:[%s1 + $0x29c] sm:$0xf]
  %v310 = vld [vmem:[%s1 + $0x2a0] sm:$0xf]
  %v311 = vld [vmem:[%s1 + $0x2a4] sm:$0xf]
  %v312 = vld [vmem:[%s1 + $0x2a8] sm:$0xf]
  %v313 = vld [vmem:[%s1 + $0x2ac] sm:$0xf]
  %v314 = vld [vmem:[%s1 + $0x2b0] sm:$0xf]
  %v315 = vld [vmem:[%s1 + $0x2b4] sm:$0xf]
  %v316 = vld [vmem:[%s1 + $0x2b8] sm:$0xf]
  %v317 = vld [vmem:[%s1 + $0x2bc] sm:$0xf]
  %v318 = vld [vmem:[%s1 + $0x2c0] sm:$0xf]
  %v319 = vld [vmem:[%s1 + $0x2c4] sm:$0xf]
  %v320 = vld [vmem:[%s1 + $0x2c8] sm:$0xf]
  %v321 = vld [vmem:[%s1 + $0x2cc] sm:$0xf]
  %v322 = vld [vmem:[%s1 + $0x2d0] sm:$0xf]
  %v323 = vld [vmem:[%s1 + $0x2d4] sm:$0xf]
  %v324 = vld [vmem:[%s1 + $0x2d8] sm:$0xf]
  %v325 = vld [vmem:[%s1 + $0x2dc] sm:$0xf]
  %v326 = vld [vmem:[%s1 + $0x2e0] sm:$0xf]
  %v327 = vld [vmem:[%s1 + $0x2e4] sm:$0xf]
  %v328 = vld [vmem:[%s1 + $0x2e8] sm:$0xf]
  %v329 = vld [vmem:[%s1 + $0x2ec] sm:$0xf]
  %v330 = vld [vmem:[%s1 + $0x2f0] sm:$0xf]
  %v331 = vld [vmem:[%s1 + $0x2f4] sm:$0xf]
  %v332 = vld [vmem:[%s1 + $0x2f8] sm:$0xf]
  %v333 = vld [vmem:[%s1 + $0x2fc] sm:$0xf]
  %v334 = vld [vmem:[%s1 + $0x300] sm:$0xf]
  %v335 = vld [vmem:[%s1 + $0x304] sm:$0xf]
  %v336 = vld [vmem:[%s1 + $0x308] sm:$0xf]
  %v337 = vld [vmem:[%s1 + $0x30c] sm:$0xf]
  %v338 = vld [vmem:[%s1 + $0x310] sm:$0xf]
  %v339 = vld [vmem:[%s1 + $0x314] sm:$0xf]
  %v340 = vld [vmem:[%s1 + $0x318] sm:$0xf]
  %v341 = vld [vmem:[%s1 + $0x31c] sm:$0xf]
  %v342 = vld [vmem:[%s1 + $0x320] sm:$0xf]
  %v343 = vld [vmem:[%s1 + $0x324] sm:$0xf]
  %v344 = vld [vmem:[%s1 + $0x328] sm:$0xf]
  %v345 = vld [vmem:[%s1 + $0x32c] sm:$0xf]
  %v346 = vld [vmem:[%s1 + $0x330] sm:$0xf]
  %v347 = vld [vmem:[%s1 + $0x334] sm:$0xf]
  %v348 = vld [vmem:[%s1 + $0x338] sm:$0xf]
  %v349 = vld [vmem:[%s1 + $0x33c] sm:$0xf]
  %v350 = vld [vmem:[%s1 + $0x340] sm:$0xf]
  %v351 = vld [vmem:[%s1 + $0x344] sm:$0xf]
  %v352 = vld [vmem:[%s1 + $0x348] sm:$0xf]
  %v353 = vld [vmem:[%s1 + $0x34c] sm:$0xf]
  %v354 = vld [vmem:[%s1 + $0x350] sm:$0xf]
  %v355 = vld [vmem:[%s1 + $0x354] sm:$0xf]
  %v356 = vld [vmem:[%s1 + $0x358] sm:$0xf]
  %v357 = vld [vmem:[%s1 + $0x35c] sm:$0xf]
  %v358 = vld [vmem:[%s1 + $0x360] sm:$0xf]
  %v359 = vld [vmem:[%s1 + $0x364] sm:$0xf]
  %v360 = vld [vmem:[%s1 + $0x368] sm:$0xf]
  %v361 = vld [vmem:[%s1 + $0x36c] sm:$0xf]
  %v362 = vld [vmem:[%s1 + $0x370] sm:$0xf]
  %v363 = vld [vmem:[%s1 + $0x374] sm:$0xf]
  %v364 = vld [vmem:[%s1 + $0x378] sm:$0xf]
  %v365 = vld [vmem:[%s1 + $0x37c] sm:$0xf]
  %v366 = vld [vmem:[%s1 + $0x380] sm:$0xf]
  %v367 = vld [vmem:[%s1 + $0x384] sm:$0xf]
  %v368 = vld [vmem:[%s1 + $0x388] sm:$0xf]
  %v369 = vld [vmem:[%s1 + $0x38c] sm:$0xf]
  %v370 = vld [vmem:[%s1 + $0x390] sm:$0xf]
  %v371 = vld [vmem:[%s1 + $0x394] sm:$0xf]
  %v372 = vld [vmem:[%s1 + $0x398] sm:$0xf]
  %v373 = vld [vmem:[%s1 + $0x39c] sm:$0xf]
  %v374 = vld [vmem:[%s1 + $0x3a0] sm:$0xf]
  %v375 = vld [vmem:[%s1 + $0x3a4] sm:$0xf]
  %v376 = vld [vmem:[%s1 + $0x3a8] sm:$0xf]
  %v377 = vld [vmem:[%s1 + $0x3ac] sm:$0xf]
  %v378 = vld [vmem:[%s1 + $0x3b0] sm:$0xf]
  %v379 = vld [vmem:[%s1 + $0x3b4] sm:$0xf]
  %v380 = vld [vmem:[%s1 + $0x3b8] sm:$0xf]
  %v381 = vld [vmem:[%s1 + $0x3bc] sm:$0xf]
  %v382 = vld [vmem:[%s1 + $0x3c0] sm:$0xf]
  %v383 = vld [vmem:[%s1 + $0x3c4] sm:$0xf]
  %v384 = vld [vmem:[%s1 + $0x3c8] sm:$0xf]
  %v385 = vld [vmem:[%s1 + $0x3cc] sm:$0xf]
  %v386 = vld [vmem:[%s1 + $0x3d0] sm:$0xf]
  %v387 = vld [vmem:[%s1 + $0x3d4] sm:$0xf]
  %v388 = vld [vmem:[%s1 + $0x3d8] sm:$0xf]
  %v389 = vld [vmem:[%s1 + $0x3dc] sm:$0xf]
  %v390 = vld [vmem:[%s1 + $0x3e0] sm:$0xf]
  %v391 = vld [vmem:[%s1 + $0x3e4] sm:$0xf]
  %v392 = vld [vmem:[%s1 + $0x3e8] sm:$0xf]
  %v393 = vld [vmem:[%s1 + $0x3ec] sm:$0xf]
  %v394 = vld [vmem:[%s1 + $0x3f0] sm:$0xf]
  %v395 = vld [vmem:[%s1 + $0x3f4] sm:$0xf]
  %v396 = vld [vmem:[%s1 + $0x3f8] sm:$0xf]
  %v397 = vld [vmem:[%s1 + $0x3fc] sm:$0xf]
  %v526 = vunpack.c.l.b16 %v14
  %v527 = vunpack.c.h.b16 %v14
  %v528 = vunpack.c.l.b16 %v15
  %v529 = vunpack.c.h.b16 %v15
  %v530 = vunpack.c.l.b16 %v16
  %v531 = vunpack.c.h.b16 %v16
  %v532 = vunpack.c.l.b16 %v17
  %v533 = vunpack.c.h.b16 %v17
  %v534 = vunpack.c.l.b16 %v18
  %v535 = vunpack.c.h.b16 %v18
  %v536 = vunpack.c.l.b16 %v19
  %v537 = vunpack.c.h.b16 %v19
  %v538 = vunpack.c.l.b16 %v20
  %v539 = vunpack.c.h.b16 %v20
  %v540 = vunpack.c.l.b16 %v21
  %v541 = vunpack.c.h.b16 %v21
  %v542 = vunpack.c.l.b16 %v22
  %v543 = vunpack.c.h.b16 %v22
  %v544 = vunpack.c.l.b16 %v23
  %v545 = vunpack.c.h.b16 %v23
  %v546 = vunpack.c.l.b16 %v24
  %v547 = vunpack.c.h.b16 %v24
  %v548 = vunpack.c.l.b16 %v25
  %v549 = vunpack.c.h.b16 %v25
  %v550 = vunpack.c.l.b16 %v26
  %v551 = vunpack.c.h.b16 %v26
  %v552 = vunpack.c.l.b16 %v27
  %v553 = vunpack.c.h.b16 %v27
  %v554 = vunpack.c.l.b16 %v28
  %v555 = vunpack.c.h.b16 %v28
  %v556 = vunpack.c.l.b16 %v29
  %v557 = vunpack.c.h.b16 %v29
  %v558 = vunpack.c.l.b16 %v30
  %v559 = vunpack.c.h.b16 %v30
  %v560 = vunpack.c.l.b16 %v31
  %v561 = vunpack.c.h.b16 %v31
  %v562 = vunpack.c.l.b16 %v32
  %v563 = vunpack.c.h.b16 %v32
  %v564 = vunpack.c.l.b16 %v33
  %v565 = vunpack.c.h.b16 %v33
  %v566 = vunpack.c.l.b16 %v34
  %v567 = vunpack.c.h.b16 %v34
  %v568 = vunpack.c.l.b16 %v35
  %v569 = vunpack.c.h.b16 %v35
  %v570 = vunpack.c.l.b16 %v36
  %v571 = vunpack.c.h.b16 %v36
  %v572 = vunpack.c.l.b16 %v37
  %v573 = vunpack.c.h.b16 %v37
  %v574 = vunpack.c.l.b16 %v38
  %v575 = vunpack.c.h.b16 %v38
  %v576 = vunpack.c.l.b16 %v39
  %v577 = vunpack.c.h.b16 %v39
  %v578 = vunpack.c.l.b16 %v40
  %v579 = vunpack.c.h.b16 %v40
  %v580 = vunpack.c.l.b16 %v41
  %v581 = vunpack.c.h.b16 %v41
  %v582 = vunpack.c.l.b16 %v42
  %v583 = vunpack.c.h.b16 %v42
  %v584 = vunpack.c.l.b16 %v43
  %v585 = vunpack.c.h.b16 %v43
  %v586 = vunpack.c.l.b16 %v44
  %v587 = vunpack.c.h.b16 %v44
  %v588 = vunpack.c.l.b16 %v45
  %v589 = vunpack.c.h.b16 %v45
  %v590 = vunpack.c.l.b16 %v46
  %v591 = vunpack.c.h.b16 %v46
  %v592 = vunpack.c.l.b16 %v47
  %v593 = vunpack.c.h.b16 %v47
  %v594 = vunpack.c.l.b16 %v48
  %v595 = vunpack.c.h.b16 %v48
  %v596 = vunpack.c.l.b16 %v49
  %v597 = vunpack.c.h.b16 %v49
  %v598 = vunpack.c.l.b16 %v50
  %v599 = vunpack.c.h.b16 %v50
  %v600 = vunpack.c.l.b16 %v51
  %v601 = vunpack.c.h.b16 %v51
  %v602 = vunpack.c.l.b16 %v52
  %v603 = vunpack.c.h.b16 %v52
  %v604 = vunpack.c.l.b16 %v53
  %v605 = vunpack.c.h.b16 %v53
  %v606 = vunpack.c.l.b16 %v54
  %v607 = vunpack.c.h.b16 %v54
  %v608 = vunpack.c.l.b16 %v55
  %v609 = vunpack.c.h.b16 %v55
  %v610 = vunpack.c.l.b16 %v56
  %v611 = vunpack.c.h.b16 %v56
  %v612 = vunpack.c.l.b16 %v57
  %v613 = vunpack.c.h.b16 %v57
  %v614 = vunpack.c.l.b16 %v58
  %v615 = vunpack.c.h.b16 %v58
  %v616 = vunpack.c.l.b16 %v59
  %v617 = vunpack.c.h.b16 %v59
  %v618 = vunpack.c.l.b16 %v60
  %v619 = vunpack.c.h.b16 %v60
  %v620 = vunpack.c.l.b16 %v61
  %v621 = vunpack.c.h.b16 %v61
  %v622 = vunpack.c.l.b16 %v62
  %v623 = vunpack.c.h.b16 %v62
  %v624 = vunpack.c.l.b16 %v63
  %v625 = vunpack.c.h.b16 %v63
  %v626 = vunpack.c.l.b16 %v64
  %v627 = vunpack.c.h.b16 %v64
  %v628 = vunpack.c.l.b16 %v65
  %v629 = vunpack.c.h.b16 %v65
  %v630 = vunpack.c.l.b16 %v66
  %v631 = vunpack.c.h.b16 %v66
  %v632 = vunpack.c.l.b16 %v67
  %v633 = vunpack.c.h.b16 %v67
  %v634 = vunpack.c.l.b16 %v68
  %v635 = vunpack.c.h.b16 %v68
  %v636 = vunpack.c.l.b16 %v69
  %v637 = vunpack.c.h.b16 %v69
  %v638 = vunpack.c.l.b16 %v70
  %v639 = vunpack.c.h.b16 %v70
  %v640 = vunpack.c.l.b16 %v71
  %v641 = vunpack.c.h.b16 %v71
  %v642 = vunpack.c.l.b16 %v72
  %v643 = vunpack.c.h.b16 %v72
  %v644 = vunpack.c.l.b16 %v73
  %v645 = vunpack.c.h.b16 %v73
  %v646 = vunpack.c.l.b16 %v74
  %v647 = vunpack.c.h.b16 %v74
  %v648 = vunpack.c.l.b16 %v75
  %v649 = vunpack.c.h.b16 %v75
  %v650 = vunpack.c.l.b16 %v76
  %v651 = vunpack.c.h.b16 %v76
  %v652 = vunpack.c.l.b16 %v77
  %v653 = vunpack.c.h.b16 %v77
  %v654 = vunpack.c.l.b16 %v78
  %v655 = vunpack.c.h.b16 %v78
  %v656 = vunpack.c.l.b16 %v79
  %v657 = vunpack.c.h.b16 %v79
  %v658 = vunpack.c.l.b16 %v80
  %v659 = vunpack.c.h.b16 %v80
  %v660 = vunpack.c.l.b16 %v81
  %v661 = vunpack.c.h.b16 %v81
  %v662 = vunpack.c.l.b16 %v82
  %v663 = vunpack.c.h.b16 %v82
  %v664 = vunpack.c.l.b16 %v83
  %v665 = vunpack.c.h.b16 %v83
  %v666 = vunpack.c.l.b16 %v84
  %v667 = vunpack.c.h.b16 %v84
  %v668 = vunpack.c.l.b16 %v85
  %v669 = vunpack.c.h.b16 %v85
  %v670 = vunpack.c.l.b16 %v86
  %v671 = vunpack.c.h.b16 %v86
  %v672 = vunpack.c.l.b16 %v87
  %v673 = vunpack.c.h.b16 %v87
  %v674 = vunpack.c.l.b16 %v88
  %v675 = vunpack.c.h.b16 %v88
  %v676 = vunpack.c.l.b16 %v89
  %v677 = vunpack.c.h.b16 %v89
  %v678 = vunpack.c.l.b16 %v90
  %v679 = vunpack.c.h.b16 %v90
  %v680 = vunpack.c.l.b16 %v91
  %v681 = vunpack.c.h.b16 %v91
  %v682 = vunpack.c.l.b16 %v92
  %v683 = vunpack.c.h.b16 %v92
  %v684 = vunpack.c.l.b16 %v93
  %v685 = vunpack.c.h.b16 %v93
  %v686 = vunpack.c.l.b16 %v94
  %v687 = vunpack.c.h.b16 %v94
  %v688 = vunpack.c.l.b16 %v95
  %v689 = vunpack.c.h.b16 %v95
  %v690 = vunpack.c.l.b16 %v96
  %v691 = vunpack.c.h.b16 %v96
  %v692 = vunpack.c.l.b16 %v97
  %v693 = vunpack.c.h.b16 %v97
  %v694 = vunpack.c.l.b16 %v98
  %v695 = vunpack.c.h.b16 %v98
  %v696 = vunpack.c.l.b16 %v99
  %v697 = vunpack.c.h.b16 %v99
  %v698 = vunpack.c.l.b16 %v100
  %v699 = vunpack.c.h.b16 %v100
  %v700 = vunpack.c.l.b16 %v101
  %v701 = vunpack.c.h.b16 %v101
  %v702 = vunpack.c.l.b16 %v102
  %v703 = vunpack.c.h.b16 %v102
  %v704 = vunpack.c.l.b16 %v103
  %v705 = vunpack.c.h.b16 %v103
  %v706 = vunpack.c.l.b16 %v104
  %v707 = vunpack.c.h.b16 %v104
  %v708 = vunpack.c.l.b16 %v105
  %v709 = vunpack.c.h.b16 %v105
  %v710 = vunpack.c.l.b16 %v106
  %v711 = vunpack.c.h.b16 %v106
  %v712 = vunpack.c.l.b16 %v107
  %v713 = vunpack.c.h.b16 %v107
  %v714 = vunpack.c.l.b16 %v108
  %v715 = vunpack.c.h.b16 %v108
  %v716 = vunpack.c.l.b16 %v109
  %v717 = vunpack.c.h.b16 %v109
  %v718 = vunpack.c.l.b16 %v110
  %v719 = vunpack.c.h.b16 %v110
  %v720 = vunpack.c.l.b16 %v111
  %v721 = vunpack.c.h.b16 %v111
  %v722 = vunpack.c.l.b16 %v112
  %v723 = vunpack.c.h.b16 %v112
  %v724 = vunpack.c.l.b16 %v113
  %v725 = vunpack.c.h.b16 %v113
  %v726 = vunpack.c.l.b16 %v114
  %v727 = vunpack.c.h.b16 %v114
  %v728 = vunpack.c.l.b16 %v115
  %v729 = vunpack.c.h.b16 %v115
  %v730 = vunpack.c.l.b16 %v116
  %v731 = vunpack.c.h.b16 %v116
  %v732 = vunpack.c.l.b16 %v117
  %v733 = vunpack.c.h.b16 %v117
  %v734 = vunpack.c.l.b16 %v118
  %v735 = vunpack.c.h.b16 %v118
  %v736 = vunpack.c.l.b16 %v119
  %v737 = vunpack.c.h.b16 %v119
  %v738 = vunpack.c.l.b16 %v120
  %v739 = vunpack.c.h.b16 %v120
  %v740 = vunpack.c.l.b16 %v121
  %v741 = vunpack.c.h.b16 %v121
  %v742 = vunpack.c.l.b16 %v122
  %v743 = vunpack.c.h.b16 %v122
  %v744 = vunpack.c.l.b16 %v123
  %v745 = vunpack.c.h.b16 %v123
  %v746 = vunpack.c.l.b16 %v124
  %v747 = vunpack.c.h.b16 %v124
  %v748 = vunpack.c.l.b16 %v125
  %v749 = vunpack.c.h.b16 %v125
  %v750 = vunpack.c.l.b16 %v126
  %v751 = vunpack.c.h.b16 %v126
  %v752 = vunpack.c.l.b16 %v127
  %v753 = vunpack.c.h.b16 %v127
  %v754 = vunpack.c.l.b16 %v128
  %v755 = vunpack.c.h.b16 %v128
  %v756 = vunpack.c.l.b16 %v129
  %v757 = vunpack.c.h.b16 %v129
  %v758 = vunpack.c.l.b16 %v130
  %v759 = vunpack.c.h.b16 %v130
  %v760 = vunpack.c.l.b16 %v131
  %v761 = vunpack.c.h.b16 %v131
  %v762 = vunpack.c.l.b16 %v132
  %v763 = vunpack.c.h.b16 %v132
  %v764 = vunpack.c.l.b16 %v133
  %v765 = vunpack.c.h.b16 %v133
  %v766 = vunpack.c.l.b16 %v134
  %v767 = vunpack.c.h.b16 %v134
  %v768 = vunpack.c.l.b16 %v135
  %v769 = vunpack.c.h.b16 %v135
  %v770 = vunpack.c.l.b16 %v136
  %v771 = vunpack.c.h.b16 %v136
  %v772 = vunpack.c.l.b16 %v137
  %v773 = vunpack.c.h.b16 %v137
  %v774 = vunpack.c.l.b16 %v138
  %v775 = vunpack.c.h.b16 %v138
  %v776 = vunpack.c.l.b16 %v139
  %v777 = vunpack.c.h.b16 %v139
  %v778 = vunpack.c.l.b16 %v140
  %v779 = vunpack.c.h.b16 %v140
  %v780 = vunpack.c.l.b16 %v141
  %v781 = vunpack.c.h.b16 %v141
  %v782 = vpack.c.b16 %v542, %v526
  %v783 = vpack.c.b16 %v543, %v527
  %v784 = vpack.c.b16 %v544, %v528
  %v785 = vpack.c.b16 %v545, %v529
  %v786 = vpack.c.b16 %v546, %v530
  %v787 = vpack.c.b16 %v547, %v531
  %v788 = vpack.c.b16 %v548, %v532
  %v789 = vpack.c.b16 %v549, %v533
  %v790 = vpack.c.b16 %v550, %v534
  %v791 = vpack.c.b16 %v551, %v535
  %v792 = vpack.c.b16 %v552, %v536
  %v793 = vpack.c.b16 %v553, %v537
  %v794 = vpack.c.b16 %v554, %v538
  %v795 = vpack.c.b16 %v555, %v539
  %v796 = vpack.c.b16 %v556, %v540
  %v797 = vpack.c.b16 %v557, %v541
  %v798 = vpack.c.b16 %v574, %v558
  %v799 = vpack.c.b16 %v575, %v559
  %v800 = vpack.c.b16 %v576, %v560
  %v801 = vpack.c.b16 %v577, %v561
  %v802 = vpack.c.b16 %v578, %v562
  %v803 = vpack.c.b16 %v579, %v563
  %v804 = vpack.c.b16 %v580, %v564
  %v805 = vpack.c.b16 %v581, %v565
  %v806 = vpack.c.b16 %v582, %v566
  %v807 = vpack.c.b16 %v583, %v567
  %v808 = vpack.c.b16 %v584, %v568
  %v809 = vpack.c.b16 %v585, %v569
  %v810 = vpack.c.b16 %v586, %v570
  %v811 = vpack.c.b16 %v587, %v571
  %v812 = vpack.c.b16 %v588, %v572
  %v813 = vpack.c.b16 %v589, %v573
  %v814 = vpack.c.b16 %v606, %v590
  %v815 = vpack.c.b16 %v607, %v591
  %v816 = vpack.c.b16 %v608, %v592
  %v817 = vpack.c.b16 %v609, %v593
  %v818 = vpack.c.b16 %v610, %v594
  %v819 = vpack.c.b16 %v611, %v595
  %v820 = vpack.c.b16 %v612, %v596
  %v821 = vpack.c.b16 %v613, %v597
  %v822 = vpack.c.b16 %v614, %v598
  %v823 = vpack.c.b16 %v615, %v599
  %v824 = vpack.c.b16 %v616, %v600
  %v825 = vpack.c.b16 %v617, %v601
  %v826 = vpack.c.b16 %v618, %v602
  %v827 = vpack.c.b16 %v619, %v603
  %v828 = vpack.c.b16 %v620, %v604
  %v829 = vpack.c.b16 %v621, %v605
  %v830 = vpack.c.b16 %v638, %v622
  %v831 = vpack.c.b16 %v639, %v623
  %v832 = vpack.c.b16 %v640, %v624
  %v833 = vpack.c.b16 %v641, %v625
  %v834 = vpack.c.b16 %v642, %v626
  %v835 = vpack.c.b16 %v643, %v627
  %v836 = vpack.c.b16 %v644, %v628
  %v837 = vpack.c.b16 %v645, %v629
  %v838 = vpack.c.b16 %v646, %v630
  %v839 = vpack.c.b16 %v647, %v631
  %v840 = vpack.c.b16 %v648, %v632
  %v841 = vpack.c.b16 %v649, %v633
  %v842 = vpack.c.b16 %v650, %v634
  %v843 = vpack.c.b16 %v651, %v635
  %v844 = vpack.c.b16 %v652, %v636
  %v845 = vpack.c.b16 %v653, %v637
  %v846 = vpack.c.b16 %v670, %v654
  %v847 = vpack.c.b16 %v671, %v655
  %v848 = vpack.c.b16 %v672, %v656
  %v849 = vpack.c.b16 %v673, %v657
  %v850 = vpack.c.b16 %v674, %v658
  %v851 = vpack.c.b16 %v675, %v659
  %v852 = vpack.c.b16 %v676, %v660
  %v853 = vpack.c.b16 %v677, %v661
  %v854 = vpack.c.b16 %v678, %v662
  %v855 = vpack.c.b16 %v679, %v663
  %v856 = vpack.c.b16 %v680, %v664
  %v857 = vpack.c.b16 %v681, %v665
  %v858 = vpack.c.b16 %v682, %v666
  %v859 = vpack.c.b16 %v683, %v667
  %v860 = vpack.c.b16 %v684, %v668
  %v861 = vpack.c.b16 %v685, %v669
  %v862 = vpack.c.b16 %v702, %v686
  %v863 = vpack.c.b16 %v703, %v687
  %v864 = vpack.c.b16 %v704, %v688
  %v865 = vpack.c.b16 %v705, %v689
  %v866 = vpack.c.b16 %v706, %v690
  %v867 = vpack.c.b16 %v707, %v691
  %v868 = vpack.c.b16 %v708, %v692
  %v869 = vpack.c.b16 %v709, %v693
  %v870 = vpack.c.b16 %v710, %v694
  %v871 = vpack.c.b16 %v711, %v695
  %v872 = vpack.c.b16 %v712, %v696
  %v873 = vpack.c.b16 %v713, %v697
  %v874 = vpack.c.b16 %v714, %v698
  %v875 = vpack.c.b16 %v715, %v699
  %v876 = vpack.c.b16 %v716, %v700
  %v877 = vpack.c.b16 %v717, %v701
  %v878 = vpack.c.b16 %v734, %v718
  %v879 = vpack.c.b16 %v735, %v719
  %v880 = vpack.c.b16 %v736, %v720
  %v881 = vpack.c.b16 %v737, %v721
  %v882 = vpack.c.b16 %v738, %v722
  %v883 = vpack.c.b16 %v739, %v723
  %v884 = vpack.c.b16 %v740, %v724
  %v885 = vpack.c.b16 %v741, %v725
  %v886 = vpack.c.b16 %v742, %v726
  %v887 = vpack.c.b16 %v743, %v727
  %v888 = vpack.c.b16 %v744, %v728
  %v889 = vpack.c.b16 %v745, %v729
  %v890 = vpack.c.b16 %v746, %v730
  %v891 = vpack.c.b16 %v747, %v731
  %v892 = vpack.c.b16 %v748, %v732
  %v893 = vpack.c.b16 %v749, %v733
  %v894 = vpack.c.b16 %v766, %v750
  %v895 = vpack.c.b16 %v767, %v751
  %v896 = vpack.c.b16 %v768, %v752
  %v897 = vpack.c.b16 %v769, %v753
  %v898 = vpack.c.b16 %v770, %v754
  %v899 = vpack.c.b16 %v771, %v755
  %v900 = vpack.c.b16 %v772, %v756
  %v901 = vpack.c.b16 %v773, %v757
  %v902 = vpack.c.b16 %v774, %v758
  %v903 = vpack.c.b16 %v775, %v759
  %v904 = vpack.c.b16 %v776, %v760
  %v905 = vpack.c.b16 %v777, %v761
  %v906 = vpack.c.b16 %v778, %v762
  %v907 = vpack.c.b16 %v779, %v763
  %v908 = vpack.c.b16 %v780, %v764
  %v909 = vpack.c.b16 %v781, %v765
  %v1294 = vunpack.c.l.b16 %v142
  %v1295 = vunpack.c.l.b16 %v143
  %v1296 = vunpack.c.l.b16 %v144
  %v1297 = vunpack.c.l.b16 %v145
  %v1298 = vunpack.c.l.b16 %v146
  %v1299 = vunpack.c.l.b16 %v147
  %v1300 = vunpack.c.l.b16 %v148
  %v1301 = vunpack.c.l.b16 %v149
  %v1302 = vunpack.c.l.b16 %v150
  %v1303 = vunpack.c.l.b16 %v151
  %v1304 = vunpack.c.l.b16 %v152
  %v1305 = vunpack.c.l.b16 %v153
  %v1306 = vunpack.c.l.b16 %v154
  %v1307 = vunpack.c.l.b16 %v155
  %v1308 = vunpack.c.l.b16 %v156
  %v1309 = vunpack.c.l.b16 %v157
  %v1310 = vunpack.c.l.b16 %v158
  %v1311 = vunpack.c.l.b16 %v159
  %v1312 = vunpack.c.l.b16 %v160
  %v1313 = vunpack.c.l.b16 %v161
  %v1314 = vunpack.c.l.b16 %v162
  %v1315 = vunpack.c.l.b16 %v163
  %v1316 = vunpack.c.l.b16 %v164
  %v1317 = vunpack.c.l.b16 %v165
  %v1318 = vunpack.c.l.b16 %v166
  %v1319 = vunpack.c.l.b16 %v167
  %v1320 = vunpack.c.l.b16 %v168
  %v1321 = vunpack.c.l.b16 %v169
  %v1322 = vunpack.c.l.b16 %v170
  %v1323 = vunpack.c.l.b16 %v171
  %v1324 = vunpack.c.l.b16 %v172
  %v1325 = vunpack.c.l.b16 %v173
  %v1326 = vunpack.c.l.b16 %v174
  %v1327 = vunpack.c.l.b16 %v175
  %v1328 = vunpack.c.l.b16 %v176
  %v1329 = vunpack.c.l.b16 %v177
  %v1330 = vunpack.c.l.b16 %v178
  %v1331 = vunpack.c.l.b16 %v179
  %v1332 = vunpack.c.l.b16 %v180
  %v1333 = vunpack.c.l.b16 %v181
  %v1334 = vunpack.c.l.b16 %v182
  %v1335 = vunpack.c.l.b16 %v183
  %v1336 = vunpack.c.l.b16 %v184
  %v1337 = vunpack.c.l.b16 %v185
  %v1338 = vunpack.c.l.b16 %v186
  %v1339 = vunpack.c.l.b16 %v187
  %v1340 = vunpack.c.l.b16 %v188
  %v1341 = vunpack.c.l.b16 %v189
  %v1342 = vunpack.c.l.b16 %v190
  %v1343 = vunpack.c.l.b16 %v191
  %v1344 = vunpack.c.l.b16 %v192
  %v1345 = vunpack.c.l.b16 %v193
  %v1346 = vunpack.c.l.b16 %v194
  %v1347 = vunpack.c.l.b16 %v195
  %v1348 = vunpack.c.l.b16 %v196
  %v1349 = vunpack.c.l.b16 %v197
  %v1350 = vunpack.c.l.b16 %v198
  %v1351 = vunpack.c.l.b16 %v199
  %v1352 = vunpack.c.l.b16 %v200
  %v1353 = vunpack.c.l.b16 %v201
  %v1354 = vunpack.c.l.b16 %v202
  %v1355 = vunpack.c.l.b16 %v203
  %v1356 = vunpack.c.l.b16 %v204
  %v1357 = vunpack.c.l.b16 %v205
  %v1358 = vunpack.c.l.b16 %v206
  %v1359 = vunpack.c.l.b16 %v207
  %v1360 = vunpack.c.l.b16 %v208
  %v1361 = vunpack.c.l.b16 %v209
  %v1362 = vunpack.c.l.b16 %v210
  %v1363 = vunpack.c.l.b16 %v211
  %v1364 = vunpack.c.l.b16 %v212
  %v1365 = vunpack.c.l.b16 %v213
  %v1366 = vunpack.c.l.b16 %v214
  %v1367 = vunpack.c.l.b16 %v215
  %v1368 = vunpack.c.l.b16 %v216
  %v1369 = vunpack.c.l.b16 %v217
  %v1370 = vunpack.c.l.b16 %v218
  %v1371 = vunpack.c.l.b16 %v219
  %v1372 = vunpack.c.l.b16 %v220
  %v1373 = vunpack.c.l.b16 %v221
  %v1374 = vunpack.c.l.b16 %v222
  %v1375 = vunpack.c.l.b16 %v223
  %v1376 = vunpack.c.l.b16 %v224
  %v1377 = vunpack.c.l.b16 %v225
  %v1378 = vunpack.c.l.b16 %v226
  %v1379 = vunpack.c.l.b16 %v227
  %v1380 = vunpack.c.l.b16 %v228
  %v1381 = vunpack.c.l.b16 %v229
  %v1382 = vunpack.c.l.b16 %v230
  %v1383 = vunpack.c.l.b16 %v231
  %v1384 = vunpack.c.l.b16 %v232
  %v1385 = vunpack.c.l.b16 %v233
  %v1386 = vunpack.c.l.b16 %v234
  %v1387 = vunpack.c.l.b16 %v235
  %v1388 = vunpack.c.l.b16 %v236
  %v1389 = vunpack.c.l.b16 %v237
  %v1390 = vunpack.c.l.b16 %v238
  %v1391 = vunpack.c.l.b16 %v239
  %v1392 = vunpack.c.l.b16 %v240
  %v1393 = vunpack.c.l.b16 %v241
  %v1394 = vunpack.c.l.b16 %v242
  %v1395 = vunpack.c.l.b16 %v243
  %v1396 = vunpack.c.l.b16 %v244
  %v1397 = vunpack.c.l.b16 %v245
  %v1398 = vunpack.c.l.b16 %v246
  %v1399 = vunpack.c.l.b16 %v247
  %v1400 = vunpack.c.l.b16 %v248
  %v1401 = vunpack.c.l.b16 %v249
  %v1402 = vunpack.c.l.b16 %v250
  %v1403 = vunpack.c.l.b16 %v251
  %v1404 = vunpack.c.l.b16 %v252
  %v1405 = vunpack.c.l.b16 %v253
  %v1406 = vunpack.c.l.b16 %v254
  %v1407 = vunpack.c.l.b16 %v255
  %v1408 = vunpack.c.l.b16 %v256
  %v1409 = vunpack.c.l.b16 %v257
  %v1410 = vunpack.c.l.b16 %v258
  %v1411 = vunpack.c.l.b16 %v259
  %v1412 = vunpack.c.l.b16 %v260
  %v1413 = vunpack.c.l.b16 %v261
  %v1414 = vunpack.c.l.b16 %v262
  %v1415 = vunpack.c.l.b16 %v263
  %v1416 = vunpack.c.l.b16 %v264
  %v1417 = vunpack.c.l.b16 %v265
  %v1418 = vunpack.c.l.b16 %v266
  %v1419 = vunpack.c.l.b16 %v267
  %v1420 = vunpack.c.l.b16 %v268
  %v1421 = vunpack.c.l.b16 %v269
  %v1422 = vunpack.c.l.b16 %v270
  %v1423 = vunpack.c.l.b16 %v271
  %v1424 = vunpack.c.l.b16 %v272
  %v1425 = vunpack.c.l.b16 %v273
  %v1426 = vunpack.c.l.b16 %v274
  %v1427 = vunpack.c.l.b16 %v275
  %v1428 = vunpack.c.l.b16 %v276
  %v1429 = vunpack.c.l.b16 %v277
  %v1430 = vunpack.c.l.b16 %v278
  %v1431 = vunpack.c.l.b16 %v279
  %v1432 = vunpack.c.l.b16 %v280
  %v1433 = vunpack.c.l.b16 %v281
  %v1434 = vunpack.c.l.b16 %v282
  %v1435 = vunpack.c.l.b16 %v283
  %v1436 = vunpack.c.l.b16 %v284
  %v1437 = vunpack.c.l.b16 %v285
  %v1438 = vunpack.c.l.b16 %v286
  %v1439 = vunpack.c.l.b16 %v287
  %v1440 = vunpack.c.l.b16 %v288
  %v1441 = vunpack.c.l.b16 %v289
  %v1442 = vunpack.c.l.b16 %v290
  %v1443 = vunpack.c.l.b16 %v291
  %v1444 = vunpack.c.l.b16 %v292
  %v1445 = vunpack.c.l.b16 %v293
  %v1446 = vunpack.c.l.b16 %v294
  %v1447 = vunpack.c.l.b16 %v295
  %v1448 = vunpack.c.l.b16 %v296
  %v1449 = vunpack.c.l.b16 %v297
  %v1450 = vunpack.c.l.b16 %v298
  %v1451 = vunpack.c.l.b16 %v299
  %v1452 = vunpack.c.l.b16 %v300
  %v1453 = vunpack.c.l.b16 %v301
  %v1454 = vunpack.c.l.b16 %v302
  %v1455 = vunpack.c.l.b16 %v303
  %v1456 = vunpack.c.l.b16 %v304
  %v1457 = vunpack.c.l.b16 %v305
  %v1458 = vunpack.c.l.b16 %v306
  %v1459 = vunpack.c.l.b16 %v307
  %v1460 = vunpack.c.l.b16 %v308
  %v1461 = vunpack.c.l.b16 %v309
  %v1462 = vunpack.c.l.b16 %v310
  %v1463 = vunpack.c.l.b16 %v311
  %v1464 = vunpack.c.l.b16 %v312
  %v1465 = vunpack.c.l.b16 %v313
  %v1466 = vunpack.c.l.b16 %v314
  %v1467 = vunpack.c.l.b16 %v315
  %v1468 = vunpack.c.l.b16 %v316
  %v1469 = vunpack.c.l.b16 %v317
  %v1470 = vunpack.c.l.b16 %v318
  %v1471 = vunpack.c.l.b16 %v319
  %v1472 = vunpack.c.l.b16 %v320
  %v1473 = vunpack.c.l.b16 %v321
  %v1474 = vunpack.c.l.b16 %v322
  %v1475 = vunpack.c.l.b16 %v323
  %v1476 = vunpack.c.l.b16 %v324
  %v1477 = vunpack.c.l.b16 %v325
  %v1478 = vunpack.c.l.b16 %v326
  %v1479 = vunpack.c.l.b16 %v327
  %v1480 = vunpack.c.l.b16 %v328
  %v1481 = vunpack.c.l.b16 %v329
  %v1482 = vunpack.c.l.b16 %v330
  %v1483 = vunpack.c.l.b16 %v331
  %v1484 = vunpack.c.l.b16 %v332
  %v1485 = vunpack.c.l.b16 %v333
  %v1486 = vunpack.c.l.b16 %v334
  %v1487 = vunpack.c.l.b16 %v335
  %v1488 = vunpack.c.l.b16 %v336
  %v1489 = vunpack.c.l.b16 %v337
  %v1490 = vunpack.c.l.b16 %v338
  %v1491 = vunpack.c.l.b16 %v339
  %v1492 = vunpack.c.l.b16 %v340
  %v1493 = vunpack.c.l.b16 %v341
  %v1494 = vunpack.c.l.b16 %v342
  %v1495 = vunpack.c.l.b16 %v343
  %v1496 = vunpack.c.l.b16 %v344
  %v1497 = vunpack.c.l.b16 %v345
  %v1498 = vunpack.c.l.b16 %v346
  %v1499 = vunpack.c.l.b16 %v347
  %v1500 = vunpack.c.l.b16 %v348
  %v1501 = vunpack.c.l.b16 %v349
  %v1502 = vunpack.c.l.b16 %v350
  %v1503 = vunpack.c.l.b16 %v351
  %v1504 = vunpack.c.l.b16 %v352
  %v1505 = vunpack.c.l.b16 %v353
  %v1506 = vunpack.c.l.b16 %v354
  %v1507 = vunpack.c.l.b16 %v355
  %v1508 = vunpack.c.l.b16 %v356
  %v1509 = vunpack.c.l.b16 %v357
  %v1510 = vunpack.c.l.b16 %v358
  %v1511 = vunpack.c.l.b16 %v359
  %v1512 = vunpack.c.l.b16 %v360
  %v1513 = vunpack.c.l.b16 %v361
  %v1514 = vunpack.c.l.b16 %v362
  %v1515 = vunpack.c.l.b16 %v363
  %v1516 = vunpack.c.l.b16 %v364
  %v1517 = vunpack.c.l.b16 %v365
  %v1518 = vunpack.c.l.b16 %v366
  %v1519 = vunpack.c.l.b16 %v367
  %v1520 = vunpack.c.l.b16 %v368
  %v1521 = vunpack.c.l.b16 %v369
  %v1522 = vunpack.c.l.b16 %v370
  %v1523 = vunpack.c.l.b16 %v371
  %v1524 = vunpack.c.l.b16 %v372
  %v1525 = vunpack.c.l.b16 %v373
  %v1526 = vunpack.c.l.b16 %v374
  %v1527 = vunpack.c.l.b16 %v375
  %v1528 = vunpack.c.l.b16 %v376
  %v1529 = vunpack.c.l.b16 %v377
  %v1530 = vunpack.c.l.b16 %v378
  %v1531 = vunpack.c.l.b16 %v379
  %v1532 = vunpack.c.l.b16 %v380
  %v1533 = vunpack.c.l.b16 %v381
  %v1534 = vunpack.c.l.b16 %v382
  %v1535 = vunpack.c.l.b16 %v383
  %v1536 = vunpack.c.l.b16 %v384
  %v1537 = vunpack.c.l.b16 %v385
  %v1538 = vunpack.c.l.b16 %v386
  %v1539 = vunpack.c.l.b16 %v387
  %v1540 = vunpack.c.l.b16 %v388
  %v1541 = vunpack.c.l.b16 %v389
  %v1542 = vunpack.c.l.b16 %v390
  %v1543 = vunpack.c.l.b16 %v391
  %v1544 = vunpack.c.l.b16 %v392
  %v1545 = vunpack.c.l.b16 %v393
  %v1546 = vunpack.c.l.b16 %v394
  %v1547 = vunpack.c.l.b16 %v395
  %v1548 = vunpack.c.l.b16 %v396
  %v1549 = vunpack.c.l.b16 %v397
  %v1550 = vpack.c.b16 %v1295, %v1294
  %v1551 = vpack.c.b16 %v1297, %v1296
  %v1552 = vpack.c.b16 %v1299, %v1298
  %v1553 = vpack.c.b16 %v1301, %v1300
  %v1554 = vpack.c.b16 %v1303, %v1302
  %v1555 = vpack.c.b16 %v1305, %v1304
  %v1556 = vpack.c.b16 %v1307, %v1306
  %v1557 = vpack.c.b16 %v1309, %v1308
  %v1558 = vpack.c.b16 %v1311, %v1310
  %v1559 = vpack.c.b16 %v1313, %v1312
  %v1560 = vpack.c.b16 %v1315, %v1314
  %v1561 = vpack.c.b16 %v1317, %v1316
  %v1562 = vpack.c.b16 %v1319, %v1318
  %v1563 = vpack.c.b16 %v1321, %v1320
  %v1564 = vpack.c.b16 %v1323, %v1322
  %v1565 = vpack.c.b16 %v1325, %v1324
  %v1566 = vpack.c.b16 %v1327, %v1326
  %v1567 = vpack.c.b16 %v1329, %v1328
  %v1568 = vpack.c.b16 %v1331, %v1330
  %v1569 = vpack.c.b16 %v1333, %v1332
  %v1570 = vpack.c.b16 %v1335, %v1334
  %v1571 = vpack.c.b16 %v1337, %v1336
  %v1572 = vpack.c.b16 %v1339, %v1338
  %v1573 = vpack.c.b16 %v1341, %v1340
  %v1574 = vpack.c.b16 %v1343, %v1342
  %v1575 = vpack.c.b16 %v1345, %v1344
  %v1576 = vpack.c.b16 %v1347, %v1346
  %v1577 = vpack.c.b16 %v1349, %v1348
  %v1578 = vpack.c.b16 %v1351, %v1350
  %v1579 = vpack.c.b16 %v1353, %v1352
  %v1580 = vpack.c.b16 %v1355, %v1354
  %v1581 = vpack.c.b16 %v1357, %v1356
  %v1582 = vpack.c.b16 %v1359, %v1358
  %v1583 = vpack.c.b16 %v1361, %v1360
  %v1584 = vpack.c.b16 %v1363, %v1362
  %v1585 = vpack.c.b16 %v1365, %v1364
  %v1586 = vpack.c.b16 %v1367, %v1366
  %v1587 = vpack.c.b16 %v1369, %v1368
  %v1588 = vpack.c.b16 %v1371, %v1370
  %v1589 = vpack.c.b16 %v1373, %v1372
  %v1590 = vpack.c.b16 %v1375, %v1374
  %v1591 = vpack.c.b16 %v1377, %v1376
  %v1592 = vpack.c.b16 %v1379, %v1378
  %v1593 = vpack.c.b16 %v1381, %v1380
  %v1594 = vpack.c.b16 %v1383, %v1382
  %v1595 = vpack.c.b16 %v1385, %v1384
  %v1596 = vpack.c.b16 %v1387, %v1386
  %v1597 = vpack.c.b16 %v1389, %v1388
  %v1598 = vpack.c.b16 %v1391, %v1390
  %v1599 = vpack.c.b16 %v1393, %v1392
  %v1600 = vpack.c.b16 %v1395, %v1394
  %v1601 = vpack.c.b16 %v1397, %v1396
  %v1602 = vpack.c.b16 %v1399, %v1398
  %v1603 = vpack.c.b16 %v1401, %v1400
  %v1604 = vpack.c.b16 %v1403, %v1402
  %v1605 = vpack.c.b16 %v1405, %v1404
  %v1606 = vpack.c.b16 %v1407, %v1406
  %v1607 = vpack.c.b16 %v1409, %v1408
  %v1608 = vpack.c.b16 %v1411, %v1410
  %v1609 = vpack.c.b16 %v1413, %v1412
  %v1610 = vpack.c.b16 %v1415, %v1414
  %v1611 = vpack.c.b16 %v1417, %v1416
  %v1612 = vpack.c.b16 %v1419, %v1418
  %v1613 = vpack.c.b16 %v1421, %v1420
  %v1614 = vpack.c.b16 %v1423, %v1422
  %v1615 = vpack.c.b16 %v1425, %v1424
  %v1616 = vpack.c.b16 %v1427, %v1426
  %v1617 = vpack.c.b16 %v1429, %v1428
  %v1618 = vpack.c.b16 %v1431, %v1430
  %v1619 = vpack.c.b16 %v1433, %v1432
  %v1620 = vpack.c.b16 %v1435, %v1434
  %v1621 = vpack.c.b16 %v1437, %v1436
  %v1622 = vpack.c.b16 %v1439, %v1438
  %v1623 = vpack.c.b16 %v1441, %v1440
  %v1624 = vpack.c.b16 %v1443, %v1442
  %v1625 = vpack.c.b16 %v1445, %v1444
  %v1626 = vpack.c.b16 %v1447, %v1446
  %v1627 = vpack.c.b16 %v1449, %v1448
  %v1628 = vpack.c.b16 %v1451, %v1450
  %v1629 = vpack.c.b16 %v1453, %v1452
  %v1630 = vpack.c.b16 %v1455, %v1454
  %v1631 = vpack.c.b16 %v1457, %v1456
  %v1632 = vpack.c.b16 %v1459, %v1458
  %v1633 = vpack.c.b16 %v1461, %v1460
  %v1634 = vpack.c.b16 %v1463, %v1462
  %v1635 = vpack.c.b16 %v1465, %v1464
  %v1636 = vpack.c.b16 %v1467, %v1466
  %v1637 = vpack.c.b16 %v1469, %v1468
  %v1638 = vpack.c.b16 %v1471, %v1470
  %v1639 = vpack.c.b16 %v1473, %v1472
  %v1640 = vpack.c.b16 %v1475, %v1474
  %v1641 = vpack.c.b16 %v1477, %v1476
  %v1642 = vpack.c.b16 %v1479, %v1478
  %v1643 = vpack.c.b16 %v1481, %v1480
  %v1644 = vpack.c.b16 %v1483, %v1482
  %v1645 = vpack.c.b16 %v1485, %v1484
  %v1646 = vpack.c.b16 %v1487, %v1486
  %v1647 = vpack.c.b16 %v1489, %v1488
  %v1648 = vpack.c.b16 %v1491, %v1490
  %v1649 = vpack.c.b16 %v1493, %v1492
  %v1650 = vpack.c.b16 %v1495, %v1494
  %v1651 = vpack.c.b16 %v1497, %v1496
  %v1652 = vpack.c.b16 %v1499, %v1498
  %v1653 = vpack.c.b16 %v1501, %v1500
  %v1654 = vpack.c.b16 %v1503, %v1502
  %v1655 = vpack.c.b16 %v1505, %v1504
  %v1656 = vpack.c.b16 %v1507, %v1506
  %v1657 = vpack.c.b16 %v1509, %v1508
  %v1658 = vpack.c.b16 %v1511, %v1510
  %v1659 = vpack.c.b16 %v1513, %v1512
  %v1660 = vpack.c.b16 %v1515, %v1514
  %v1661 = vpack.c.b16 %v1517, %v1516
  %v1662 = vpack.c.b16 %v1519, %v1518
  %v1663 = vpack.c.b16 %v1521, %v1520
  %v1664 = vpack.c.b16 %v1523, %v1522
  %v1665 = vpack.c.b16 %v1525, %v1524
  %v1666 = vpack.c.b16 %v1527, %v1526
  %v1667 = vpack.c.b16 %v1529, %v1528
  %v1668 = vpack.c.b16 %v1531, %v1530
  %v1669 = vpack.c.b16 %v1533, %v1532
  %v1670 = vpack.c.b16 %v1535, %v1534
  %v1671 = vpack.c.b16 %v1537, %v1536
  %v1672 = vpack.c.b16 %v1539, %v1538
  %v1673 = vpack.c.b16 %v1541, %v1540
  %v1674 = vpack.c.b16 %v1543, %v1542
  %v1675 = vpack.c.b16 %v1545, %v1544
  %v1676 = vpack.c.b16 %v1547, %v1546
  %v1677 = vpack.c.b16 %v1549, %v1548
  %1806 = vmatprep.subr.bf16.mxu0 0
  %1807 = vmatpush1.bf16.msra.mxu0 %v1550
  %1808 = vmatprep.subr.bf16.mxu0 0
  %1809 = vmatpush1.bf16.msra.mxu0 %v1551
  %1810 = vmatprep.subr.bf16.mxu0 0
  %1811 = vmatpush1.bf16.msra.mxu0 %v1552
  %1812 = vmatprep.subr.bf16.mxu0 0
  %1813 = vmatpush1.bf16.msra.mxu0 %v1553
  %1814 = vmatprep.subr.bf16.mxu0 0
  %1815 = vmatpush1.bf16.msra.mxu0 %v1554
  %1816 = vmatprep.subr.bf16.mxu0 0
  %1817 = vmatpush1.bf16.msra.mxu0 %v1555
  %1818 = vmatprep.subr.bf16.mxu0 0
  %1819 = vmatpush1.bf16.msra.mxu0 %v1556
  %1820 = vmatprep.subr.bf16.mxu0 0
  %1821 = vmatpush1.bf16.msra.mxu0 %v1557
  %1822 = vmatprep.subr.bf16.mxu0 0
  %1823 = vmatpush1.bf16.msra.mxu0 %v1558
  %1824 = vmatprep.subr.bf16.mxu0 0
  %1825 = vmatpush1.bf16.msra.mxu0 %v1559
  %1826 = vmatprep.subr.bf16.mxu0 0
  %1827 = vmatpush1.bf16.msra.mxu0 %v1560
  %1828 = vmatprep.subr.bf16.mxu0 0
  %1829 = vmatpush1.bf16.msra.mxu0 %v1561
  %1830 = vmatprep.subr.bf16.mxu0 0
  %1831 = vmatpush1.bf16.msra.mxu0 %v1562
  %1832 = vmatprep.subr.bf16.mxu0 0
  %1833 = vmatpush1.bf16.msra.mxu0 %v1563
  %1834 = vmatprep.subr.bf16.mxu0 0
  %1835 = vmatpush1.bf16.msra.mxu0 %v1564
  %1836 = vmatprep.subr.bf16.mxu0 0
  %1837 = vmatpush1.bf16.msra.mxu0 %v1565
  %1838 = vmatprep.mubr.bf16.mxu0 %v783
  %1839 = vmatmul.mubr.bf16.gmra.mrb[0].mxu0 %v782
  %v1840 = vpop.f32.mrb[0].mxu0
  %v1841 = vadd.f32 0.0, %v1840
  %v1842 = vpop.f32.mrb[0].mxu0
  %v1843 = vpop.f32.mrb[0].mxu0
  %v1844 = vadd.f32 0.0, %v1843
  %v1845 = vpop.f32.mrb[0].mxu0
  %1846 = vmatprep.mubr.bf16.mxu0 %v799
  %1847 = vmatmul.mubr.bf16.gmra.mrb[0].mxu0 %v798
  %v1848 = vpop.f32.mrb[0].mxu0
  %v1849 = vadd.f32 0.0, %v1848
  %v1850 = vpop.f32.mrb[0].mxu0
  %v1851 = vpop.f32.mrb[0].mxu0
  %v1852 = vadd.f32 0.0, %v1851
  %v1853 = vpop.f32.mrb[0].mxu0
  %1854 = vmatprep.mubr.bf16.mxu0 %v815
  %1855 = vmatmul.mubr.bf16.gmra.mrb[0].mxu0 %v814
  %v1856 = vpop.f32.mrb[0].mxu0
  %v1857 = vadd.f32 0.0, %v1856
  %v1858 = vpop.f32.mrb[0].mxu0
  %v1859 = vpop.f32.mrb[0].mxu0
  %v1860 = vadd.f32 0.0, %v1859
  %v1861 = vpop.f32.mrb[0].mxu0
  %1862 = vmatprep.mubr.bf16.mxu0 %v831
  %1863 = vmatmul.mubr.bf16.gmra.mrb[0].mxu0 %v830
  %v1864 = vpop.f32.mrb[0].mxu0
  %v1865 = vadd.f32 0.0, %v1864
  %v1866 = vpop.f32.mrb[0].mxu0
  %v1867 = vpop.f32.mrb[0].mxu0
  %v1868 = vadd.f32 0.0, %v1867
  %v1869 = vpop.f32.mrb[0].mxu0
  %1870 = vmatprep.mubr.bf16.mxu0 %v847
  %1871 = vmatmul.mubr.bf16.gmra.mrb[0].mxu0 %v846
  %v1872 = vpop.f32.mrb[0].mxu0
  %v1873 = vadd.f32 0.0, %v1872
  %v1874 = vpop.f32.mrb[0].mxu0
  %v1875 = vpop.f32.mrb[0].mxu0
  %v1876 = vadd.f32 0.0, %v1875
  %v1877 = vpop.f32.mrb[0].mxu0
  %1878 = vmatprep.mubr.bf16.mxu0 %v863
  %1879 = vmatmul.mubr.bf16.gmra.mrb[0].mxu0 %v862
  %v1880 = vpop.f32.mrb[0].mxu0
  %v1881 = vadd.f32 0.0, %v1880
  %v1882 = vpop.f32.mrb[0].mxu0
  %v1883 = vpop.f32.mrb[0].mxu0
  %v1884 = vadd.f32 0.0, %v1883
  %v1885 = vpop.f32.mrb[0].mxu0
  %1886 = vmatprep.mubr.bf16.mxu0 %v879
  %1887 = vmatmul.mubr.bf16.gmra.mrb[0].mxu0 %v878
  %v1888 = vpop.f32.mrb[0].mxu0
  %v1889 = vadd.f32 0.0, %v1888
  %v1890 = vpop.f32.mrb[0].mxu0
  %v1891 = vpop.f32.mrb[0].mxu0
  %v1892 = vadd.f32 0.0, %v1891
  %v1893 = vpop.f32.mrb[0].mxu0
  %1894 = vmatprep.mubr.bf16.mxu0 %v895
  %1895 = vmatmul.mubr.bf16.gmra.mrb[0].mxu0 %v894
  %v1896 = vpop.f32.mrb[0].mxu0
  %v1897 = vadd.f32 0.0, %v1896
  %v1898 = vpop.f32.mrb[0].mxu0
  %v1899 = vpop.f32.mrb[0].mxu0
  %v1900 = vadd.f32 0.0, %v1899
  %v1901 = vpop.f32.mrb[0].mxu0
  %1902 = vdwg.mxu0
  %1903 = vmatprep.subr.bf16.mxu0 0
  %1904 = vmatpush1.bf16.msra.mxu0 %v1566
  %1905 = vmatprep.subr.bf16.mxu0 0
  %1906 = vmatpush1.bf16.msra.mxu0 %v1567
  %1907 = vmatprep.subr.bf16.mxu0 0
  %1908 = vmatpush1.bf16.msra.mxu0 %v1568
  %1909 = vmatprep.subr.bf16.mxu0 0
  %1910 = vmatpush1.bf16.msra.mxu0 %v1569
  %1911 = vmatprep.subr.bf16.mxu0 0
  %1912 = vmatpush1.bf16.msra.mxu0 %v1570
  %1913 = vmatprep.subr.bf16.mxu0 0
  %1914 = vmatpush1.bf16.msra.mxu0 %v1571
  %1915 = vmatprep.subr.bf16.mxu0 0
  %1916 = vmatpush1.bf16.msra.mxu0 %v1572
  %1917 = vmatprep.subr.bf16.mxu0 0
  %1918 = vmatpush1.bf16.msra.mxu0 %v1573
  %1919 = vmatprep.subr.bf16.mxu0 0
  %1920 = vmatpush1.bf16.msra.mxu0 %v1574
  %1921 = vmatprep.subr.bf16.mxu0 0
  %1922 = vmatpush1.bf16.msra.mxu0 %v1575
  %1923 = vmatprep.subr.bf16.mxu0 0
  %1924 = vmatpush1.bf16.msra.mxu0 %v1576
  %1925 = vmatprep.subr.bf16.mxu0 0
  %1926 = vmatpush1.bf16.msra.mxu0 %v1577
  %1927 = vmatprep.subr.bf16.mxu0 0
  %1928 = vmatpush1.bf16.msra.mxu0 %v1578
  %1929 = vmatprep.subr.bf16.mxu0 0
  %1930 = vmatpush1.bf16.msra.mxu0 %v1579
  %1931 = vmatprep.subr.bf16.mxu0 0
  %1932 = vmatpush1.bf16.msra.mxu0 %v1580
  %1933 = vmatprep.subr.bf16.mxu0 0
  %1934 = vmatpush1.bf16.msra.mxu0 %v1581
  %1935 = vmatprep.mubr.bf16.mxu0 %v785
  %1936 = vmatmul.mubr.bf16.gmra.mrb[0].mxu0 %v784
  %v1937 = vpop.f32.mrb[0].mxu0
  %v1938 = vadd.f32 %v1841, %v1937
  %v1939 = vpop.f32.mrb[0].mxu0
  %v1940 = vpop.f32.mrb[0].mxu0
  %v1941 = vadd.f32 %v1844, %v1940
  %v1942 = vpop.f32.mrb[0].mxu0
  %1943 = vmatprep.mubr.bf16.mxu0 %v801
  %1944 = vmatmul.mubr.bf16.gmra.mrb[0].mxu0 %v800
  %v1945 = vpop.f32.mrb[0].mxu0
  %v1946 = vadd.f32 %v1849, %v1945
  %v1947 = vpop.f32.mrb[0].mxu0
  %v1948 = vpop.f32.mrb[0].mxu0
  %v1949 = vadd.f32 %v1852, %v1948
  %v1950 = vpop.f32.mrb[0].mxu0
  %1951 = vmatprep.mubr.bf16.mxu0 %v817
  %1952 = vmatmul.mubr.bf16.gmra.mrb[0].mxu0 %v816
  %v1953 = vpop.f32.mrb[0].mxu0
  %v1954 = vadd.f32 %v1857, %v1953
  %v1955 = vpop.f32.mrb[0].mxu0
  %v1956 = vpop.f32.mrb[0].mxu0
  %v1957 = vadd.f32 %v1860, %v1956
  %v1958 = vpop.f32.mrb[0].mxu0
  %1959 = vmatprep.mubr.bf16.mxu0 %v833
  %1960 = vmatmul.mubr.bf16.gmra.mrb[0].mxu0 %v832
  %v1961 = vpop.f32.mrb[0].mxu0
  %v1962 = vadd.f32 %v1865, %v1961
  %v1963 = vpop.f32.mrb[0].mxu0
  %v1964 = vpop.f32.mrb[0].mxu0
  %v1965 = vadd.f32 %v1868, %v1964
  %v1966 = vpop.f32.mrb[0].mxu0
  %1967 = vmatprep.mubr.bf16.mxu0 %v849
  %1968 = vmatmul.mubr.bf16.gmra.mrb[0].mxu0 %v848
  %v1969 = vpop.f32.mrb[0].mxu0
  %v1970 = vadd.f32 %v1873, %v1969
  %v1971 = vpop.f32.mrb[0].mxu0
  %v1972 = vpop.f32.mrb[0].mxu0
  %v1973 = vadd.f32 %v1876, %v1972
  %v1974 = vpop.f32.mrb[0].mxu0
  %1975 = vmatprep.mubr.bf16.mxu0 %v865
  %1976 = vmatmul.mubr.bf16.gmra.mrb[0].mxu0 %v864
  %v1977 = vpop.f32.mrb[0].mxu0
  %v1978 = vadd.f32 %v1881, %v1977
  %v1979 = vpop.f32.mrb[0].mxu0
  %v1980 = vpop.f32.mrb[0].mxu0
  %v1981 = vadd.f32 %v1884, %v1980
  %v1982 = vpop.f32.mrb[0].mxu0
  %1983 = vmatprep.mubr.bf16.mxu0 %v881
  %1984 = vmatmul.mubr.bf16.gmra.mrb[0].mxu0 %v880
  %v1985 = vpop.f32.mrb[0].mxu0
  %v1986 = vadd.f32 %v1889, %v1985
  %v1987 = vpop.f32.mrb[0].mxu0
  %v1988 = vpop.f32.mrb[0].mxu0
  %v1989 = vadd.f32 %v1892, %v1988
  %v1990 = vpop.f32.mrb[0].mxu0
  %1991 = vmatprep.mubr.bf16.mxu0 %v897
  %1992 = vmatmul.mubr.bf16.gmra.mrb[0].mxu0 %v896
  %v1993 = vpop.f32.mrb[0].mxu0
  %v1994 = vadd.f32 %v1897, %v1993
  %v1995 = vpop.f32.mrb[0].mxu0
  %v1996 = vpop.f32.mrb[0].mxu0
  %v1997 = vadd.f32 %v1900, %v1996
  %v1998 = vpop.f32.mrb[0].mxu0
  %1999 = vdwg.mxu0
  %2000 = vmatprep.subr.bf16.mxu0 0
  %2001 = vmatpush1.bf16.msra.mxu0 %v1582
  %2002 = vmatprep.subr.bf16.mxu0 0
  %2003 = vmatpush1.bf16.msra.mxu0 %v1583
  %2004 = vmatprep.subr.bf16.mxu0 0
  %2005 = vmatpush1.bf16.msra.mxu0 %v1584
  %2006 = vmatprep.subr.bf16.mxu0 0
  %2007 = vmatpush1.bf16.msra.mxu0 %v1585
  %2008 = vmatprep.subr.bf16.mxu0 0
  %2009 = vmatpush1.bf16.msra.mxu0 %v1586
  %2010 = vmatprep.subr.bf16.mxu0 0
  %2011 = vmatpush1.bf16.msra.mxu0 %v1587
  %2012 = vmatprep.subr.bf16.mxu0 0
  %2013 = vmatpush1.bf16.msra.mxu0 %v1588
  %2014 = vmatprep.subr.bf16.mxu0 0
  %2015 = vmatpush1.bf16.msra.mxu0 %v1589
  %2016 = vmatprep.subr.bf16.mxu0 0
  %2017 = vmatpush1.bf16.msra.mxu0 %v1590
  %2018 = vmatprep.subr.bf16.mxu0 0
  %2019 = vmatpush1.bf16.msra.mxu0 %v1591
  %2020 = vmatprep.subr.bf16.mxu0 0
  %2021 = vmatpush1.bf16.msra.mxu0 %v1592
  %2022 = vmatprep.subr.bf16.mxu0 0
  %2023 = vmatpush1.bf16.msra.mxu0 %v1593
  %2024 = vmatprep.subr.bf16.mxu0 0
  %2025 = vmatpush1.bf16.msra.mxu0 %v1594
  %2026 = vmatprep.subr.bf16.mxu0 0
  %2027 = vmatpush1.bf16.msra.mxu0 %v1595
  %2028 = vmatprep.subr.bf16.mxu0 0
  %2029 = vmatpush1.bf16.msra.mxu0 %v1596
  %2030 = vmatprep.subr.bf16.mxu0 0
  %2031 = vmatpush1.bf16.msra.mxu0 %v1597
  %2032 = vmatprep.mubr.bf16.mxu0 %v787
  %2033 = vmatmul.mubr.bf16.gmra.mrb[0].mxu0 %v786
  %v2034 = vpop.f32.mrb[0].mxu0
  %v2035 = vadd.f32 %v1938, %v2034
  %v2036 = vpop.f32.mrb[0].mxu0
  %v2037 = vpop.f32.mrb[0].mxu0
  %v2038 = vadd.f32 %v1941, %v2037
  %v2039 = vpop.f32.mrb[0].mxu0
  %2040 = vmatprep.mubr.bf16.mxu0 %v803
  %2041 = vmatmul.mubr.bf16.gmra.mrb[0].mxu0 %v802
  %v2042 = vpop.f32.mrb[0].mxu0
  %v2043 = vadd.f32 %v1946, %v2042
  %v2044 = vpop.f32.mrb[0].mxu0
  %v2045 = vpop.f32.mrb[0].mxu0
  %v2046 = vadd.f32 %v1949, %v2045
  %v2047 = vpop.f32.mrb[0].mxu0
  %2048 = vmatprep.mubr.bf16.mxu0 %v819
  %2049 = vmatmul.mubr.bf16.gmra.mrb[0].mxu0 %v818
  %v2050 = vpop.f32.mrb[0].mxu0
  %v2051 = vadd.f32 %v1954, %v2050
  %v2052 = vpop.f32.mrb[0].mxu0
  %v2053 = vpop.f32.mrb[0].mxu0
  %v2054 = vadd.f32 %v1957, %v2053
  %v2055 = vpop.f32.mrb[0].mxu0
  %2056 = vmatprep.mubr.bf16.mxu0 %v835
  %2057 = vmatmul.mubr.bf16.gmra.mrb[0].mxu0 %v834
  %v2058 = vpop.f32.mrb[0].mxu0
  %v2059 = vadd.f32 %v1962, %v2058
  %v2060 = vpop.f32.mrb[0].mxu0
  %v2061 = vpop.f32.mrb[0].mxu0
  %v2062 = vadd.f32 %v1965, %v2061
  %v2063 = vpop.f32.mrb[0].mxu0
  %2064 = vmatprep.mubr.bf16.mxu0 %v851
  %2065 = vmatmul.mubr.bf16.gmra.mrb[0].mxu0 %v850
  %v2066 = vpop.f32.mrb[0].mxu0
  %v2067 = vadd.f32 %v1970, %v2066
  %v2068 = vpop.f32.mrb[0].mxu0
  %v2069 = vpop.f32.mrb[0].mxu0
  %v2070 = vadd.f32 %v1973, %v2069
  %v2071 = vpop.f32.mrb[0].mxu0
  %2072 = vmatprep.mubr.bf16.mxu0 %v867
  %2073 = vmatmul.mubr.bf16.gmra.mrb[0].mxu0 %v866
  %v2074 = vpop.f32.mrb[0].mxu0
  %v2075 = vadd.f32 %v1978, %v2074
  %v2076 = vpop.f32.mrb[0].mxu0
  %v2077 = vpop.f32.mrb[0].mxu0
  %v2078 = vadd.f32 %v1981, %v2077
  %v2079 = vpop.f32.mrb[0].mxu0
  %2080 = vmatprep.mubr.bf16.mxu0 %v883
  %2081 = vmatmul.mubr.bf16.gmra.mrb[0].mxu0 %v882
  %v2082 = vpop.f32.mrb[0].mxu0
  %v2083 = vadd.f32 %v1986, %v2082
  %v2084 = vpop.f32.mrb[0].mxu0
  %v2085 = vpop.f32.mrb[0].mxu0
  %v2086 = vadd.f32 %v1989, %v2085
  %v2087 = vpop.f32.mrb[0].mxu0
  %2088 = vmatprep.mubr.bf16.mxu0 %v899
  %2089 = vmatmul.mubr.bf16.gmra.mrb[0].mxu0 %v898
  %v2090 = vpop.f32.mrb[0].mxu0
  %v2091 = vadd.f32 %v1994, %v2090
  %v2092 = vpop.f32.mrb[0].mxu0
  %v2093 = vpop.f32.mrb[0].mxu0
  %v2094 = vadd.f32 %v1997, %v2093
  %v2095 = vpop.f32.mrb[0].mxu0
  %2096 = vdwg.mxu0
  %2097 = vmatprep.subr.bf16.mxu0 0
  %2098 = vmatpush1.bf16.msra.mxu0 %v1598
  %2099 = vmatprep.subr.bf16.mxu0 0
  %2100 = vmatpush1.bf16.msra.mxu0 %v1599
  %2101 = vmatprep.subr.bf16.mxu0 0
  %2102 = vmatpush1.bf16.msra.mxu0 %v1600
  %2103 = vmatprep.subr.bf16.mxu0 0
  %2104 = vmatpush1.bf16.msra.mxu0 %v1601
  %2105 = vmatprep.subr.bf16.mxu0 0
  %2106 = vmatpush1.bf16.msra.mxu0 %v1602
  %2107 = vmatprep.subr.bf16.mxu0 0
  %2108 = vmatpush1.bf16.msra.mxu0 %v1603
  %2109 = vmatprep.subr.bf16.mxu0 0
  %2110 = vmatpush1.bf16.msra.mxu0 %v1604
  %2111 = vmatprep.subr.bf16.mxu0 0
  %2112 = vmatpush1.bf16.msra.mxu0 %v1605
  %2113 = vmatprep.subr.bf16.mxu0 0
  %2114 = vmatpush1.bf16.msra.mxu0 %v1606
  %2115 = vmatprep.subr.bf16.mxu0 0
  %2116 = vmatpush1.bf16.msra.mxu0 %v1607
  %2117 = vmatprep.subr.bf16.mxu0 0
  %2118 = vmatpush1.bf16.msra.mxu0 %v1608
  %2119 = vmatprep.subr.bf16.mxu0 0
  %2120 = vmatpush1.bf16.msra.mxu0 %v1609
  %2121 = vmatprep.subr.bf16.mxu0 0
  %2122 = vmatpush1.bf16.msra.mxu0 %v1610
  %2123 = vmatprep.subr.bf16.mxu0 0
  %2124 = vmatpush1.bf16.msra.mxu0 %v1611
  %2125 = vmatprep.subr.bf16.mxu0 0
  %2126 = vmatpush1.bf16.msra.mxu0 %v1612
  %2127 = vmatprep.subr.bf16.mxu0 0
  %2128 = vmatpush1.bf16.msra.mxu0 %v1613
  %2129 = vmatprep.mubr.bf16.mxu0 %v789
  %2130 = vmatmul.mubr.bf16.gmra.mrb[0].mxu0 %v788
  %v2131 = vpop.f32.mrb[0].mxu0
  %v2132 = vadd.f32 %v2035, %v2131
  %v2133 = vpop.f32.mrb[0].mxu0
  %v2134 = vpop.f32.mrb[0].mxu0
  %v2135 = vadd.f32 %v2038, %v2134
  %v2136 = vpop.f32.mrb[0].mxu0
  %2137 = vmatprep.mubr.bf16.mxu0 %v805
  %2138 = vmatmul.mubr.bf16.gmra.mrb[0].mxu0 %v804
  %v2139 = vpop.f32.mrb[0].mxu0
  %v2140 = vadd.f32 %v2043, %v2139
  %v2141 = vpop.f32.mrb[0].mxu0
  %v2142 = vpop.f32.mrb[0].mxu0
  %v2143 = vadd.f32 %v2046, %v2142
  %v2144 = vpop.f32.mrb[0].mxu0
  %2145 = vmatprep.mubr.bf16.mxu0 %v821
  %2146 = vmatmul.mubr.bf16.gmra.mrb[0].mxu0 %v820
  %v2147 = vpop.f32.mrb[0].mxu0
  %v2148 = vadd.f32 %v2051, %v2147
  %v2149 = vpop.f32.mrb[0].mxu0
  %v2150 = vpop.f32.mrb[0].mxu0
  %v2151 = vadd.f32 %v2054, %v2150
  %v2152 = vpop.f32.mrb[0].mxu0
  %2153 = vmatprep.mubr.bf16.mxu0 %v837
  %2154 = vmatmul.mubr.bf16.gmra.mrb[0].mxu0 %v836
  %v2155 = vpop.f32.mrb[0].mxu0
  %v2156 = vadd.f32 %v2059, %v2155
  %v2157 = vpop.f32.mrb[0].mxu0
  %v2158 = vpop.f32.mrb[0].mxu0
  %v2159 = vadd.f32 %v2062, %v2158
  %v2160 = vpop.f32.mrb[0].mxu0
  %2161 = vmatprep.mubr.bf16.mxu0 %v853
  %2162 = vmatmul.mubr.bf16.gmra.mrb[0].mxu0 %v852
  %v2163 = vpop.f32.mrb[0].mxu0
  %v2164 = vadd.f32 %v2067, %v2163
  %v2165 = vpop.f32.mrb[0].mxu0
  %v2166 = vpop.f32.mrb[0].mxu0
  %v2167 = vadd.f32 %v2070, %v2166
  %v2168 = vpop.f32.mrb[0].mxu0
  %2169 = vmatprep.mubr.bf16.mxu0 %v869
  %2170 = vmatmul.mubr.bf16.gmra.mrb[0].mxu0 %v868
  %v2171 = vpop.f32.mrb[0].mxu0
  %v2172 = vadd.f32 %v2075, %v2171
  %v2173 = vpop.f32.mrb[0].mxu0
  %v2174 = vpop.f32.mrb[0].mxu0
  %v2175 = vadd.f32 %v2078, %v2174
  %v2176 = vpop.f32.mrb[0].mxu0
  %2177 = vmatprep.mubr.bf16.mxu0 %v885
  %2178 = vmatmul.mubr.bf16.gmra.mrb[0].mxu0 %v884
  %v2179 = vpop.f32.mrb[0].mxu0
  %v2180 = vadd.f32 %v2083, %v2179
  %v2181 = vpop.f32.mrb[0].mxu0
  %v2182 = vpop.f32.mrb[0].mxu0
  %v2183 = vadd.f32 %v2086, %v2182
  %v2184 = vpop.f32.mrb[0].mxu0
  %2185 = vmatprep.mubr.bf16.mxu0 %v901
  %2186 = vmatmul.mubr.bf16.gmra.mrb[0].mxu0 %v900
  %v2187 = vpop.f32.mrb[0].mxu0
  %v2188 = vadd.f32 %v2091, %v2187
  %v2189 = vpop.f32.mrb[0].mxu0
  %v2190 = vpop.f32.mrb[0].mxu0
  %v2191 = vadd.f32 %v2094, %v2190
  %v2192 = vpop.f32.mrb[0].mxu0
  %2193 = vdwg.mxu0
  %2194 = vmatprep.subr.bf16.mxu0 0
  %2195 = vmatpush1.bf16.msra.mxu0 %v1614
  %2196 = vmatprep.subr.bf16.mxu0 0
  %2197 = vmatpush1.bf16.msra.mxu0 %v1615
  %2198 = vmatprep.subr.bf16.mxu0 0
  %2199 = vmatpush1.bf16.msra.mxu0 %v1616
  %2200 = vmatprep.subr.bf16.mxu0 0
  %2201 = vmatpush1.bf16.msra.mxu0 %v1617
  %2202 = vmatprep.subr.bf16.mxu0 0
  %2203 = vmatpush1.bf16.msra.mxu0 %v1618
  %2204 = vmatprep.subr.bf16.mxu0 0
  %2205 = vmatpush1.bf16.msra.mxu0 %v1619
  %2206 = vmatprep.subr.bf16.mxu0 0
  %2207 = vmatpush1.bf16.msra.mxu0 %v1620
  %2208 = vmatprep.subr.bf16.mxu0 0
  %2209 = vmatpush1.bf16.msra.mxu0 %v1621
  %2210 = vmatprep.subr.bf16.mxu0 0
  %2211 = vmatpush1.bf16.msra.mxu0 %v1622
  %2212 = vmatprep.subr.bf16.mxu0 0
  %2213 = vmatpush1.bf16.msra.mxu0 %v1623
  %2214 = vmatprep.subr.bf16.mxu0 0
  %2215 = vmatpush1.bf16.msra.mxu0 %v1624
  %2216 = vmatprep.subr.bf16.mxu0 0
  %2217 = vmatpush1.bf16.msra.mxu0 %v1625
  %2218 = vmatprep.subr.bf16.mxu0 0
  %2219 = vmatpush1.bf16.msra.mxu0 %v1626
  %2220 = vmatprep.subr.bf16.mxu0 0
  %2221 = vmatpush1.bf16.msra.mxu0 %v1627
  %2222 = vmatprep.subr.bf16.mxu0 0
  %2223 = vmatpush1.bf16.msra.mxu0 %v1628
  %2224 = vmatprep.subr.bf16.mxu0 0
  %2225 = vmatpush1.bf16.msra.mxu0 %v1629
  %2226 = vmatprep.mubr.bf16.mxu0 %v791
  %2227 = vmatmul.mubr.bf16.gmra.mrb[0].mxu0 %v790
  %v2228 = vpop.f32.mrb[0].mxu0
  %v2229 = vadd.f32 %v2132, %v2228
  %v2230 = vpop.f32.mrb[0].mxu0
  %v2231 = vpop.f32.mrb[0].mxu0
  %v2232 = vadd.f32 %v2135, %v2231
  %v2233 = vpop.f32.mrb[0].mxu0
  %2234 = vmatprep.mubr.bf16.mxu0 %v807
  %2235 = vmatmul.mubr.bf16.gmra.mrb[0].mxu0 %v806
  %v2236 = vpop.f32.mrb[0].mxu0
  %v2237 = vadd.f32 %v2140, %v2236
  %v2238 = vpop.f32.mrb[0].mxu0
  %v2239 = vpop.f32.mrb[0].mxu0
  %v2240 = vadd.f32 %v2143, %v2239
  %v2241 = vpop.f32.mrb[0].mxu0
  %2242 = vmatprep.mubr.bf16.mxu0 %v823
  %2243 = vmatmul.mubr.bf16.gmra.mrb[0].mxu0 %v822
  %v2244 = vpop.f32.mrb[0].mxu0
  %v2245 = vadd.f32 %v2148, %v2244
  %v2246 = vpop.f32.mrb[0].mxu0
  %v2247 = vpop.f32.mrb[0].mxu0
  %v2248 = vadd.f32 %v2151, %v2247
  %v2249 = vpop.f32.mrb[0].mxu0
  %2250 = vmatprep.mubr.bf16.mxu0 %v839
  %2251 = vmatmul.mubr.bf16.gmra.mrb[0].mxu0 %v838
  %v2252 = vpop.f32.mrb[0].mxu0
  %v2253 = vadd.f32 %v2156, %v2252
  %v2254 = vpop.f32.mrb[0].mxu0
  %v2255 = vpop.f32.mrb[0].mxu0
  %v2256 = vadd.f32 %v2159, %v2255
  %v2257 = vpop.f32.mrb[0].mxu0
  %2258 = vmatprep.mubr.bf16.mxu0 %v855
  %2259 = vmatmul.mubr.bf16.gmra.mrb[0].mxu0 %v854
  %v2260 = vpop.f32.mrb[0].mxu0
  %v2261 = vadd.f32 %v2164, %v2260
  %v2262 = vpop.f32.mrb[0].mxu0
  %v2263 = vpop.f32.mrb[0].mxu0
  %v2264 = vadd.f32 %v2167, %v2263
  %v2265 = vpop.f32.mrb[0].mxu0
  %2266 = vmatprep.mubr.bf16.mxu0 %v871
  %2267 = vmatmul.mubr.bf16.gmra.mrb[0].mxu0 %v870
  %v2268 = vpop.f32.mrb[0].mxu0
  %v2269 = vadd.f32 %v2172, %v2268
  %v2270 = vpop.f32.mrb[0].mxu0
  %v2271 = vpop.f32.mrb[0].mxu0
  %v2272 = vadd.f32 %v2175, %v2271
  %v2273 = vpop.f32.mrb[0].mxu0
  %2274 = vmatprep.mubr.bf16.mxu0 %v887
  %2275 = vmatmul.mubr.bf16.gmra.mrb[0].mxu0 %v886
  %v2276 = vpop.f32.mrb[0].mxu0
  %v2277 = vadd.f32 %v2180, %v2276
  %v2278 = vpop.f32.mrb[0].mxu0
  %v2279 = vpop.f32.mrb[0].mxu0
  %v2280 = vadd.f32 %v2183, %v2279
  %v2281 = vpop.f32.mrb[0].mxu0
  %2282 = vmatprep.mubr.bf16.mxu0 %v903
  %2283 = vmatmul.mubr.bf16.gmra.mrb[0].mxu0 %v902
  %v2284 = vpop.f32.mrb[0].mxu0
  %v2285 = vadd.f32 %v2188, %v2284
  %v2286 = vpop.f32.mrb[0].mxu0
  %v2287 = vpop.f32.mrb[0].mxu0
  %v2288 = vadd.f32 %v2191, %v2287
  %v2289 = vpop.f32.mrb[0].mxu0
  %2290 = vdwg.mxu0
  %2291 = vmatprep.subr.bf16.mxu0 0
  %2292 = vmatpush1.bf16.msra.mxu0 %v1630
  %2293 = vmatprep.subr.bf16.mxu0 0
  %2294 = vmatpush1.bf16.msra.mxu0 %v1631
  %2295 = vmatprep.subr.bf16.mxu0 0
  %2296 = vmatpush1.bf16.msra.mxu0 %v1632
  %2297 = vmatprep.subr.bf16.mxu0 0
  %2298 = vmatpush1.bf16.msra.mxu0 %v1633
  %2299 = vmatprep.subr.bf16.mxu0 0
  %2300 = vmatpush1.bf16.msra.mxu0 %v1634
  %2301 = vmatprep.subr.bf16.mxu0 0
  %2302 = vmatpush1.bf16.msra.mxu0 %v1635
  %2303 = vmatprep.subr.bf16.mxu0 0
  %2304 = vmatpush1.bf16.msra.mxu0 %v1636
  %2305 = vmatprep.subr.bf16.mxu0 0
  %2306 = vmatpush1.bf16.msra.mxu0 %v1637
  %2307 = vmatprep.subr.bf16.mxu0 0
  %2308 = vmatpush1.bf16.msra.mxu0 %v1638
  %2309 = vmatprep.subr.bf16.mxu0 0
  %2310 = vmatpush1.bf16.msra.mxu0 %v1639
  %2311 = vmatprep.subr.bf16.mxu0 0
  %2312 = vmatpush1.bf16.msra.mxu0 %v1640
  %2313 = vmatprep.subr.bf16.mxu0 0
  %2314 = vmatpush1.bf16.msra.mxu0 %v1641
  %2315 = vmatprep.subr.bf16.mxu0 0
  %2316 = vmatpush1.bf16.msra.mxu0 %v1642
  %2317 = vmatprep.subr.bf16.mxu0 0
  %2318 = vmatpush1.bf16.msra.mxu0 %v1643
  %2319 = vmatprep.subr.bf16.mxu0 0
  %2320 = vmatpush1.bf16.msra.mxu0 %v1644
  %2321 = vmatprep.subr.bf16.mxu0 0
  %2322 = vmatpush1.bf16.msra.mxu0 %v1645
  %2323 = vmatprep.mubr.bf16.mxu0 %v793
  %2324 = vmatmul.mubr.bf16.gmra.mrb[0].mxu0 %v792
  %v2325 = vpop.f32.mrb[0].mxu0
  %v2326 = vadd.f32 %v2229, %v2325
  %v2327 = vpop.f32.mrb[0].mxu0
  %v2328 = vpop.f32.mrb[0].mxu0
  %v2329 = vadd.f32 %v2232, %v2328
  %v2330 = vpop.f32.mrb[0].mxu0
  %2331 = vmatprep.mubr.bf16.mxu0 %v809
  %2332 = vmatmul.mubr.bf16.gmra.mrb[0].mxu0 %v808
  %v2333 = vpop.f32.mrb[0].mxu0
  %v2334 = vadd.f32 %v2237, %v2333
  %v2335 = vpop.f32.mrb[0].mxu0
  %v2336 = vpop.f32.mrb[0].mxu0
  %v2337 = vadd.f32 %v2240, %v2336
  %v2338 = vpop.f32.mrb[0].mxu0
  %2339 = vmatprep.mubr.bf16.mxu0 %v825
  %2340 = vmatmul.mubr.bf16.gmra.mrb[0].mxu0 %v824
  %v2341 = vpop.f32.mrb[0].mxu0
  %v2342 = vadd.f32 %v2245, %v2341
  %v2343 = vpop.f32.mrb[0].mxu0
  %v2344 = vpop.f32.mrb[0].mxu0
  %v2345 = vadd.f32 %v2248, %v2344
  %v2346 = vpop.f32.mrb[0].mxu0
  %2347 = vmatprep.mubr.bf16.mxu0 %v841
  %2348 = vmatmul.mubr.bf16.gmra.mrb[0].mxu0 %v840
  %v2349 = vpop.f32.mrb[0].mxu0
  %v2350 = vadd.f32 %v2253, %v2349
  %v2351 = vpop.f32.mrb[0].mxu0
  %v2352 = vpop.f32.mrb[0].mxu0
  %v2353 = vadd.f32 %v2256, %v2352
  %v2354 = vpop.f32.mrb[0].mxu0
  %2355 = vmatprep.mubr.bf16.mxu0 %v857
  %2356 = vmatmul.mubr.bf16.gmra.mrb[0].mxu0 %v856
  %v2357 = vpop.f32.mrb[0].mxu0
  %v2358 = vadd.f32 %v2261, %v2357
  %v2359 = vpop.f32.mrb[0].mxu0
  %v2360 = vpop.f32.mrb[0].mxu0
  %v2361 = vadd.f32 %v2264, %v2360
  %v2362 = vpop.f32.mrb[0].mxu0
  %2363 = vmatprep.mubr.bf16.mxu0 %v873
  %2364 = vmatmul.mubr.bf16.gmra.mrb[0].mxu0 %v872
  %v2365 = vpop.f32.mrb[0].mxu0
  %v2366 = vadd.f32 %v2269, %v2365
  %v2367 = vpop.f32.mrb[0].mxu0
  %v2368 = vpop.f32.mrb[0].mxu0
  %v2369 = vadd.f32 %v2272, %v2368
  %v2370 = vpop.f32.mrb[0].mxu0
  %2371 = vmatprep.mubr.bf16.mxu0 %v889
  %2372 = vmatmul.mubr.bf16.gmra.mrb[0].mxu0 %v888
  %v2373 = vpop.f32.mrb[0].mxu0
  %v2374 = vadd.f32 %v2277, %v2373
  %v2375 = vpop.f32.mrb[0].mxu0
  %v2376 = vpop.f32.mrb[0].mxu0
  %v2377 = vadd.f32 %v2280, %v2376
  %v2378 = vpop.f32.mrb[0].mxu0
  %2379 = vmatprep.mubr.bf16.mxu0 %v905
  %2380 = vmatmul.mubr.bf16.gmra.mrb[0].mxu0 %v904
  %v2381 = vpop.f32.mrb[0].mxu0
  %v2382 = vadd.f32 %v2285, %v2381
  %v2383 = vpop.f32.mrb[0].mxu0
  %v2384 = vpop.f32.mrb[0].mxu0
  %v2385 = vadd.f32 %v2288, %v2384
  %v2386 = vpop.f32.mrb[0].mxu0
  %2387 = vdwg.mxu0
  %2388 = vmatprep.subr.bf16.mxu0 0
  %2389 = vmatpush1.bf16.msra.mxu0 %v1646
  %2390 = vmatprep.subr.bf16.mxu0 0
  %2391 = vmatpush1.bf16.msra.mxu0 %v1647
  %2392 = vmatprep.subr.bf16.mxu0 0
  %2393 = vmatpush1.bf16.msra.mxu0 %v1648
  %2394 = vmatprep.subr.bf16.mxu0 0
  %2395 = vmatpush1.bf16.msra.mxu0 %v1649
  %2396 = vmatprep.subr.bf16.mxu0 0
  %2397 = vmatpush1.bf16.msra.mxu0 %v1650
  %2398 = vmatprep.subr.bf16.mxu0 0
  %2399 = vmatpush1.bf16.msra.mxu0 %v1651
  %2400 = vmatprep.subr.bf16.mxu0 0
  %2401 = vmatpush1.bf16.msra.mxu0 %v1652
  %2402 = vmatprep.subr.bf16.mxu0 0
  %2403 = vmatpush1.bf16.msra.mxu0 %v1653
  %2404 = vmatprep.subr.bf16.mxu0 0
  %2405 = vmatpush1.bf16.msra.mxu0 %v1654
  %2406 = vmatprep.subr.bf16.mxu0 0
  %2407 = vmatpush1.bf16.msra.mxu0 %v1655
  %2408 = vmatprep.subr.bf16.mxu0 0
  %2409 = vmatpush1.bf16.msra.mxu0 %v1656
  %2410 = vmatprep.subr.bf16.mxu0 0
  %2411 = vmatpush1.bf16.msra.mxu0 %v1657
  %2412 = vmatprep.subr.bf16.mxu0 0
  %2413 = vmatpush1.bf16.msra.mxu0 %v1658
  %2414 = vmatprep.subr.bf16.mxu0 0
  %2415 = vmatpush1.bf16.msra.mxu0 %v1659
  %2416 = vmatprep.subr.bf16.mxu0 0
  %2417 = vmatpush1.bf16.msra.mxu0 %v1660
  %2418 = vmatprep.subr.bf16.mxu0 0
  %2419 = vmatpush1.bf16.msra.mxu0 %v1661
  %2420 = vmatprep.mubr.bf16.mxu0 %v795
  %2421 = vmatmul.mubr.bf16.gmra.mrb[0].mxu0 %v794
  %v2422 = vpop.f32.mrb[0].mxu0
  %v2423 = vadd.f32 %v2326, %v2422
  %v2424 = vpop.f32.mrb[0].mxu0
  %v2425 = vpop.f32.mrb[0].mxu0
  %v2426 = vadd.f32 %v2329, %v2425
  %v2427 = vpop.f32.mrb[0].mxu0
  %2428 = vmatprep.mubr.bf16.mxu0 %v811
  %2429 = vmatmul.mubr.bf16.gmra.mrb[0].mxu0 %v810
  %v2430 = vpop.f32.mrb[0].mxu0
  %v2431 = vadd.f32 %v2334, %v2430
  %v2432 = vpop.f32.mrb[0].mxu0
  %v2433 = vpop.f32.mrb[0].mxu0
  %v2434 = vadd.f32 %v2337, %v2433
  %v2435 = vpop.f32.mrb[0].mxu0
  %2436 = vmatprep.mubr.bf16.mxu0 %v827
  %2437 = vmatmul.mubr.bf16.gmra.mrb[0].mxu0 %v826
  %v2438 = vpop.f32.mrb[0].mxu0
  %v2439 = vadd.f32 %v2342, %v2438
  %v2440 = vpop.f32.mrb[0].mxu0
  %v2441 = vpop.f32.mrb[0].mxu0
  %v2442 = vadd.f32 %v2345, %v2441
  %v2443 = vpop.f32.mrb[0].mxu0
  %2444 = vmatprep.mubr.bf16.mxu0 %v843
  %2445 = vmatmul.mubr.bf16.gmra.mrb[0].mxu0 %v842
  %v2446 = vpop.f32.mrb[0].mxu0
  %v2447 = vadd.f32 %v2350, %v2446
  %v2448 = vpop.f32.mrb[0].mxu0
  %v2449 = vpop.f32.mrb[0].mxu0
  %v2450 = vadd.f32 %v2353, %v2449
  %v2451 = vpop.f32.mrb[0].mxu0
  %2452 = vmatprep.mubr.bf16.mxu0 %v859
  %2453 = vmatmul.mubr.bf16.gmra.mrb[0].mxu0 %v858
  %v2454 = vpop.f32.mrb[0].mxu0
  %v2455 = vadd.f32 %v2358, %v2454
  %v2456 = vpop.f32.mrb[0].mxu0
  %v2457 = vpop.f32.mrb[0].mxu0
  %v2458 = vadd.f32 %v2361, %v2457
  %v2459 = vpop.f32.mrb[0].mxu0
  %2460 = vmatprep.mubr.bf16.mxu0 %v875
  %2461 = vmatmul.mubr.bf16.gmra.mrb[0].mxu0 %v874
  %v2462 = vpop.f32.mrb[0].mxu0
  %v2463 = vadd.f32 %v2366, %v2462
  %v2464 = vpop.f32.mrb[0].mxu0
  %v2465 = vpop.f32.mrb[0].mxu0
  %v2466 = vadd.f32 %v2369, %v2465
  %v2467 = vpop.f32.mrb[0].mxu0
  %2468 = vmatprep.mubr.bf16.mxu0 %v891
  %2469 = vmatmul.mubr.bf16.gmra.mrb[0].mxu0 %v890
  %v2470 = vpop.f32.mrb[0].mxu0
  %v2471 = vadd.f32 %v2374, %v2470
  %v2472 = vpop.f32.mrb[0].mxu0
  %v2473 = vpop.f32.mrb[0].mxu0
  %v2474 = vadd.f32 %v2377, %v2473
  %v2475 = vpop.f32.mrb[0].mxu0
  %2476 = vmatprep.mubr.bf16.mxu0 %v907
  %2477 = vmatmul.mubr.bf16.gmra.mrb[0].mxu0 %v906
  %v2478 = vpop.f32.mrb[0].mxu0
  %v2479 = vadd.f32 %v2382, %v2478
  %v2480 = vpop.f32.mrb[0].mxu0
  %v2481 = vpop.f32.mrb[0].mxu0
  %v2482 = vadd.f32 %v2385, %v2481
  %v2483 = vpop.f32.mrb[0].mxu0
  %2484 = vdwg.mxu0
  %2485 = vmatprep.subr.bf16.mxu0 0
  %2486 = vmatpush1.bf16.msra.mxu0 %v1662
  %2487 = vmatprep.subr.bf16.mxu0 0
  %2488 = vmatpush1.bf16.msra.mxu0 %v1663
  %2489 = vmatprep.subr.bf16.mxu0 0
  %2490 = vmatpush1.bf16.msra.mxu0 %v1664
  %2491 = vmatprep.subr.bf16.mxu0 0
  %2492 = vmatpush1.bf16.msra.mxu0 %v1665
  %2493 = vmatprep.subr.bf16.mxu0 0
  %2494 = vmatpush1.bf16.msra.mxu0 %v1666
  %2495 = vmatprep.subr.bf16.mxu0 0
  %2496 = vmatpush1.bf16.msra.mxu0 %v1667
  %2497 = vmatprep.subr.bf16.mxu0 0
  %2498 = vmatpush1.bf16.msra.mxu0 %v1668
  %2499 = vmatprep.subr.bf16.mxu0 0
  %2500 = vmatpush1.bf16.msra.mxu0 %v1669
  %2501 = vmatprep.subr.bf16.mxu0 0
  %2502 = vmatpush1.bf16.msra.mxu0 %v1670
  %2503 = vmatprep.subr.bf16.mxu0 0
  %2504 = vmatpush1.bf16.msra.mxu0 %v1671
  %2505 = vmatprep.subr.bf16.mxu0 0
  %2506 = vmatpush1.bf16.msra.mxu0 %v1672
  %2507 = vmatprep.subr.bf16.mxu0 0
  %2508 = vmatpush1.bf16.msra.mxu0 %v1673
  %2509 = vmatprep.subr.bf16.mxu0 0
  %2510 = vmatpush1.bf16.msra.mxu0 %v1674
  %2511 = vmatprep.subr.bf16.mxu0 0
  %2512 = vmatpush1.bf16.msra.mxu0 %v1675
  %2513 = vmatprep.subr.bf16.mxu0 0
  %2514 = vmatpush1.bf16.msra.mxu0 %v1676
  %2515 = vmatprep.subr.bf16.mxu0 0
  %2516 = vmatpush1.bf16.msra.mxu0 %v1677
  %2517 = vmatprep.mubr.bf16.mxu0 %v797
  %2518 = vmatmul.mubr.bf16.gmra.mrb[0].mxu0 %v796
  %v2519 = vpop.f32.mrb[0].mxu0
  %v2520 = vadd.f32 %v2423, %v2519
  %v2521 = vpop.f32.mrb[0].mxu0
  %v2522 = vpop.f32.mrb[0].mxu0
  %v2523 = vadd.f32 %v2426, %v2522
  %v2524 = vpop.f32.mrb[0].mxu0
  %2525 = vmatprep.mubr.bf16.mxu0 %v813
  %2526 = vmatmul.mubr.bf16.gmra.mrb[0].mxu0 %v812
  %v2527 = vpop.f32.mrb[0].mxu0
  %v2528 = vadd.f32 %v2431, %v2527
  %v2529 = vpop.f32.mrb[0].mxu0
  %v2530 = vpop.f32.mrb[0].mxu0
  %v2531 = vadd.f32 %v2434, %v2530
  %v2532 = vpop.f32.mrb[0].mxu0
  %2533 = vmatprep.mubr.bf16.mxu0 %v829
  %2534 = vmatmul.mubr.bf16.gmra.mrb[0].mxu0 %v828
  %v2535 = vpop.f32.mrb[0].mxu0
  %v2536 = vadd.f32 %v2439, %v2535
  %v2537 = vpop.f32.mrb[0].mxu0
  %v2538 = vpop.f32.mrb[0].mxu0
  %v2539 = vadd.f32 %v2442, %v2538
  %v2540 = vpop.f32.mrb[0].mxu0
  %2541 = vmatprep.mubr.bf16.mxu0 %v845
  %2542 = vmatmul.mubr.bf16.gmra.mrb[0].mxu0 %v844
  %v2543 = vpop.f32.mrb[0].mxu0
  %v2544 = vadd.f32 %v2447, %v2543
  %v2545 = vpop.f32.mrb[0].mxu0
  %v2546 = vpop.f32.mrb[0].mxu0
  %v2547 = vadd.f32 %v2450, %v2546
  %v2548 = vpop.f32.mrb[0].mxu0
  %2549 = vmatprep.mubr.bf16.mxu0 %v861
  %2550 = vmatmul.mubr.bf16.gmra.mrb[0].mxu0 %v860
  %v2551 = vpop.f32.mrb[0].mxu0
  %v2552 = vadd.f32 %v2455, %v2551
  %v2553 = vpop.f32.mrb[0].mxu0
  %v2554 = vpop.f32.mrb[0].mxu0
  %v2555 = vadd.f32 %v2458, %v2554
  %v2556 = vpop.f32.mrb[0].mxu0
  %2557 = vmatprep.mubr.bf16.mxu0 %v877
  %2558 = vmatmul.mubr.bf16.gmra.mrb[0].mxu0 %v876
  %v2559 = vpop.f32.mrb[0].mxu0
  %v2560 = vadd.f32 %v2463, %v2559
  %v2561 = vpop.f32.mrb[0].mxu0
  %v2562 = vpop.f32.mrb[0].mxu0
  %v2563 = vadd.f32 %v2466, %v2562
  %v2564 = vpop.f32.mrb[0].mxu0
  %2565 = vmatprep.mubr.bf16.mxu0 %v893
  %2566 = vmatmul.mubr.bf16.gmra.mrb[0].mxu0 %v892
  %v2567 = vpop.f32.mrb[0].mxu0
  %v2568 = vadd.f32 %v2471, %v2567
  %v2569 = vpop.f32.mrb[0].mxu0
  %v2570 = vpop.f32.mrb[0].mxu0
  %v2571 = vadd.f32 %v2474, %v2570
  %v2572 = vpop.f32.mrb[0].mxu0
  %2573 = vmatprep.mubr.bf16.mxu0 %v909
  %2574 = vmatmul.mubr.bf16.gmra.mrb[0].mxu0 %v908
  %v2575 = vpop.f32.mrb[0].mxu0
  %v2576 = vadd.f32 %v2479, %v2575
  %v2577 = vpop.f32.mrb[0].mxu0
  %v2578 = vpop.f32.mrb[0].mxu0
  %v2579 = vadd.f32 %v2482, %v2578
  %v2580 = vpop.f32.mrb[0].mxu0
  %2581 = vdwg.mxu0
  %2582 = vst [vmem:[%s2] sm:$0xff] %v2520
  %2583 = vst [vmem:[%s2 + $0x8] sm:$0xff] %v2523
  %2584 = vst [vmem:[%s2 + $0x10] sm:$0xff] %v2528
  %2585 = vst [vmem:[%s2 + $0x18] sm:$0xff] %v2531
  %2586 = vst [vmem:[%s2 + $0x20] sm:$0xff] %v2536
  %2587 = vst [vmem:[%s2 + $0x28] sm:$0xff] %v2539
  %2588 = vst [vmem:[%s2 + $0x30] sm:$0xff] %v2544
  %2589 = vst [vmem:[%s2 + $0x38] sm:$0xff] %v2547
  %2590 = vst [vmem:[%s2 + $0x40] sm:$0xff] %v2552
  %2591 = vst [vmem:[%s2 + $0x48] sm:$0xff] %v2555
  %2592 = vst [vmem:[%s2 + $0x50] sm:$0xff] %v2560
  %2593 = vst [vmem:[%s2 + $0x58] sm:$0xff] %v2563
  %2594 = vst [vmem:[%s2 + $0x60] sm:$0xff] %v2568
  %2595 = vst [vmem:[%s2 + $0x68] sm:$0xff] %v2571
  %2596 = vst [vmem:[%s2 + $0x70] sm:$0xff] %v2576
  %2597 = vst [vmem:[%s2 + $0x78] sm:$0xff] %v2579
  %v2598 = vadd.f32 %v2520, %v2523
  %v2599 = vadd.f32 %v2598, %v2528
  %v2600 = vadd.f32 %v2599, %v2531
  %v2601 = vadd.f32 %v2600, %v2536
  %v2602 = vadd.f32 %v2601, %v2539
  %v2603 = vadd.f32 %v2602, %v2544
  %v2604 = vadd.f32 %v2603, %v2547
  %v2605 = vadd.f32 %v2604, %v2552
  %v2606 = vadd.f32 %v2605, %v2555
  %v2607 = vadd.f32 %v2606, %v2560
  %v2608 = vadd.f32 %v2607, %v2563
  %v2609 = vadd.f32 %v2608, %v2568
  %v2610 = vadd.f32 %v2609, %v2571
  %v2611 = vadd.f32 %v2610, %v2576
  %v2612 = vadd.f32 %v2611, %v2579
  %v2613 = vrot.slane %v2612, 4
  %v2614 = vadd.f32 %v2612, %v2613
  %v2615 = vrot.slane %v2614, 2
  %v2616 = vadd.f32 %v2614, %v2615
  %v2617 = vrot.slane %v2616, 1
  %v2618 = vadd.f32 %v2616, %v2617
  %v2619 = vmul.f32 %v2520, %v2520
  %v2620 = vmul.f32 %v2523, %v2523
  %v2621 = vmul.f32 %v2528, %v2528
  %v2622 = vmul.f32 %v2531, %v2531
  %v2623 = vmul.f32 %v2536, %v2536
  %v2624 = vmul.f32 %v2539, %v2539
  %v2625 = vmul.f32 %v2544, %v2544
  %v2626 = vmul.f32 %v2547, %v2547
  %v2627 = vmul.f32 %v2552, %v2552
  %v2628 = vmul.f32 %v2555, %v2555
  %v2629 = vmul.f32 %v2560, %v2560
  %v2630 = vmul.f32 %v2563, %v2563
  %v2631 = vmul.f32 %v2568, %v2568
  %v2632 = vmul.f32 %v2571, %v2571
  %v2633 = vmul.f32 %v2576, %v2576
  %v2634 = vmul.f32 %v2579, %v2579
  %v2635 = vadd.f32 %v2619, %v2620
  %v2636 = vadd.f32 %v2635, %v2621
  %v2637 = vadd.f32 %v2636, %v2622
  %v2638 = vadd.f32 %v2637, %v2623
  %v2639 = vadd.f32 %v2638, %v2624
  %v2640 = vadd.f32 %v2639, %v2625
  %v2641 = vadd.f32 %v2640, %v2626
  %v2642 = vadd.f32 %v2641, %v2627
  %v2643 = vadd.f32 %v2642, %v2628
  %v2644 = vadd.f32 %v2643, %v2629
  %v2645 = vadd.f32 %v2644, %v2630
  %v2646 = vadd.f32 %v2645, %v2631
  %v2647 = vadd.f32 %v2646, %v2632
  %v2648 = vadd.f32 %v2647, %v2633
  %v2649 = vadd.f32 %v2648, %v2634
  %v2650 = vrot.slane %v2649, 4
  %v2651 = vadd.f32 %v2649, %v2650
  %v2652 = vrot.slane %v2651, 2
  %v2653 = vadd.f32 %v2651, %v2652
  %v2654 = vrot.slane %v2653, 1
  %v2655 = vadd.f32 %v2653, %v2654
  %vm2656 = vcmask 1040384
  %v2657 = vsel %vm2656, %v2618, %v2655
  %2658 = vst [vmem:[%s3] sm:$0x3] %v2657
  // Predicated region
  $region10: #{discriminator_forward.6} parent=0 // pred_check
    _
  $region11: #{discriminator_forward.6} parent=0 // pred_check_branch
    %2660 = sbr.rel (0) target = $region13
  $region12: #{discriminator_forward.6} parent=0 // pred_region
    _
  $region13: #{discriminator_forward.6} parent=0 // pred_fallthru
    _
  // Predicated region
  $region14: #{discriminator_forward.6} parent=0 // pred_check
    _
  $region15: #{discriminator_forward.6} parent=0 // pred_check_branch
    %2662 = sbr.rel (0) target = $region17
  $region16: #{discriminator_forward.6} parent=0 // pred_region
    _
  $region17: #{discriminator_forward.6} parent=0 // pred_fallthru
    _
  // Predicated region
  $region18: #{discriminator_forward.6} parent=0 // pred_check
    _
  $region19: #{discriminator_forward.6} parent=0 // pred_check_branch
    %2664 = sbr.rel (0) target = $region21
  $region20: #{discriminator_forward.6} parent=0 // pred_region
    _
  $region21: #{discriminator_forward.6} parent=0 // pred_fallthru
    _
  // Predicated region
  $region22: #{discriminator_forward.6} parent=0 // pred_check
    _
  $region23: #{discriminator_forward.6} parent=0 // pred_check_branch
    %2666 = sbr.rel (0) target = $region25
  $region24: #{discriminator_forward.6} parent=0 // pred_region
    _
  $region25: #{discriminator_forward.6} parent=0 // pred_fallthru
    _

// kernel: discriminator_forward.9
$region0: #{discriminator_forward.9}
  #allocation0 [shape = 'u32[]', space=smem, size = 0x4, offset = 0x4, fixed_abs, tag = 'smem constant byte address 0x4 - core index']
  #allocation1 [shape = 'u32[144,128]{1,0:T(1,128)}', space=vmem, size = 0x12000, scoped, tag = 'internal scratch']
  #allocation2 [shape = 'f32[1,1]{1,0:T(1,128)S(6)}', space=smem, size = 0x200, scoped, tag = 'scoped memory for discriminator_forward.9']
  %s0 = inlined_call_operand.vmem [shape: f32[32,128], index: 0, kind: input, shape index: {}]
  %s1 = inlined_call_operand.vmem [shape: f32[1,128], index: 1, kind: input, shape index: {}]
  %s2 = inlined_call_operand.vmem [shape: f32[1,128], index: 2, kind: input, shape index: {}]
  %s3 = inlined_call_operand.vmem [shape: f32[16,128], index: 3, kind: input, shape index: {}]
  %s4 = inlined_call_operand.<no memory space> [shape: f32[1,1], index: 4, kind: input, shape index: {}]
  %s5 = inlined_call_operand.vmem [shape: f32[2,1], index: 5, kind: output, shape index: {}]
  %s6 = sld [smem:[#allocation0]]
  $region30: #{discriminator_forward.9} parent=0
    _
  %s8 = ssub.s32 1, %s6
  %s9 = scalar_select 0, %s8, %s6
  %10 = sst [smem:[#allocation2]] %s4
  // Predicated region
  $region2: #{discriminator_forward.9} parent=0 // pred_check
    _
  $region3: #{discriminator_forward.9} parent=0 // pred_check_branch
    %12 = sbr.rel (0) target = $region5
  $region4: #{discriminator_forward.9} parent=0 // pred_region
    _
  $region5: #{discriminator_forward.9} parent=0 // pred_fallthru
    _
  // Predicated region
  $region6: #{discriminator_forward.9} parent=0 // pred_check
    _
  $region7: #{discriminator_forward.9} parent=0 // pred_check_branch
    %14 = sbr.rel (0) target = $region9
  $region8: #{discriminator_forward.9} parent=0 // pred_region
    _
  $region9: #{discriminator_forward.9} parent=0 // pred_fallthru
    _
  // Predicated region
  $region10: #{discriminator_forward.9} parent=0 // pred_check
    _
  $region11: #{discriminator_forward.9} parent=0 // pred_check_branch
    %16 = sbr.rel (0) target = $region13
  $region12: #{discriminator_forward.9} parent=0 // pred_region
    _
  $region13: #{discriminator_forward.9} parent=0 // pred_fallthru
    _
  // Predicated region
  $region14: #{discriminator_forward.9} parent=0 // pred_check
    _
  $region15: #{discriminator_forward.9} parent=0 // pred_check_branch
    %18 = sbr.rel (0) target = $region17
  $region16: #{discriminator_forward.9} parent=0 // pred_region
    _
  $region17: #{discriminator_forward.9} parent=0 // pred_fallthru
    _
  // Predicated region
  $region18: #{discriminator_forward.9} parent=0 // pred_check
    _
  $region19: #{discriminator_forward.9} parent=0 // pred_check_branch
    %20 = sbr.rel (0) target = $region21
  $region20: #{discriminator_forward.9} parent=0 // pred_region
    _
  $region21: #{discriminator_forward.9} parent=0 // pred_fallthru
    _
  %v21 = vld [vmem:[%s0] sm:$0xff]
  %v22 = vld [vmem:[%s0 + $0x8] sm:$0xff]
  %v23 = vld [vmem:[%s0 + $0x10] sm:$0xff]
  %v24 = vld [vmem:[%s0 + $0x18] sm:$0xff]
  %v25 = vld [vmem:[%s1] sm:$0x1]
  %v27 = vlaneseq
  %v28 = vshrl.u32 %v27, 7
  %v29 = vsub.s32 0, %v28
  %v30 = vrot.slane %v25, %v29
  %v32 = vmul.f32 %v21, %v30
  %v33 = vmul.f32 %v22, %v30
  %v34 = vmul.f32 %v23, %v30
  %v35 = vmul.f32 %v24, %v30
  %v36 = vld [vmem:[%s2] sm:$0x1]
  %v38 = vlaneseq
  %v39 = vshrl.u32 %v38, 7
  %v40 = vsub.s32 0, %v39
  %v41 = vrot.slane %v36, %v40
  %v43 = vadd.f32 %v32, %v41
  %v44 = vadd.f32 %v33, %v41
  %v45 = vadd.f32 %v34, %v41
  %v46 = vadd.f32 %v35, %v41
  %vm47 = vcmp.gt.f32.partialorder %v43, 0.0
  %vm48 = vcmp.gt.f32.partialorder %v44, 0.0
  %vm49 = vcmp.gt.f32.partialorder %v45, 0.0
  %vm50 = vcmp.gt.f32.partialorder %v46, 0.0
  %v51 = vmul.f32 %v43, 0.2
  %v52 = vmul.f32 %v44, 0.2
  %v53 = vmul.f32 %v45, 0.2
  %v54 = vmul.f32 %v46, 0.2
  %v55 = vsel %vm47, %v43, %v51
  %v56 = vsel %vm48, %v44, %v52
  %v57 = vsel %vm49, %v45, %v53
  %v58 = vsel %vm50, %v46, %v54
  %v59 = vld [vmem:[%s3] sm:$0xff]
  %v60 = vld [vmem:[%s3 + $0x8] sm:$0xff]
  %v61 = vmul.f32 %v55, %v59
  %v62 = vmul.f32 %v56, %v60
  %v63 = vmul.f32 %v57, %v59
  %v64 = vmul.f32 %v58, %v60
  %65 = vadd.xlane.f32.xlu0 %v61
  %v66 = vpop.xlane.xlu0 %65
  %67 = vadd.xlane.f32.xlu0 %v62
  %v68 = vpop.xlane.xlu0 %67
  %69 = vadd.xlane.f32.xlu0 %v63
  %v70 = vpop.xlane.xlu0 %69
  %71 = vadd.xlane.f32.xlu0 %v64
  %v72 = vpop.xlane.xlu0 %71
  %v77 = vlaneseq
  %v78 = vand.u32 %v77, 127
  %v79 = vlaneseq
  %v80 = vshrl.u32 %v79, 7
  %v81 = vsub.s32 %v78, %v80
  %v82 = vrot.slane %v66, %v81
  %v83 = vadd.s32 %v78, 4294967288
  %v84 = vlaneseq
  %v85 = vshrl.u32 %v84, 7
  %v86 = vsub.s32 %v83, %v85
  %v87 = vrot.slane %v68, %v86
  %vm88 = vcmask 130112
  %v89 = vsel %vm88, %v87, %v82
  %v90 = vlaneseq
  %v91 = vshrl.u32 %v90, 7
  %v92 = vsub.s32 %v78, %v91
  %v93 = vrot.slane %v70, %v92
  %v94 = vlaneseq
  %v95 = vshrl.u32 %v94, 7
  %v96 = vsub.s32 %v83, %v95
  %v97 = vrot.slane %v72, %v96
  %v98 = vsel %vm88, %v97, %v93
  %vm99 = vcmask 1041409
  %v100 = vsel %vm99, %v98, %v89
  %vm102 = vcmask 123904
  %v103 = vsel %vm102, %v100, 0.0
  %104 = vadd.xlane.f32.xlu0 %v103
  %v105 = vpop.xlane.xlu0 %104
  %s106 = sld [smem:[#allocation2]]
  %v107 = vstv %s106
  %v108 = vadd.f32 %v105, %v107
  %v109 = vsub.f32 0.0, %v108
  %v110 = vmul.f32 %v109, 1.442695
  %v111 = vpow.pop %v110
  %v112 = vadd.f32 %v111, 1.0
  %v113 = vrcp.pop %v112
  %v114 = vmul.f32 1.0, %v113
  %vm115 = vcmask 1024
  %116 = vst.msk [vmem:[%s5] sm:$0x3] %vm115, %v114
  // Predicated region
  $region22: #{discriminator_forward.9} parent=0 // pred_check
    _
  $region23: #{discriminator_forward.9} parent=0 // pred_check_branch
    %118 = sbr.rel (0) target = $region25
  $region24: #{discriminator_forward.9} parent=0 // pred_region
    _
  $region25: #{discriminator_forward.9} parent=0 // pred_fallthru
    _
  // Predicated region
  $region26: #{discriminator_forward.9} parent=0 // pred_check
    _
  $region27: #{discriminator_forward.9} parent=0 // pred_check_branch
    %120 = sbr.rel (0) target = $region29
  $region28: #{discriminator_forward.9} parent=0 // pred_region
    _
  $region29: #{discriminator_forward.9} parent=0 // pred_fallthru
    _

// kernel: discriminator_forward.8
$region0: #{discriminator_forward.8}
  #allocation0 [shape = 'u32[]', space=smem, size = 0x4, offset = 0x4, fixed_abs, tag = 'smem constant byte address 0x4 - core index']
  #allocation1 [shape = 'u32[144,128]{1,0:T(1,128)}', space=vmem, size = 0x12000, scoped, tag = 'internal scratch']
  %s0 = inlined_call_operand.vmem [shape: bf16[32,2048], index: 0, kind: input, shape index: {}]
  %s1 = inlined_call_operand.vmem [shape: bf16[2048,128], index: 1, kind: input, shape index: {}]
  %s2 = inlined_call_operand.vmem [shape: f32[32,128], index: 2, kind: output, shape index: {0}]
  %s3 = inlined_call_operand.vmem [shape: f32[1,2,128], index: 3, kind: output, shape index: {1}]
  %4 = xla_tuple %s2, %s3
  %s5 = sld [smem:[#allocation0]]
  $region26: #{discriminator_forward.8} parent=0
    _
  %s7 = ssub.s32 1, %s5
  %s8 = scalar_select 0, %s7, %s5
  // Predicated region
  $region2: #{discriminator_forward.8} parent=0 // pred_check
    _
  $region3: #{discriminator_forward.8} parent=0 // pred_check_branch
    %10 = sbr.rel (0) target = $region5
  $region4: #{discriminator_forward.8} parent=0 // pred_region
    _
  $region5: #{discriminator_forward.8} parent=0 // pred_fallthru
    _
  // Predicated region
  $region6: #{discriminator_forward.8} parent=0 // pred_check
    _
  $region7: #{discriminator_forward.8} parent=0 // pred_check_branch
    %12 = sbr.rel (0) target = $region9
  $region8: #{discriminator_forward.8} parent=0 // pred_region
    _
  $region9: #{discriminator_forward.8} parent=0 // pred_fallthru
    _
  %v14 = vld [vmem:[%s0] sm:$0xff]
  %v15 = vld [vmem:[%s0 + $0x8] sm:$0xff]
  %v16 = vld [vmem:[%s0 + $0x10] sm:$0xff]
  %v17 = vld [vmem:[%s0 + $0x18] sm:$0xff]
  %v18 = vld [vmem:[%s0 + $0x20] sm:$0xff]
  %v19 = vld [vmem:[%s0 + $0x28] sm:$0xff]
  %v20 = vld [vmem:[%s0 + $0x30] sm:$0xff]
  %v21 = vld [vmem:[%s0 + $0x38] sm:$0xff]
  %v22 = vld [vmem:[%s0 + $0x40] sm:$0xff]
  %v23 = vld [vmem:[%s0 + $0x48] sm:$0xff]
  %v24 = vld [vmem:[%s0 + $0x50] sm:$0xff]
  %v25 = vld [vmem:[%s0 + $0x58] sm:$0xff]
  %v26 = vld [vmem:[%s0 + $0x60] sm:$0xff]
  %v27 = vld [vmem:[%s0 + $0x68] sm:$0xff]
  %v28 = vld [vmem:[%s0 + $0x70] sm:$0xff]
  %v29 = vld [vmem:[%s0 + $0x78] sm:$0xff]
  %v30 = vld [vmem:[%s0 + $0x80] sm:$0xff]
  %v31 = vld [vmem:[%s0 + $0x88] sm:$0xff]
  %v32 = vld [vmem:[%s0 + $0x90] sm:$0xff]
  %v33 = vld [vmem:[%s0 + $0x98] sm:$0xff]
  %v34 = vld [vmem:[%s0 + $0xa0] sm:$0xff]
  %v35 = vld [vmem:[%s0 + $0xa8] sm:$0xff]
  %v36 = vld [vmem:[%s0 + $0xb0] sm:$0xff]
  %v37 = vld [vmem:[%s0 + $0xb8] sm:$0xff]
  %v38 = vld [vmem:[%s0 + $0xc0] sm:$0xff]
  %v39 = vld [vmem:[%s0 + $0xc8] sm:$0xff]
  %v40 = vld [vmem:[%s0 + $0xd0] sm:$0xff]
  %v41 = vld [vmem:[%s0 + $0xd8] sm:$0xff]
  %v42 = vld [vmem:[%s0 + $0xe0] sm:$0xff]
  %v43 = vld [vmem:[%s0 + $0xe8] sm:$0xff]
  %v44 = vld [vmem:[%s0 + $0xf0] sm:$0xff]
  %v45 = vld [vmem:[%s0 + $0xf8] sm:$0xff]
  %v46 = vld [vmem:[%s1] sm:$0xf]
  %v47 = vld [vmem:[%s1 + $0x4] sm:$0xf]
  %v48 = vld [vmem:[%s1 + $0x8] sm:$0xf]
  %v49 = vld [vmem:[%s1 + $0xc] sm:$0xf]
  %v50 = vld [vmem:[%s1 + $0x10] sm:$0xf]
  %v51 = vld [vmem:[%s1 + $0x14] sm:$0xf]
  %v52 = vld [vmem:[%s1 + $0x18] sm:$0xf]
  %v53 = vld [vmem:[%s1 + $0x1c] sm:$0xf]
  %v54 = vld [vmem:[%s1 + $0x20] sm:$0xf]
  %v55 = vld [vmem:[%s1 + $0x24] sm:$0xf]
  %v56 = vld [vmem:[%s1 + $0x28] sm:$0xf]
  %v57 = vld [vmem:[%s1 + $0x2c] sm:$0xf]
  %v58 = vld [vmem:[%s1 + $0x30] sm:$0xf]
  %v59 = vld [vmem:[%s1 + $0x34] sm:$0xf]
  %v60 = vld [vmem:[%s1 + $0x38] sm:$0xf]
  %v61 = vld [vmem:[%s1 + $0x3c] sm:$0xf]
  %v62 = vld [vmem:[%s1 + $0x40] sm:$0xf]
  %v63 = vld [vmem:[%s1 + $0x44] sm:$0xf]
  %v64 = vld [vmem:[%s1 + $0x48] sm:$0xf]
  %v65 = vld [vmem:[%s1 + $0x4c] sm:$0xf]
  %v66 = vld [vmem:[%s1 + $0x50] sm:$0xf]
  %v67 = vld [vmem:[%s1 + $0x54] sm:$0xf]
  %v68 = vld [vmem:[%s1 + $0x58] sm:$0xf]
  %v69 = vld [vmem:[%s1 + $0x5c] sm:$0xf]
  %v70 = vld [vmem:[%s1 + $0x60] sm:$0xf]
  %v71 = vld [vmem:[%s1 + $0x64] sm:$0xf]
  %v72 = vld [vmem:[%s1 + $0x68] sm:$0xf]
  %v73 = vld [vmem:[%s1 + $0x6c] sm:$0xf]
  %v74 = vld [vmem:[%s1 + $0x70] sm:$0xf]
  %v75 = vld [vmem:[%s1 + $0x74] sm:$0xf]
  %v76 = vld [vmem:[%s1 + $0x78] sm:$0xf]
  %v77 = vld [vmem:[%s1 + $0x7c] sm:$0xf]
  %v78 = vld [vmem:[%s1 + $0x80] sm:$0xf]
  %v79 = vld [vmem:[%s1 + $0x84] sm:$0xf]
  %v80 = vld [vmem:[%s1 + $0x88] sm:$0xf]
  %v81 = vld [vmem:[%s1 + $0x8c] sm:$0xf]
  %v82 = vld [vmem:[%s1 + $0x90] sm:$0xf]
  %v83 = vld [vmem:[%s1 + $0x94] sm:$0xf]
  %v84 = vld [vmem:[%s1 + $0x98] sm:$0xf]
  %v85 = vld [vmem:[%s1 + $0x9c] sm:$0xf]
  %v86 = vld [vmem:[%s1 + $0xa0] sm:$0xf]
  %v87 = vld [vmem:[%s1 + $0xa4] sm:$0xf]
  %v88 = vld [vmem:[%s1 + $0xa8] sm:$0xf]
  %v89 = vld [vmem:[%s1 + $0xac] sm:$0xf]
  %v90 = vld [vmem:[%s1 + $0xb0] sm:$0xf]
  %v91 = vld [vmem:[%s1 + $0xb4] sm:$0xf]
  %v92 = vld [vmem:[%s1 + $0xb8] sm:$0xf]
  %v93 = vld [vmem:[%s1 + $0xbc] sm:$0xf]
  %v94 = vld [vmem:[%s1 + $0xc0] sm:$0xf]
  %v95 = vld [vmem:[%s1 + $0xc4] sm:$0xf]
  %v96 = vld [vmem:[%s1 + $0xc8] sm:$0xf]
  %v97 = vld [vmem:[%s1 + $0xcc] sm:$0xf]
  %v98 = vld [vmem:[%s1 + $0xd0] sm:$0xf]
  %v99 = vld [vmem:[%s1 + $0xd4] sm:$0xf]
  %v100 = vld [vmem:[%s1 + $0xd8] sm:$0xf]
  %v101 = vld [vmem:[%s1 + $0xdc] sm:$0xf]
  %v102 = vld [vmem:[%s1 + $0xe0] sm:$0xf]
  %v103 = vld [vmem:[%s1 + $0xe4] sm:$0xf]
  %v104 = vld [vmem:[%s1 + $0xe8] sm:$0xf]
  %v105 = vld [vmem:[%s1 + $0xec] sm:$0xf]
  %v106 = vld [vmem:[%s1 + $0xf0] sm:$0xf]
  %v107 = vld [vmem:[%s1 + $0xf4] sm:$0xf]
  %v108 = vld [vmem:[%s1 + $0xf8] sm:$0xf]
  %v109 = vld [vmem:[%s1 + $0xfc] sm:$0xf]
  %v110 = vld [vmem:[%s1 + $0x100] sm:$0xf]
  %v111 = vld [vmem:[%s1 + $0x104] sm:$0xf]
  %v112 = vld [vmem:[%s1 + $0x108] sm:$0xf]
  %v113 = vld [vmem:[%s1 + $0x10c] sm:$0xf]
  %v114 = vld [vmem:[%s1 + $0x110] sm:$0xf]
  %v115 = vld [vmem:[%s1 + $0x114] sm:$0xf]
  %v116 = vld [vmem:[%s1 + $0x118] sm:$0xf]
  %v117 = vld [vmem:[%s1 + $0x11c] sm:$0xf]
  %v118 = vld [vmem:[%s1 + $0x120] sm:$0xf]
  %v119 = vld [vmem:[%s1 + $0x124] sm:$0xf]
  %v120 = vld [vmem:[%s1 + $0x128] sm:$0xf]
  %v121 = vld [vmem:[%s1 + $0x12c] sm:$0xf]
  %v122 = vld [vmem:[%s1 + $0x130] sm:$0xf]
  %v123 = vld [vmem:[%s1 + $0x134] sm:$0xf]
  %v124 = vld [vmem:[%s1 + $0x138] sm:$0xf]
  %v125 = vld [vmem:[%s1 + $0x13c] sm:$0xf]
  %v126 = vld [vmem:[%s1 + $0x140] sm:$0xf]
  %v127 = vld [vmem:[%s1 + $0x144] sm:$0xf]
  %v128 = vld [vmem:[%s1 + $0x148] sm:$0xf]
  %v129 = vld [vmem:[%s1 + $0x14c] sm:$0xf]
  %v130 = vld [vmem:[%s1 + $0x150] sm:$0xf]
  %v131 = vld [vmem:[%s1 + $0x154] sm:$0xf]
  %v132 = vld [vmem:[%s1 + $0x158] sm:$0xf]
  %v133 = vld [vmem:[%s1 + $0x15c] sm:$0xf]
  %v134 = vld [vmem:[%s1 + $0x160] sm:$0xf]
  %v135 = vld [vmem:[%s1 + $0x164] sm:$0xf]
  %v136 = vld [vmem:[%s1 + $0x168] sm:$0xf]
  %v137 = vld [vmem:[%s1 + $0x16c] sm:$0xf]
  %v138 = vld [vmem:[%s1 + $0x170] sm:$0xf]
  %v139 = vld [vmem:[%s1 + $0x174] sm:$0xf]
  %v140 = vld [vmem:[%s1 + $0x178] sm:$0xf]
  %v141 = vld [vmem:[%s1 + $0x17c] sm:$0xf]
  %v142 = vld [vmem:[%s1 + $0x180] sm:$0xf]
  %v143 = vld [vmem:[%s1 + $0x184] sm:$0xf]
  %v144 = vld [vmem:[%s1 + $0x188] sm:$0xf]
  %v145 = vld [vmem:[%s1 + $0x18c] sm:$0xf]
  %v146 = vld [vmem:[%s1 + $0x190] sm:$0xf]
  %v147 = vld [vmem:[%s1 + $0x194] sm:$0xf]
  %v148 = vld [vmem:[%s1 + $0x198] sm:$0xf]
  %v149 = vld [vmem:[%s1 + $0x19c] sm:$0xf]
  %v150 = vld [vmem:[%s1 + $0x1a0] sm:$0xf]
  %v151 = vld [vmem:[%s1 + $0x1a4] sm:$0xf]
  %v152 = vld [vmem:[%s1 + $0x1a8] sm:$0xf]
  %v153 = vld [vmem:[%s1 + $0x1ac] sm:$0xf]
  %v154 = vld [vmem:[%s1 + $0x1b0] sm:$0xf]
  %v155 = vld [vmem:[%s1 + $0x1b4] sm:$0xf]
  %v156 = vld [vmem:[%s1 + $0x1b8] sm:$0xf]
  %v157 = vld [vmem:[%s1 + $0x1bc] sm:$0xf]
  %v158 = vld [vmem:[%s1 + $0x1c0] sm:$0xf]
  %v159 = vld [vmem:[%s1 + $0x1c4] sm:$0xf]
  %v160 = vld [vmem:[%s1 + $0x1c8] sm:$0xf]
  %v161 = vld [vmem:[%s1 + $0x1cc] sm:$0xf]
  %v162 = vld [vmem:[%s1 + $0x1d0] sm:$0xf]
  %v163 = vld [vmem:[%s1 + $0x1d4] sm:$0xf]
  %v164 = vld [vmem:[%s1 + $0x1d8] sm:$0xf]
  %v165 = vld [vmem:[%s1 + $0x1dc] sm:$0xf]
  %v166 = vld [vmem:[%s1 + $0x1e0] sm:$0xf]
  %v167 = vld [vmem:[%s1 + $0x1e4] sm:$0xf]
  %v168 = vld [vmem:[%s1 + $0x1e8] sm:$0xf]
  %v169 = vld [vmem:[%s1 + $0x1ec] sm:$0xf]
  %v170 = vld [vmem:[%s1 + $0x1f0] sm:$0xf]
  %v171 = vld [vmem:[%s1 + $0x1f4] sm:$0xf]
  %v172 = vld [vmem:[%s1 + $0x1f8] sm:$0xf]
  %v173 = vld [vmem:[%s1 + $0x1fc] sm:$0xf]
  %v174 = vld [vmem:[%s1 + $0x200] sm:$0xf]
  %v175 = vld [vmem:[%s1 + $0x204] sm:$0xf]
  %v176 = vld [vmem:[%s1 + $0x208] sm:$0xf]
  %v177 = vld [vmem:[%s1 + $0x20c] sm:$0xf]
  %v178 = vld [vmem:[%s1 + $0x210] sm:$0xf]
  %v179 = vld [vmem:[%s1 + $0x214] sm:$0xf]
  %v180 = vld [vmem:[%s1 + $0x218] sm:$0xf]
  %v181 = vld [vmem:[%s1 + $0x21c] sm:$0xf]
  %v182 = vld [vmem:[%s1 + $0x220] sm:$0xf]
  %v183 = vld [vmem:[%s1 + $0x224] sm:$0xf]
  %v184 = vld [vmem:[%s1 + $0x228] sm:$0xf]
  %v185 = vld [vmem:[%s1 + $0x22c] sm:$0xf]
  %v186 = vld [vmem:[%s1 + $0x230] sm:$0xf]
  %v187 = vld [vmem:[%s1 + $0x234] sm:$0xf]
  %v188 = vld [vmem:[%s1 + $0x238] sm:$0xf]
  %v189 = vld [vmem:[%s1 + $0x23c] sm:$0xf]
  %v190 = vld [vmem:[%s1 + $0x240] sm:$0xf]
  %v191 = vld [vmem:[%s1 + $0x244] sm:$0xf]
  %v192 = vld [vmem:[%s1 + $0x248] sm:$0xf]
  %v193 = vld [vmem:[%s1 + $0x24c] sm:$0xf]
  %v194 = vld [vmem:[%s1 + $0x250] sm:$0xf]
  %v195 = vld [vmem:[%s1 + $0x254] sm:$0xf]
  %v196 = vld [vmem:[%s1 + $0x258] sm:$0xf]
  %v197 = vld [vmem:[%s1 + $0x25c] sm:$0xf]
  %v198 = vld [vmem:[%s1 + $0x260] sm:$0xf]
  %v199 = vld [vmem:[%s1 + $0x264] sm:$0xf]
  %v200 = vld [vmem:[%s1 + $0x268] sm:$0xf]
  %v201 = vld [vmem:[%s1 + $0x26c] sm:$0xf]
  %v202 = vld [vmem:[%s1 + $0x270] sm:$0xf]
  %v203 = vld [vmem:[%s1 + $0x274] sm:$0xf]
  %v204 = vld [vmem:[%s1 + $0x278] sm:$0xf]
  %v205 = vld [vmem:[%s1 + $0x27c] sm:$0xf]
  %v206 = vld [vmem:[%s1 + $0x280] sm:$0xf]
  %v207 = vld [vmem:[%s1 + $0x284] sm:$0xf]
  %v208 = vld [vmem:[%s1 + $0x288] sm:$0xf]
  %v209 = vld [vmem:[%s1 + $0x28c] sm:$0xf]
  %v210 = vld [vmem:[%s1 + $0x290] sm:$0xf]
  %v211 = vld [vmem:[%s1 + $0x294] sm:$0xf]
  %v212 = vld [vmem:[%s1 + $0x298] sm:$0xf]
  %v213 = vld [vmem:[%s1 + $0x29c] sm:$0xf]
  %v214 = vld [vmem:[%s1 + $0x2a0] sm:$0xf]
  %v215 = vld [vmem:[%s1 + $0x2a4] sm:$0xf]
  %v216 = vld [vmem:[%s1 + $0x2a8] sm:$0xf]
  %v217 = vld [vmem:[%s1 + $0x2ac] sm:$0xf]
  %v218 = vld [vmem:[%s1 + $0x2b0] sm:$0xf]
  %v219 = vld [vmem:[%s1 + $0x2b4] sm:$0xf]
  %v220 = vld [vmem:[%s1 + $0x2b8] sm:$0xf]
  %v221 = vld [vmem:[%s1 + $0x2bc] sm:$0xf]
  %v222 = vld [vmem:[%s1 + $0x2c0] sm:$0xf]
  %v223 = vld [vmem:[%s1 + $0x2c4] sm:$0xf]
  %v224 = vld [vmem:[%s1 + $0x2c8] sm:$0xf]
  %v225 = vld [vmem:[%s1 + $0x2cc] sm:$0xf]
  %v226 = vld [vmem:[%s1 + $0x2d0] sm:$0xf]
  %v227 = vld [vmem:[%s1 + $0x2d4] sm:$0xf]
  %v228 = vld [vmem:[%s1 + $0x2d8] sm:$0xf]
  %v229 = vld [vmem:[%s1 + $0x2dc] sm:$0xf]
  %v230 = vld [vmem:[%s1 + $0x2e0] sm:$0xf]
  %v231 = vld [vmem:[%s1 + $0x2e4] sm:$0xf]
  %v232 = vld [vmem:[%s1 + $0x2e8] sm:$0xf]
  %v233 = vld [vmem:[%s1 + $0x2ec] sm:$0xf]
  %v234 = vld [vmem:[%s1 + $0x2f0] sm:$0xf]
  %v235 = vld [vmem:[%s1 + $0x2f4] sm:$0xf]
  %v236 = vld [vmem:[%s1 + $0x2f8] sm:$0xf]
  %v237 = vld [vmem:[%s1 + $0x2fc] sm:$0xf]
  %v238 = vld [vmem:[%s1 + $0x300] sm:$0xf]
  %v239 = vld [vmem:[%s1 + $0x304] sm:$0xf]
  %v240 = vld [vmem:[%s1 + $0x308] sm:$0xf]
  %v241 = vld [vmem:[%s1 + $0x30c] sm:$0xf]
  %v242 = vld [vmem:[%s1 + $0x310] sm:$0xf]
  %v243 = vld [vmem:[%s1 + $0x314] sm:$0xf]
  %v244 = vld [vmem:[%s1 + $0x318] sm:$0xf]
  %v245 = vld [vmem:[%s1 + $0x31c] sm:$0xf]
  %v246 = vld [vmem:[%s1 + $0x320] sm:$0xf]
  %v247 = vld [vmem:[%s1 + $0x324] sm:$0xf]
  %v248 = vld [vmem:[%s1 + $0x328] sm:$0xf]
  %v249 = vld [vmem:[%s1 + $0x32c] sm:$0xf]
  %v250 = vld [vmem:[%s1 + $0x330] sm:$0xf]
  %v251 = vld [vmem:[%s1 + $0x334] sm:$0xf]
  %v252 = vld [vmem:[%s1 + $0x338] sm:$0xf]
  %v253 = vld [vmem:[%s1 + $0x33c] sm:$0xf]
  %v254 = vld [vmem:[%s1 + $0x340] sm:$0xf]
  %v255 = vld [vmem:[%s1 + $0x344] sm:$0xf]
  %v256 = vld [vmem:[%s1 + $0x348] sm:$0xf]
  %v257 = vld [vmem:[%s1 + $0x34c] sm:$0xf]
  %v258 = vld [vmem:[%s1 + $0x350] sm:$0xf]
  %v259 = vld [vmem:[%s1 + $0x354] sm:$0xf]
  %v260 = vld [vmem:[%s1 + $0x358] sm:$0xf]
  %v261 = vld [vmem:[%s1 + $0x35c] sm:$0xf]
  %v262 = vld [vmem:[%s1 + $0x360] sm:$0xf]
  %v263 = vld [vmem:[%s1 + $0x364] sm:$0xf]
  %v264 = vld [vmem:[%s1 + $0x368] sm:$0xf]
  %v265 = vld [vmem:[%s1 + $0x36c] sm:$0xf]
  %v266 = vld [vmem:[%s1 + $0x370] sm:$0xf]
  %v267 = vld [vmem:[%s1 + $0x374] sm:$0xf]
  %v268 = vld [vmem:[%s1 + $0x378] sm:$0xf]
  %v269 = vld [vmem:[%s1 + $0x37c] sm:$0xf]
  %v270 = vld [vmem:[%s1 + $0x380] sm:$0xf]
  %v271 = vld [vmem:[%s1 + $0x384] sm:$0xf]
  %v272 = vld [vmem:[%s1 + $0x388] sm:$0xf]
  %v273 = vld [vmem:[%s1 + $0x38c] sm:$0xf]
  %v274 = vld [vmem:[%s1 + $0x390] sm:$0xf]
  %v275 = vld [vmem:[%s1 + $0x394] sm:$0xf]
  %v276 = vld [vmem:[%s1 + $0x398] sm:$0xf]
  %v277 = vld [vmem:[%s1 + $0x39c] sm:$0xf]
  %v278 = vld [vmem:[%s1 + $0x3a0] sm:$0xf]
  %v279 = vld [vmem:[%s1 + $0x3a4] sm:$0xf]
  %v280 = vld [vmem:[%s1 + $0x3a8] sm:$0xf]
  %v281 = vld [vmem:[%s1 + $0x3ac] sm:$0xf]
  %v282 = vld [vmem:[%s1 + $0x3b0] sm:$0xf]
  %v283 = vld [vmem:[%s1 + $0x3b4] sm:$0xf]
  %v284 = vld [vmem:[%s1 + $0x3b8] sm:$0xf]
  %v285 = vld [vmem:[%s1 + $0x3bc] sm:$0xf]
  %v286 = vld [vmem:[%s1 + $0x3c0] sm:$0xf]
  %v287 = vld [vmem:[%s1 + $0x3c4] sm:$0xf]
  %v288 = vld [vmem:[%s1 + $0x3c8] sm:$0xf]
  %v289 = vld [vmem:[%s1 + $0x3cc] sm:$0xf]
  %v290 = vld [vmem:[%s1 + $0x3d0] sm:$0xf]
  %v291 = vld [vmem:[%s1 + $0x3d4] sm:$0xf]
  %v292 = vld [vmem:[%s1 + $0x3d8] sm:$0xf]
  %v293 = vld [vmem:[%s1 + $0x3dc] sm:$0xf]
  %v294 = vld [vmem:[%s1 + $0x3e0] sm:$0xf]
  %v295 = vld [vmem:[%s1 + $0x3e4] sm:$0xf]
  %v296 = vld [vmem:[%s1 + $0x3e8] sm:$0xf]
  %v297 = vld [vmem:[%s1 + $0x3ec] sm:$0xf]
  %v298 = vld [vmem:[%s1 + $0x3f0] sm:$0xf]
  %v299 = vld [vmem:[%s1 + $0x3f4] sm:$0xf]
  %v300 = vld [vmem:[%s1 + $0x3f8] sm:$0xf]
  %v301 = vld [vmem:[%s1 + $0x3fc] sm:$0xf]
  %v334 = vunpack.c.l.b16 %v14
  %v335 = vunpack.c.h.b16 %v14
  %v336 = vunpack.c.l.b16 %v15
  %v337 = vunpack.c.h.b16 %v15
  %v338 = vunpack.c.l.b16 %v16
  %v339 = vunpack.c.h.b16 %v16
  %v340 = vunpack.c.l.b16 %v17
  %v341 = vunpack.c.h.b16 %v17
  %v342 = vunpack.c.l.b16 %v18
  %v343 = vunpack.c.h.b16 %v18
  %v344 = vunpack.c.l.b16 %v19
  %v345 = vunpack.c.h.b16 %v19
  %v346 = vunpack.c.l.b16 %v20
  %v347 = vunpack.c.h.b16 %v20
  %v348 = vunpack.c.l.b16 %v21
  %v349 = vunpack.c.h.b16 %v21
  %v350 = vunpack.c.l.b16 %v22
  %v351 = vunpack.c.h.b16 %v22
  %v352 = vunpack.c.l.b16 %v23
  %v353 = vunpack.c.h.b16 %v23
  %v354 = vunpack.c.l.b16 %v24
  %v355 = vunpack.c.h.b16 %v24
  %v356 = vunpack.c.l.b16 %v25
  %v357 = vunpack.c.h.b16 %v25
  %v358 = vunpack.c.l.b16 %v26
  %v359 = vunpack.c.h.b16 %v26
  %v360 = vunpack.c.l.b16 %v27
  %v361 = vunpack.c.h.b16 %v27
  %v362 = vunpack.c.l.b16 %v28
  %v363 = vunpack.c.h.b16 %v28
  %v364 = vunpack.c.l.b16 %v29
  %v365 = vunpack.c.h.b16 %v29
  %v366 = vunpack.c.l.b16 %v30
  %v367 = vunpack.c.h.b16 %v30
  %v368 = vunpack.c.l.b16 %v31
  %v369 = vunpack.c.h.b16 %v31
  %v370 = vunpack.c.l.b16 %v32
  %v371 = vunpack.c.h.b16 %v32
  %v372 = vunpack.c.l.b16 %v33
  %v373 = vunpack.c.h.b16 %v33
  %v374 = vunpack.c.l.b16 %v34
  %v375 = vunpack.c.h.b16 %v34
  %v376 = vunpack.c.l.b16 %v35
  %v377 = vunpack.c.h.b16 %v35
  %v378 = vunpack.c.l.b16 %v36
  %v379 = vunpack.c.h.b16 %v36
  %v380 = vunpack.c.l.b16 %v37
  %v381 = vunpack.c.h.b16 %v37
  %v382 = vunpack.c.l.b16 %v38
  %v383 = vunpack.c.h.b16 %v38
  %v384 = vunpack.c.l.b16 %v39
  %v385 = vunpack.c.h.b16 %v39
  %v386 = vunpack.c.l.b16 %v40
  %v387 = vunpack.c.h.b16 %v40
  %v388 = vunpack.c.l.b16 %v41
  %v389 = vunpack.c.h.b16 %v41
  %v390 = vunpack.c.l.b16 %v42
  %v391 = vunpack.c.h.b16 %v42
  %v392 = vunpack.c.l.b16 %v43
  %v393 = vunpack.c.h.b16 %v43
  %v394 = vunpack.c.l.b16 %v44
  %v395 = vunpack.c.h.b16 %v44
  %v396 = vunpack.c.l.b16 %v45
  %v397 = vunpack.c.h.b16 %v45
  %v398 = vpack.c.b16 %v350, %v334
  %v399 = vpack.c.b16 %v351, %v335
  %v400 = vpack.c.b16 %v352, %v336
  %v401 = vpack.c.b16 %v353, %v337
  %v402 = vpack.c.b16 %v354, %v338
  %v403 = vpack.c.b16 %v355, %v339
  %v404 = vpack.c.b16 %v356, %v340
  %v405 = vpack.c.b16 %v357, %v341
  %v406 = vpack.c.b16 %v358, %v342
  %v407 = vpack.c.b16 %v359, %v343
  %v408 = vpack.c.b16 %v360, %v344
  %v409 = vpack.c.b16 %v361, %v345
  %v410 = vpack.c.b16 %v362, %v346
  %v411 = vpack.c.b16 %v363, %v347
  %v412 = vpack.c.b16 %v364, %v348
  %v413 = vpack.c.b16 %v365, %v349
  %v414 = vpack.c.b16 %v382, %v366
  %v415 = vpack.c.b16 %v383, %v367
  %v416 = vpack.c.b16 %v384, %v368
  %v417 = vpack.c.b16 %v385, %v369
  %v418 = vpack.c.b16 %v386, %v370
  %v419 = vpack.c.b16 %v387, %v371
  %v420 = vpack.c.b16 %v388, %v372
  %v421 = vpack.c.b16 %v389, %v373
  %v422 = vpack.c.b16 %v390, %v374
  %v423 = vpack.c.b16 %v391, %v375
  %v424 = vpack.c.b16 %v392, %v376
  %v425 = vpack.c.b16 %v393, %v377
  %v426 = vpack.c.b16 %v394, %v378
  %v427 = vpack.c.b16 %v395, %v379
  %v428 = vpack.c.b16 %v396, %v380
  %v429 = vpack.c.b16 %v397, %v381
  %v718 = vunpack.c.l.b16 %v46
  %v719 = vunpack.c.l.b16 %v47
  %v720 = vunpack.c.l.b16 %v48
  %v721 = vunpack.c.l.b16 %v49
  %v722 = vunpack.c.l.b16 %v50
  %v723 = vunpack.c.l.b16 %v51
  %v724 = vunpack.c.l.b16 %v52
  %v725 = vunpack.c.l.b16 %v53
  %v726 = vunpack.c.l.b16 %v54
  %v727 = vunpack.c.l.b16 %v55
  %v728 = vunpack.c.l.b16 %v56
  %v729 = vunpack.c.l.b16 %v57
  %v730 = vunpack.c.l.b16 %v58
  %v731 = vunpack.c.l.b16 %v59
  %v732 = vunpack.c.l.b16 %v60
  %v733 = vunpack.c.l.b16 %v61
  %v734 = vunpack.c.l.b16 %v62
  %v735 = vunpack.c.l.b16 %v63
  %v736 = vunpack.c.l.b16 %v64
  %v737 = vunpack.c.l.b16 %v65
  %v738 = vunpack.c.l.b16 %v66
  %v739 = vunpack.c.l.b16 %v67
  %v740 = vunpack.c.l.b16 %v68
  %v741 = vunpack.c.l.b16 %v69
  %v742 = vunpack.c.l.b16 %v70
  %v743 = vunpack.c.l.b16 %v71
  %v744 = vunpack.c.l.b16 %v72
  %v745 = vunpack.c.l.b16 %v73
  %v746 = vunpack.c.l.b16 %v74
  %v747 = vunpack.c.l.b16 %v75
  %v748 = vunpack.c.l.b16 %v76
  %v749 = vunpack.c.l.b16 %v77
  %v750 = vunpack.c.l.b16 %v78
  %v751 = vunpack.c.l.b16 %v79
  %v752 = vunpack.c.l.b16 %v80
  %v753 = vunpack.c.l.b16 %v81
  %v754 = vunpack.c.l.b16 %v82
  %v755 = vunpack.c.l.b16 %v83
  %v756 = vunpack.c.l.b16 %v84
  %v757 = vunpack.c.l.b16 %v85
  %v758 = vunpack.c.l.b16 %v86
  %v759 = vunpack.c.l.b16 %v87
  %v760 = vunpack.c.l.b16 %v88
  %v761 = vunpack.c.l.b16 %v89
  %v762 = vunpack.c.l.b16 %v90
  %v763 = vunpack.c.l.b16 %v91
  %v764 = vunpack.c.l.b16 %v92
  %v765 = vunpack.c.l.b16 %v93
  %v766 = vunpack.c.l.b16 %v94
  %v767 = vunpack.c.l.b16 %v95
  %v768 = vunpack.c.l.b16 %v96
  %v769 = vunpack.c.l.b16 %v97
  %v770 = vunpack.c.l.b16 %v98
  %v771 = vunpack.c.l.b16 %v99
  %v772 = vunpack.c.l.b16 %v100
  %v773 = vunpack.c.l.b16 %v101
  %v774 = vunpack.c.l.b16 %v102
  %v775 = vunpack.c.l.b16 %v103
  %v776 = vunpack.c.l.b16 %v104
  %v777 = vunpack.c.l.b16 %v105
  %v778 = vunpack.c.l.b16 %v106
  %v779 = vunpack.c.l.b16 %v107
  %v780 = vunpack.c.l.b16 %v108
  %v781 = vunpack.c.l.b16 %v109
  %v782 = vunpack.c.l.b16 %v110
  %v783 = vunpack.c.l.b16 %v111
  %v784 = vunpack.c.l.b16 %v112
  %v785 = vunpack.c.l.b16 %v113
  %v786 = vunpack.c.l.b16 %v114
  %v787 = vunpack.c.l.b16 %v115
  %v788 = vunpack.c.l.b16 %v116
  %v789 = vunpack.c.l.b16 %v117
  %v790 = vunpack.c.l.b16 %v118
  %v791 = vunpack.c.l.b16 %v119
  %v792 = vunpack.c.l.b16 %v120
  %v793 = vunpack.c.l.b16 %v121
  %v794 = vunpack.c.l.b16 %v122
  %v795 = vunpack.c.l.b16 %v123
  %v796 = vunpack.c.l.b16 %v124
  %v797 = vunpack.c.l.b16 %v125
  %v798 = vunpack.c.l.b16 %v126
  %v799 = vunpack.c.l.b16 %v127
  %v800 = vunpack.c.l.b16 %v128
  %v801 = vunpack.c.l.b16 %v129
  %v802 = vunpack.c.l.b16 %v130
  %v803 = vunpack.c.l.b16 %v131
  %v804 = vunpack.c.l.b16 %v132
  %v805 = vunpack.c.l.b16 %v133
  %v806 = vunpack.c.l.b16 %v134
  %v807 = vunpack.c.l.b16 %v135
  %v808 = vunpack.c.l.b16 %v136
  %v809 = vunpack.c.l.b16 %v137
  %v810 = vunpack.c.l.b16 %v138
  %v811 = vunpack.c.l.b16 %v139
  %v812 = vunpack.c.l.b16 %v140
  %v813 = vunpack.c.l.b16 %v141
  %v814 = vunpack.c.l.b16 %v142
  %v815 = vunpack.c.l.b16 %v143
  %v816 = vunpack.c.l.b16 %v144
  %v817 = vunpack.c.l.b16 %v145
  %v818 = vunpack.c.l.b16 %v146
  %v819 = vunpack.c.l.b16 %v147
  %v820 = vunpack.c.l.b16 %v148
  %v821 = vunpack.c.l.b16 %v149
  %v822 = vunpack.c.l.b16 %v150
  %v823 = vunpack.c.l.b16 %v151
  %v824 = vunpack.c.l.b16 %v152
  %v825 = vunpack.c.l.b16 %v153
  %v826 = vunpack.c.l.b16 %v154
  %v827 = vunpack.c.l.b16 %v155
  %v828 = vunpack.c.l.b16 %v156
  %v829 = vunpack.c.l.b16 %v157
  %v830 = vunpack.c.l.b16 %v158
  %v831 = vunpack.c.l.b16 %v159
  %v832 = vunpack.c.l.b16 %v160
  %v833 = vunpack.c.l.b16 %v161
  %v834 = vunpack.c.l.b16 %v162
  %v835 = vunpack.c.l.b16 %v163
  %v836 = vunpack.c.l.b16 %v164
  %v837 = vunpack.c.l.b16 %v165
  %v838 = vunpack.c.l.b16 %v166
  %v839 = vunpack.c.l.b16 %v167
  %v840 = vunpack.c.l.b16 %v168
  %v841 = vunpack.c.l.b16 %v169
  %v842 = vunpack.c.l.b16 %v170
  %v843 = vunpack.c.l.b16 %v171
  %v844 = vunpack.c.l.b16 %v172
  %v845 = vunpack.c.l.b16 %v173
  %v846 = vunpack.c.l.b16 %v174
  %v847 = vunpack.c.l.b16 %v175
  %v848 = vunpack.c.l.b16 %v176
  %v849 = vunpack.c.l.b16 %v177
  %v850 = vunpack.c.l.b16 %v178
  %v851 = vunpack.c.l.b16 %v179
  %v852 = vunpack.c.l.b16 %v180
  %v853 = vunpack.c.l.b16 %v181
  %v854 = vunpack.c.l.b16 %v182
  %v855 = vunpack.c.l.b16 %v183
  %v856 = vunpack.c.l.b16 %v184
  %v857 = vunpack.c.l.b16 %v185
  %v858 = vunpack.c.l.b16 %v186
  %v859 = vunpack.c.l.b16 %v187
  %v860 = vunpack.c.l.b16 %v188
  %v861 = vunpack.c.l.b16 %v189
  %v862 = vunpack.c.l.b16 %v190
  %v863 = vunpack.c.l.b16 %v191
  %v864 = vunpack.c.l.b16 %v192
  %v865 = vunpack.c.l.b16 %v193
  %v866 = vunpack.c.l.b16 %v194
  %v867 = vunpack.c.l.b16 %v195
  %v868 = vunpack.c.l.b16 %v196
  %v869 = vunpack.c.l.b16 %v197
  %v870 = vunpack.c.l.b16 %v198
  %v871 = vunpack.c.l.b16 %v199
  %v872 = vunpack.c.l.b16 %v200
  %v873 = vunpack.c.l.b16 %v201
  %v874 = vunpack.c.l.b16 %v202
  %v875 = vunpack.c.l.b16 %v203
  %v876 = vunpack.c.l.b16 %v204
  %v877 = vunpack.c.l.b16 %v205
  %v878 = vunpack.c.l.b16 %v206
  %v879 = vunpack.c.l.b16 %v207
  %v880 = vunpack.c.l.b16 %v208
  %v881 = vunpack.c.l.b16 %v209
  %v882 = vunpack.c.l.b16 %v210
  %v883 = vunpack.c.l.b16 %v211
  %v884 = vunpack.c.l.b16 %v212
  %v885 = vunpack.c.l.b16 %v213
  %v886 = vunpack.c.l.b16 %v214
  %v887 = vunpack.c.l.b16 %v215
  %v888 = vunpack.c.l.b16 %v216
  %v889 = vunpack.c.l.b16 %v217
  %v890 = vunpack.c.l.b16 %v218
  %v891 = vunpack.c.l.b16 %v219
  %v892 = vunpack.c.l.b16 %v220
  %v893 = vunpack.c.l.b16 %v221
  %v894 = vunpack.c.l.b16 %v222
  %v895 = vunpack.c.l.b16 %v223
  %v896 = vunpack.c.l.b16 %v224
  %v897 = vunpack.c.l.b16 %v225
  %v898 = vunpack.c.l.b16 %v226
  %v899 = vunpack.c.l.b16 %v227
  %v900 = vunpack.c.l.b16 %v228
  %v901 = vunpack.c.l.b16 %v229
  %v902 = vunpack.c.l.b16 %v230
  %v903 = vunpack.c.l.b16 %v231
  %v904 = vunpack.c.l.b16 %v232
  %v905 = vunpack.c.l.b16 %v233
  %v906 = vunpack.c.l.b16 %v234
  %v907 = vunpack.c.l.b16 %v235
  %v908 = vunpack.c.l.b16 %v236
  %v909 = vunpack.c.l.b16 %v237
  %v910 = vunpack.c.l.b16 %v238
  %v911 = vunpack.c.l.b16 %v239
  %v912 = vunpack.c.l.b16 %v240
  %v913 = vunpack.c.l.b16 %v241
  %v914 = vunpack.c.l.b16 %v242
  %v915 = vunpack.c.l.b16 %v243
  %v916 = vunpack.c.l.b16 %v244
  %v917 = vunpack.c.l.b16 %v245
  %v918 = vunpack.c.l.b16 %v246
  %v919 = vunpack.c.l.b16 %v247
  %v920 = vunpack.c.l.b16 %v248
  %v921 = vunpack.c.l.b16 %v249
  %v922 = vunpack.c.l.b16 %v250
  %v923 = vunpack.c.l.b16 %v251
  %v924 = vunpack.c.l.b16 %v252
  %v925 = vunpack.c.l.b16 %v253
  %v926 = vunpack.c.l.b16 %v254
  %v927 = vunpack.c.l.b16 %v255
  %v928 = vunpack.c.l.b16 %v256
  %v929 = vunpack.c.l.b16 %v257
  %v930 = vunpack.c.l.b16 %v258
  %v931 = vunpack.c.l.b16 %v259
  %v932 = vunpack.c.l.b16 %v260
  %v933 = vunpack.c.l.b16 %v261
  %v934 = vunpack.c.l.b16 %v262
  %v935 = vunpack.c.l.b16 %v263
  %v936 = vunpack.c.l.b16 %v264
  %v937 = vunpack.c.l.b16 %v265
  %v938 = vunpack.c.l.b16 %v266
  %v939 = vunpack.c.l.b16 %v267
  %v940 = vunpack.c.l.b16 %v268
  %v941 = vunpack.c.l.b16 %v269
  %v942 = vunpack.c.l.b16 %v270
  %v943 = vunpack.c.l.b16 %v271
  %v944 = vunpack.c.l.b16 %v272
  %v945 = vunpack.c.l.b16 %v273
  %v946 = vunpack.c.l.b16 %v274
  %v947 = vunpack.c.l.b16 %v275
  %v948 = vunpack.c.l.b16 %v276
  %v949 = vunpack.c.l.b16 %v277
  %v950 = vunpack.c.l.b16 %v278
  %v951 = vunpack.c.l.b16 %v279
  %v952 = vunpack.c.l.b16 %v280
  %v953 = vunpack.c.l.b16 %v281
  %v954 = vunpack.c.l.b16 %v282
  %v955 = vunpack.c.l.b16 %v283
  %v956 = vunpack.c.l.b16 %v284
  %v957 = vunpack.c.l.b16 %v285
  %v958 = vunpack.c.l.b16 %v286
  %v959 = vunpack.c.l.b16 %v287
  %v960 = vunpack.c.l.b16 %v288
  %v961 = vunpack.c.l.b16 %v289
  %v962 = vunpack.c.l.b16 %v290
  %v963 = vunpack.c.l.b16 %v291
  %v964 = vunpack.c.l.b16 %v292
  %v965 = vunpack.c.l.b16 %v293
  %v966 = vunpack.c.l.b16 %v294
  %v967 = vunpack.c.l.b16 %v295
  %v968 = vunpack.c.l.b16 %v296
  %v969 = vunpack.c.l.b16 %v297
  %v970 = vunpack.c.l.b16 %v298
  %v971 = vunpack.c.l.b16 %v299
  %v972 = vunpack.c.l.b16 %v300
  %v973 = vunpack.c.l.b16 %v301
  %v974 = vpack.c.b16 %v719, %v718
  %v975 = vpack.c.b16 %v721, %v720
  %v976 = vpack.c.b16 %v723, %v722
  %v977 = vpack.c.b16 %v725, %v724
  %v978 = vpack.c.b16 %v727, %v726
  %v979 = vpack.c.b16 %v729, %v728
  %v980 = vpack.c.b16 %v731, %v730
  %v981 = vpack.c.b16 %v733, %v732
  %v982 = vpack.c.b16 %v735, %v734
  %v983 = vpack.c.b16 %v737, %v736
  %v984 = vpack.c.b16 %v739, %v738
  %v985 = vpack.c.b16 %v741, %v740
  %v986 = vpack.c.b16 %v743, %v742
  %v987 = vpack.c.b16 %v745, %v744
  %v988 = vpack.c.b16 %v747, %v746
  %v989 = vpack.c.b16 %v749, %v748
  %v990 = vpack.c.b16 %v751, %v750
  %v991 = vpack.c.b16 %v753, %v752
  %v992 = vpack.c.b16 %v755, %v754
  %v993 = vpack.c.b16 %v757, %v756
  %v994 = vpack.c.b16 %v759, %v758
  %v995 = vpack.c.b16 %v761, %v760
  %v996 = vpack.c.b16 %v763, %v762
  %v997 = vpack.c.b16 %v765, %v764
  %v998 = vpack.c.b16 %v767, %v766
  %v999 = vpack.c.b16 %v769, %v768
  %v1000 = vpack.c.b16 %v771, %v770
  %v1001 = vpack.c.b16 %v773, %v772
  %v1002 = vpack.c.b16 %v775, %v774
  %v1003 = vpack.c.b16 %v777, %v776
  %v1004 = vpack.c.b16 %v779, %v778
  %v1005 = vpack.c.b16 %v781, %v780
  %v1006 = vpack.c.b16 %v783, %v782
  %v1007 = vpack.c.b16 %v785, %v784
  %v1008 = vpack.c.b16 %v787, %v786
  %v1009 = vpack.c.b16 %v789, %v788
  %v1010 = vpack.c.b16 %v791, %v790
  %v1011 = vpack.c.b16 %v793, %v792
  %v1012 = vpack.c.b16 %v795, %v794
  %v1013 = vpack.c.b16 %v797, %v796
  %v1014 = vpack.c.b16 %v799, %v798
  %v1015 = vpack.c.b16 %v801, %v800
  %v1016 = vpack.c.b16 %v803, %v802
  %v1017 = vpack.c.b16 %v805, %v804
  %v1018 = vpack.c.b16 %v807, %v806
  %v1019 = vpack.c.b16 %v809, %v808
  %v1020 = vpack.c.b16 %v811, %v810
  %v1021 = vpack.c.b16 %v813, %v812
  %v1022 = vpack.c.b16 %v815, %v814
  %v1023 = vpack.c.b16 %v817, %v816
  %v1024 = vpack.c.b16 %v819, %v818
  %v1025 = vpack.c.b16 %v821, %v820
  %v1026 = vpack.c.b16 %v823, %v822
  %v1027 = vpack.c.b16 %v825, %v824
  %v1028 = vpack.c.b16 %v827, %v826
  %v1029 = vpack.c.b16 %v829, %v828
  %v1030 = vpack.c.b16 %v831, %v830
  %v1031 = vpack.c.b16 %v833, %v832
  %v1032 = vpack.c.b16 %v835, %v834
  %v1033 = vpack.c.b16 %v837, %v836
  %v1034 = vpack.c.b16 %v839, %v838
  %v1035 = vpack.c.b16 %v841, %v840
  %v1036 = vpack.c.b16 %v843, %v842
  %v1037 = vpack.c.b16 %v845, %v844
  %v1038 = vpack.c.b16 %v847, %v846
  %v1039 = vpack.c.b16 %v849, %v848
  %v1040 = vpack.c.b16 %v851, %v850
  %v1041 = vpack.c.b16 %v853, %v852
  %v1042 = vpack.c.b16 %v855, %v854
  %v1043 = vpack.c.b16 %v857, %v856
  %v1044 = vpack.c.b16 %v859, %v858
  %v1045 = vpack.c.b16 %v861, %v860
  %v1046 = vpack.c.b16 %v863, %v862
  %v1047 = vpack.c.b16 %v865, %v864
  %v1048 = vpack.c.b16 %v867, %v866
  %v1049 = vpack.c.b16 %v869, %v868
  %v1050 = vpack.c.b16 %v871, %v870
  %v1051 = vpack.c.b16 %v873, %v872
  %v1052 = vpack.c.b16 %v875, %v874
  %v1053 = vpack.c.b16 %v877, %v876
  %v1054 = vpack.c.b16 %v879, %v878
  %v1055 = vpack.c.b16 %v881, %v880
  %v1056 = vpack.c.b16 %v883, %v882
  %v1057 = vpack.c.b16 %v885, %v884
  %v1058 = vpack.c.b16 %v887, %v886
  %v1059 = vpack.c.b16 %v889, %v888
  %v1060 = vpack.c.b16 %v891, %v890
  %v1061 = vpack.c.b16 %v893, %v892
  %v1062 = vpack.c.b16 %v895, %v894
  %v1063 = vpack.c.b16 %v897, %v896
  %v1064 = vpack.c.b16 %v899, %v898
  %v1065 = vpack.c.b16 %v901, %v900
  %v1066 = vpack.c.b16 %v903, %v902
  %v1067 = vpack.c.b16 %v905, %v904
  %v1068 = vpack.c.b16 %v907, %v906
  %v1069 = vpack.c.b16 %v909, %v908
  %v1070 = vpack.c.b16 %v911, %v910
  %v1071 = vpack.c.b16 %v913, %v912
  %v1072 = vpack.c.b16 %v915, %v914
  %v1073 = vpack.c.b16 %v917, %v916
  %v1074 = vpack.c.b16 %v919, %v918
  %v1075 = vpack.c.b16 %v921, %v920
  %v1076 = vpack.c.b16 %v923, %v922
  %v1077 = vpack.c.b16 %v925, %v924
  %v1078 = vpack.c.b16 %v927, %v926
  %v1079 = vpack.c.b16 %v929, %v928
  %v1080 = vpack.c.b16 %v931, %v930
  %v1081 = vpack.c.b16 %v933, %v932
  %v1082 = vpack.c.b16 %v935, %v934
  %v1083 = vpack.c.b16 %v937, %v936
  %v1084 = vpack.c.b16 %v939, %v938
  %v1085 = vpack.c.b16 %v941, %v940
  %v1086 = vpack.c.b16 %v943, %v942
  %v1087 = vpack.c.b16 %v945, %v944
  %v1088 = vpack.c.b16 %v947, %v946
  %v1089 = vpack.c.b16 %v949, %v948
  %v1090 = vpack.c.b16 %v951, %v950
  %v1091 = vpack.c.b16 %v953, %v952
  %v1092 = vpack.c.b16 %v955, %v954
  %v1093 = vpack.c.b16 %v957, %v956
  %v1094 = vpack.c.b16 %v959, %v958
  %v1095 = vpack.c.b16 %v961, %v960
  %v1096 = vpack.c.b16 %v963, %v962
  %v1097 = vpack.c.b16 %v965, %v964
  %v1098 = vpack.c.b16 %v967, %v966
  %v1099 = vpack.c.b16 %v969, %v968
  %v1100 = vpack.c.b16 %v971, %v970
  %v1101 = vpack.c.b16 %v973, %v972
  %1230 = vmatprep.subr.bf16.mxu0 0
  %1231 = vmatpush1.bf16.msra.mxu0 %v974
  %1232 = vmatprep.subr.bf16.mxu0 0
  %1233 = vmatpush1.bf16.msra.mxu0 %v975
  %1234 = vmatprep.subr.bf16.mxu0 0
  %1235 = vmatpush1.bf16.msra.mxu0 %v976
  %1236 = vmatprep.subr.bf16.mxu0 0
  %1237 = vmatpush1.bf16.msra.mxu0 %v977
  %1238 = vmatprep.subr.bf16.mxu0 0
  %1239 = vmatpush1.bf16.msra.mxu0 %v978
  %1240 = vmatprep.subr.bf16.mxu0 0
  %1241 = vmatpush1.bf16.msra.mxu0 %v979
  %1242 = vmatprep.subr.bf16.mxu0 0
  %1243 = vmatpush1.bf16.msra.mxu0 %v980
  %1244 = vmatprep.subr.bf16.mxu0 0
  %1245 = vmatpush1.bf16.msra.mxu0 %v981
  %1246 = vmatprep.subr.bf16.mxu0 0
  %1247 = vmatpush1.bf16.msra.mxu0 %v982
  %1248 = vmatprep.subr.bf16.mxu0 0
  %1249 = vmatpush1.bf16.msra.mxu0 %v983
  %1250 = vmatprep.subr.bf16.mxu0 0
  %1251 = vmatpush1.bf16.msra.mxu0 %v984
  %1252 = vmatprep.subr.bf16.mxu0 0
  %1253 = vmatpush1.bf16.msra.mxu0 %v985
  %1254 = vmatprep.subr.bf16.mxu0 0
  %1255 = vmatpush1.bf16.msra.mxu0 %v986
  %1256 = vmatprep.subr.bf16.mxu0 0
  %1257 = vmatpush1.bf16.msra.mxu0 %v987
  %1258 = vmatprep.subr.bf16.mxu0 0
  %1259 = vmatpush1.bf16.msra.mxu0 %v988
  %1260 = vmatprep.subr.bf16.mxu0 0
  %1261 = vmatpush1.bf16.msra.mxu0 %v989
  %1262 = vmatprep.mubr.bf16.mxu0 %v399
  %1263 = vmatmul.mubr.bf16.gmra.mrb[0].mxu0 %v398
  %v1264 = vpop.f32.mrb[0].mxu0
  %v1265 = vadd.f32 0.0, %v1264
  %v1266 = vpop.f32.mrb[0].mxu0
  %v1267 = vpop.f32.mrb[0].mxu0
  %v1268 = vadd.f32 0.0, %v1267
  %v1269 = vpop.f32.mrb[0].mxu0
  %1270 = vmatprep.mubr.bf16.mxu0 %v415
  %1271 = vmatmul.mubr.bf16.gmra.mrb[0].mxu0 %v414
  %v1272 = vpop.f32.mrb[0].mxu0
  %v1273 = vadd.f32 0.0, %v1272
  %v1274 = vpop.f32.mrb[0].mxu0
  %v1275 = vpop.f32.mrb[0].mxu0
  %v1276 = vadd.f32 0.0, %v1275
  %v1277 = vpop.f32.mrb[0].mxu0
  %1278 = vdwg.mxu0
  %1279 = vmatprep.subr.bf16.mxu0 0
  %1280 = vmatpush1.bf16.msra.mxu0 %v990
  %1281 = vmatprep.subr.bf16.mxu0 0
  %1282 = vmatpush1.bf16.msra.mxu0 %v991
  %1283 = vmatprep.subr.bf16.mxu0 0
  %1284 = vmatpush1.bf16.msra.mxu0 %v992
  %1285 = vmatprep.subr.bf16.mxu0 0
  %1286 = vmatpush1.bf16.msra.mxu0 %v993
  %1287 = vmatprep.subr.bf16.mxu0 0
  %1288 = vmatpush1.bf16.msra.mxu0 %v994
  %1289 = vmatprep.subr.bf16.mxu0 0
  %1290 = vmatpush1.bf16.msra.mxu0 %v995
  %1291 = vmatprep.subr.bf16.mxu0 0
  %1292 = vmatpush1.bf16.msra.mxu0 %v996
  %1293 = vmatprep.subr.bf16.mxu0 0
  %1294 = vmatpush1.bf16.msra.mxu0 %v997
  %1295 = vmatprep.subr.bf16.mxu0 0
  %1296 = vmatpush1.bf16.msra.mxu0 %v998
  %1297 = vmatprep.subr.bf16.mxu0 0
  %1298 = vmatpush1.bf16.msra.mxu0 %v999
  %1299 = vmatprep.subr.bf16.mxu0 0
  %1300 = vmatpush1.bf16.msra.mxu0 %v1000
  %1301 = vmatprep.subr.bf16.mxu0 0
  %1302 = vmatpush1.bf16.msra.mxu0 %v1001
  %1303 = vmatprep.subr.bf16.mxu0 0
  %1304 = vmatpush1.bf16.msra.mxu0 %v1002
  %1305 = vmatprep.subr.bf16.mxu0 0
  %1306 = vmatpush1.bf16.msra.mxu0 %v1003
  %1307 = vmatprep.subr.bf16.mxu0 0
  %1308 = vmatpush1.bf16.msra.mxu0 %v1004
  %1309 = vmatprep.subr.bf16.mxu0 0
  %1310 = vmatpush1.bf16.msra.mxu0 %v1005
  %1311 = vmatprep.mubr.bf16.mxu0 %v401
  %1312 = vmatmul.mubr.bf16.gmra.mrb[0].mxu0 %v400
  %v1313 = vpop.f32.mrb[0].mxu0
  %v1314 = vadd.f32 %v1265, %v1313
  %v1315 = vpop.f32.mrb[0].mxu0
  %v1316 = vpop.f32.mrb[0].mxu0
  %v1317 = vadd.f32 %v1268, %v1316
  %v1318 = vpop.f32.mrb[0].mxu0
  %1319 = vmatprep.mubr.bf16.mxu0 %v417
  %1320 = vmatmul.mubr.bf16.gmra.mrb[0].mxu0 %v416
  %v1321 = vpop.f32.mrb[0].mxu0
  %v1322 = vadd.f32 %v1273, %v1321
  %v1323 = vpop.f32.mrb[0].mxu0
  %v1324 = vpop.f32.mrb[0].mxu0
  %v1325 = vadd.f32 %v1276, %v1324
  %v1326 = vpop.f32.mrb[0].mxu0
  %1327 = vdwg.mxu0
  %1328 = vmatprep.subr.bf16.mxu0 0
  %1329 = vmatpush1.bf16.msra.mxu0 %v1006
  %1330 = vmatprep.subr.bf16.mxu0 0
  %1331 = vmatpush1.bf16.msra.mxu0 %v1007
  %1332 = vmatprep.subr.bf16.mxu0 0
  %1333 = vmatpush1.bf16.msra.mxu0 %v1008
  %1334 = vmatprep.subr.bf16.mxu0 0
  %1335 = vmatpush1.bf16.msra.mxu0 %v1009
  %1336 = vmatprep.subr.bf16.mxu0 0
  %1337 = vmatpush1.bf16.msra.mxu0 %v1010
  %1338 = vmatprep.subr.bf16.mxu0 0
  %1339 = vmatpush1.bf16.msra.mxu0 %v1011
  %1340 = vmatprep.subr.bf16.mxu0 0
  %1341 = vmatpush1.bf16.msra.mxu0 %v1012
  %1342 = vmatprep.subr.bf16.mxu0 0
  %1343 = vmatpush1.bf16.msra.mxu0 %v1013
  %1344 = vmatprep.subr.bf16.mxu0 0
  %1345 = vmatpush1.bf16.msra.mxu0 %v1014
  %1346 = vmatprep.subr.bf16.mxu0 0
  %1347 = vmatpush1.bf16.msra.mxu0 %v1015
  %1348 = vmatprep.subr.bf16.mxu0 0
  %1349 = vmatpush1.bf16.msra.mxu0 %v1016
  %1350 = vmatprep.subr.bf16.mxu0 0
  %1351 = vmatpush1.bf16.msra.mxu0 %v1017
  %1352 = vmatprep.subr.bf16.mxu0 0
  %1353 = vmatpush1.bf16.msra.mxu0 %v1018
  %1354 = vmatprep.subr.bf16.mxu0 0
  %1355 = vmatpush1.bf16.msra.mxu0 %v1019
  %1356 = vmatprep.subr.bf16.mxu0 0
  %1357 = vmatpush1.bf16.msra.mxu0 %v1020
  %1358 = vmatprep.subr.bf16.mxu0 0
  %1359 = vmatpush1.bf16.msra.mxu0 %v1021
  %1360 = vmatprep.mubr.bf16.mxu0 %v403
  %1361 = vmatmul.mubr.bf16.gmra.mrb[0].mxu0 %v402
  %v1362 = vpop.f32.mrb[0].mxu0
  %v1363 = vadd.f32 %v1314, %v1362
  %v1364 = vpop.f32.mrb[0].mxu0
  %v1365 = vpop.f32.mrb[0].mxu0
  %v1366 = vadd.f32 %v1317, %v1365
  %v1367 = vpop.f32.mrb[0].mxu0
  %1368 = vmatprep.mubr.bf16.mxu0 %v419
  %1369 = vmatmul.mubr.bf16.gmra.mrb[0].mxu0 %v418
  %v1370 = vpop.f32.mrb[0].mxu0
  %v1371 = vadd.f32 %v1322, %v1370
  %v1372 = vpop.f32.mrb[0].mxu0
  %v1373 = vpop.f32.mrb[0].mxu0
  %v1374 = vadd.f32 %v1325, %v1373
  %v1375 = vpop.f32.mrb[0].mxu0
  %1376 = vdwg.mxu0
  %1377 = vmatprep.subr.bf16.mxu0 0
  %1378 = vmatpush1.bf16.msra.mxu0 %v1022
  %1379 = vmatprep.subr.bf16.mxu0 0
  %1380 = vmatpush1.bf16.msra.mxu0 %v1023
  %1381 = vmatprep.subr.bf16.mxu0 0
  %1382 = vmatpush1.bf16.msra.mxu0 %v1024
  %1383 = vmatprep.subr.bf16.mxu0 0
  %1384 = vmatpush1.bf16.msra.mxu0 %v1025
  %1385 = vmatprep.subr.bf16.mxu0 0
  %1386 = vmatpush1.bf16.msra.mxu0 %v1026
  %1387 = vmatprep.subr.bf16.mxu0 0
  %1388 = vmatpush1.bf16.msra.mxu0 %v1027
  %1389 = vmatprep.subr.bf16.mxu0 0
  %1390 = vmatpush1.bf16.msra.mxu0 %v1028
  %1391 = vmatprep.subr.bf16.mxu0 0
  %1392 = vmatpush1.bf16.msra.mxu0 %v1029
  %1393 = vmatprep.subr.bf16.mxu0 0
  %1394 = vmatpush1.bf16.msra.mxu0 %v1030
  %1395 = vmatprep.subr.bf16.mxu0 0
  %1396 = vmatpush1.bf16.msra.mxu0 %v1031
  %1397 = vmatprep.subr.bf16.mxu0 0
  %1398 = vmatpush1.bf16.msra.mxu0 %v1032
  %1399 = vmatprep.subr.bf16.mxu0 0
  %1400 = vmatpush1.bf16.msra.mxu0 %v1033
  %1401 = vmatprep.subr.bf16.mxu0 0
  %1402 = vmatpush1.bf16.msra.mxu0 %v1034
  %1403 = vmatprep.subr.bf16.mxu0 0
  %1404 = vmatpush1.bf16.msra.mxu0 %v1035
  %1405 = vmatprep.subr.bf16.mxu0 0
  %1406 = vmatpush1.bf16.msra.mxu0 %v1036
  %1407 = vmatprep.subr.bf16.mxu0 0
  %1408 = vmatpush1.bf16.msra.mxu0 %v1037
  %1409 = vmatprep.mubr.bf16.mxu0 %v405
  %1410 = vmatmul.mubr.bf16.gmra.mrb[0].mxu0 %v404
  %v1411 = vpop.f32.mrb[0].mxu0
  %v1412 = vadd.f32 %v1363, %v1411
  %v1413 = vpop.f32.mrb[0].mxu0
  %v1414 = vpop.f32.mrb[0].mxu0
  %v1415 = vadd.f32 %v1366, %v1414
  %v1416 = vpop.f32.mrb[0].mxu0
  %1417 = vmatprep.mubr.bf16.mxu0 %v421
  %1418 = vmatmul.mubr.bf16.gmra.mrb[0].mxu0 %v420
  %v1419 = vpop.f32.mrb[0].mxu0
  %v1420 = vadd.f32 %v1371, %v1419
  %v1421 = vpop.f32.mrb[0].mxu0
  %v1422 = vpop.f32.mrb[0].mxu0
  %v1423 = vadd.f32 %v1374, %v1422
  %v1424 = vpop.f32.mrb[0].mxu0
  %1425 = vdwg.mxu0
  %1426 = vmatprep.subr.bf16.mxu0 0
  %1427 = vmatpush1.bf16.msra.mxu0 %v1038
  %1428 = vmatprep.subr.bf16.mxu0 0
  %1429 = vmatpush1.bf16.msra.mxu0 %v1039
  %1430 = vmatprep.subr.bf16.mxu0 0
  %1431 = vmatpush1.bf16.msra.mxu0 %v1040
  %1432 = vmatprep.subr.bf16.mxu0 0
  %1433 = vmatpush1.bf16.msra.mxu0 %v1041
  %1434 = vmatprep.subr.bf16.mxu0 0
  %1435 = vmatpush1.bf16.msra.mxu0 %v1042
  %1436 = vmatprep.subr.bf16.mxu0 0
  %1437 = vmatpush1.bf16.msra.mxu0 %v1043
  %1438 = vmatprep.subr.bf16.mxu0 0
  %1439 = vmatpush1.bf16.msra.mxu0 %v1044
  %1440 = vmatprep.subr.bf16.mxu0 0
  %1441 = vmatpush1.bf16.msra.mxu0 %v1045
  %1442 = vmatprep.subr.bf16.mxu0 0
  %1443 = vmatpush1.bf16.msra.mxu0 %v1046
  %1444 = vmatprep.subr.bf16.mxu0 0
  %1445 = vmatpush1.bf16.msra.mxu0 %v1047
  %1446 = vmatprep.subr.bf16.mxu0 0
  %1447 = vmatpush1.bf16.msra.mxu0 %v1048
  %1448 = vmatprep.subr.bf16.mxu0 0
  %1449 = vmatpush1.bf16.msra.mxu0 %v1049
  %1450 = vmatprep.subr.bf16.mxu0 0
  %1451 = vmatpush1.bf16.msra.mxu0 %v1050
  %1452 = vmatprep.subr.bf16.mxu0 0
  %1453 = vmatpush1.bf16.msra.mxu0 %v1051
  %1454 = vmatprep.subr.bf16.mxu0 0
  %1455 = vmatpush1.bf16.msra.mxu0 %v1052
  %1456 = vmatprep.subr.bf16.mxu0 0
  %1457 = vmatpush1.bf16.msra.mxu0 %v1053
  %1458 = vmatprep.mubr.bf16.mxu0 %v407
  %1459 = vmatmul.mubr.bf16.gmra.mrb[0].mxu0 %v406
  %v1460 = vpop.f32.mrb[0].mxu0
  %v1461 = vadd.f32 %v1412, %v1460
  %v1462 = vpop.f32.mrb[0].mxu0
  %v1463 = vpop.f32.mrb[0].mxu0
  %v1464 = vadd.f32 %v1415, %v1463
  %v1465 = vpop.f32.mrb[0].mxu0
  %1466 = vmatprep.mubr.bf16.mxu0 %v423
  %1467 = vmatmul.mubr.bf16.gmra.mrb[0].mxu0 %v422
  %v1468 = vpop.f32.mrb[0].mxu0
  %v1469 = vadd.f32 %v1420, %v1468
  %v1470 = vpop.f32.mrb[0].mxu0
  %v1471 = vpop.f32.mrb[0].mxu0
  %v1472 = vadd.f32 %v1423, %v1471
  %v1473 = vpop.f32.mrb[0].mxu0
  %1474 = vdwg.mxu0
  %1475 = vmatprep.subr.bf16.mxu0 0
  %1476 = vmatpush1.bf16.msra.mxu0 %v1054
  %1477 = vmatprep.subr.bf16.mxu0 0
  %1478 = vmatpush1.bf16.msra.mxu0 %v1055
  %1479 = vmatprep.subr.bf16.mxu0 0
  %1480 = vmatpush1.bf16.msra.mxu0 %v1056
  %1481 = vmatprep.subr.bf16.mxu0 0
  %1482 = vmatpush1.bf16.msra.mxu0 %v1057
  %1483 = vmatprep.subr.bf16.mxu0 0
  %1484 = vmatpush1.bf16.msra.mxu0 %v1058
  %1485 = vmatprep.subr.bf16.mxu0 0
  %1486 = vmatpush1.bf16.msra.mxu0 %v1059
  %1487 = vmatprep.subr.bf16.mxu0 0
  %1488 = vmatpush1.bf16.msra.mxu0 %v1060
  %1489 = vmatprep.subr.bf16.mxu0 0
  %1490 = vmatpush1.bf16.msra.mxu0 %v1061
  %1491 = vmatprep.subr.bf16.mxu0 0
  %1492 = vmatpush1.bf16.msra.mxu0 %v1062
  %1493 = vmatprep.subr.bf16.mxu0 0
  %1494 = vmatpush1.bf16.msra.mxu0 %v1063
  %1495 = vmatprep.subr.bf16.mxu0 0
  %1496 = vmatpush1.bf16.msra.mxu0 %v1064
  %1497 = vmatprep.subr.bf16.mxu0 0
  %1498 = vmatpush1.bf16.msra.mxu0 %v1065
  %1499 = vmatprep.subr.bf16.mxu0 0
  %1500 = vmatpush1.bf16.msra.mxu0 %v1066
  %1501 = vmatprep.subr.bf16.mxu0 0
  %1502 = vmatpush1.bf16.msra.mxu0 %v1067
  %1503 = vmatprep.subr.bf16.mxu0 0
  %1504 = vmatpush1.bf16.msra.mxu0 %v1068
  %1505 = vmatprep.subr.bf16.mxu0 0
  %1506 = vmatpush1.bf16.msra.mxu0 %v1069
  %1507 = vmatprep.mubr.bf16.mxu0 %v409
  %1508 = vmatmul.mubr.bf16.gmra.mrb[0].mxu0 %v408
  %v1509 = vpop.f32.mrb[0].mxu0
  %v1510 = vadd.f32 %v1461, %v1509
  %v1511 = vpop.f32.mrb[0].mxu0
  %v1512 = vpop.f32.mrb[0].mxu0
  %v1513 = vadd.f32 %v1464, %v1512
  %v1514 = vpop.f32.mrb[0].mxu0
  %1515 = vmatprep.mubr.bf16.mxu0 %v425
  %1516 = vmatmul.mubr.bf16.gmra.mrb[0].mxu0 %v424
  %v1517 = vpop.f32.mrb[0].mxu0
  %v1518 = vadd.f32 %v1469, %v1517
  %v1519 = vpop.f32.mrb[0].mxu0
  %v1520 = vpop.f32.mrb[0].mxu0
  %v1521 = vadd.f32 %v1472, %v1520
  %v1522 = vpop.f32.mrb[0].mxu0
  %1523 = vdwg.mxu0
  %1524 = vmatprep.subr.bf16.mxu0 0
  %1525 = vmatpush1.bf16.msra.mxu0 %v1070
  %1526 = vmatprep.subr.bf16.mxu0 0
  %1527 = vmatpush1.bf16.msra.mxu0 %v1071
  %1528 = vmatprep.subr.bf16.mxu0 0
  %1529 = vmatpush1.bf16.msra.mxu0 %v1072
  %1530 = vmatprep.subr.bf16.mxu0 0
  %1531 = vmatpush1.bf16.msra.mxu0 %v1073
  %1532 = vmatprep.subr.bf16.mxu0 0
  %1533 = vmatpush1.bf16.msra.mxu0 %v1074
  %1534 = vmatprep.subr.bf16.mxu0 0
  %1535 = vmatpush1.bf16.msra.mxu0 %v1075
  %1536 = vmatprep.subr.bf16.mxu0 0
  %1537 = vmatpush1.bf16.msra.mxu0 %v1076
  %1538 = vmatprep.subr.bf16.mxu0 0
  %1539 = vmatpush1.bf16.msra.mxu0 %v1077
  %1540 = vmatprep.subr.bf16.mxu0 0
  %1541 = vmatpush1.bf16.msra.mxu0 %v1078
  %1542 = vmatprep.subr.bf16.mxu0 0
  %1543 = vmatpush1.bf16.msra.mxu0 %v1079
  %1544 = vmatprep.subr.bf16.mxu0 0
  %1545 = vmatpush1.bf16.msra.mxu0 %v1080
  %1546 = vmatprep.subr.bf16.mxu0 0
  %1547 = vmatpush1.bf16.msra.mxu0 %v1081
  %1548 = vmatprep.subr.bf16.mxu0 0
  %1549 = vmatpush1.bf16.msra.mxu0 %v1082
  %1550 = vmatprep.subr.bf16.mxu0 0
  %1551 = vmatpush1.bf16.msra.mxu0 %v1083
  %1552 = vmatprep.subr.bf16.mxu0 0
  %1553 = vmatpush1.bf16.msra.mxu0 %v1084
  %1554 = vmatprep.subr.bf16.mxu0 0
  %1555 = vmatpush1.bf16.msra.mxu0 %v1085
  %1556 = vmatprep.mubr.bf16.mxu0 %v411
  %1557 = vmatmul.mubr.bf16.gmra.mrb[0].mxu0 %v410
  %v1558 = vpop.f32.mrb[0].mxu0
  %v1559 = vadd.f32 %v1510, %v1558
  %v1560 = vpop.f32.mrb[0].mxu0
  %v1561 = vpop.f32.mrb[0].mxu0
  %v1562 = vadd.f32 %v1513, %v1561
  %v1563 = vpop.f32.mrb[0].mxu0
  %1564 = vmatprep.mubr.bf16.mxu0 %v427
  %1565 = vmatmul.mubr.bf16.gmra.mrb[0].mxu0 %v426
  %v1566 = vpop.f32.mrb[0].mxu0
  %v1567 = vadd.f32 %v1518, %v1566
  %v1568 = vpop.f32.mrb[0].mxu0
  %v1569 = vpop.f32.mrb[0].mxu0
  %v1570 = vadd.f32 %v1521, %v1569
  %v1571 = vpop.f32.mrb[0].mxu0
  %1572 = vdwg.mxu0
  %1573 = vmatprep.subr.bf16.mxu0 0
  %1574 = vmatpush1.bf16.msra.mxu0 %v1086
  %1575 = vmatprep.subr.bf16.mxu0 0
  %1576 = vmatpush1.bf16.msra.mxu0 %v1087
  %1577 = vmatprep.subr.bf16.mxu0 0
  %1578 = vmatpush1.bf16.msra.mxu0 %v1088
  %1579 = vmatprep.subr.bf16.mxu0 0
  %1580 = vmatpush1.bf16.msra.mxu0 %v1089
  %1581 = vmatprep.subr.bf16.mxu0 0
  %1582 = vmatpush1.bf16.msra.mxu0 %v1090
  %1583 = vmatprep.subr.bf16.mxu0 0
  %1584 = vmatpush1.bf16.msra.mxu0 %v1091
  %1585 = vmatprep.subr.bf16.mxu0 0
  %1586 = vmatpush1.bf16.msra.mxu0 %v1092
  %1587 = vmatprep.subr.bf16.mxu0 0
  %1588 = vmatpush1.bf16.msra.mxu0 %v1093
  %1589 = vmatprep.subr.bf16.mxu0 0
  %1590 = vmatpush1.bf16.msra.mxu0 %v1094
  %1591 = vmatprep.subr.bf16.mxu0 0
  %1592 = vmatpush1.bf16.msra.mxu0 %v1095
  %1593 = vmatprep.subr.bf16.mxu0 0
  %1594 = vmatpush1.bf16.msra.mxu0 %v1096
  %1595 = vmatprep.subr.bf16.mxu0 0
  %1596 = vmatpush1.bf16.msra.mxu0 %v1097
  %1597 = vmatprep.subr.bf16.mxu0 0
  %1598 = vmatpush1.bf16.msra.mxu0 %v1098
  %1599 = vmatprep.subr.bf16.mxu0 0
  %1600 = vmatpush1.bf16.msra.mxu0 %v1099
  %1601 = vmatprep.subr.bf16.mxu0 0
  %1602 = vmatpush1.bf16.msra.mxu0 %v1100
  %1603 = vmatprep.subr.bf16.mxu0 0
  %1604 = vmatpush1.bf16.msra.mxu0 %v1101
  %1605 = vmatprep.mubr.bf16.mxu0 %v413
  %1606 = vmatmul.mubr.bf16.gmra.mrb[0].mxu0 %v412
  %v1607 = vpop.f32.mrb[0].mxu0
  %v1608 = vadd.f32 %v1559, %v1607
  %v1609 = vpop.f32.mrb[0].mxu0
  %v1610 = vpop.f32.mrb[0].mxu0
  %v1611 = vadd.f32 %v1562, %v1610
  %v1612 = vpop.f32.mrb[0].mxu0
  %1613 = vmatprep.mubr.bf16.mxu0 %v429
  %1614 = vmatmul.mubr.bf16.gmra.mrb[0].mxu0 %v428
  %v1615 = vpop.f32.mrb[0].mxu0
  %v1616 = vadd.f32 %v1567, %v1615
  %v1617 = vpop.f32.mrb[0].mxu0
  %v1618 = vpop.f32.mrb[0].mxu0
  %v1619 = vadd.f32 %v1570, %v1618
  %v1620 = vpop.f32.mrb[0].mxu0
  %1621 = vdwg.mxu0
  %1622 = vst [vmem:[%s2] sm:$0xff] %v1608
  %1623 = vst [vmem:[%s2 + $0x8] sm:$0xff] %v1611
  %1624 = vst [vmem:[%s2 + $0x10] sm:$0xff] %v1616
  %1625 = vst [vmem:[%s2 + $0x18] sm:$0xff] %v1619
  %v1626 = vadd.f32 %v1608, %v1611
  %v1627 = vadd.f32 %v1626, %v1616
  %v1628 = vadd.f32 %v1627, %v1619
  %v1629 = vrot.slane %v1628, 4
  %v1630 = vadd.f32 %v1628, %v1629
  %v1631 = vrot.slane %v1630, 2
  %v1632 = vadd.f32 %v1630, %v1631
  %v1633 = vrot.slane %v1632, 1
  %v1634 = vadd.f32 %v1632, %v1633
  %v1635 = vmul.f32 %v1608, %v1608
  %v1636 = vmul.f32 %v1611, %v1611
  %v1637 = vmul.f32 %v1616, %v1616
  %v1638 = vmul.f32 %v1619, %v1619
  %v1639 = vadd.f32 %v1635, %v1636
  %v1640 = vadd.f32 %v1639, %v1637
  %v1641 = vadd.f32 %v1640, %v1638
  %v1642 = vrot.slane %v1641, 4
  %v1643 = vadd.f32 %v1641, %v1642
  %v1644 = vrot.slane %v1643, 2
  %v1645 = vadd.f32 %v1643, %v1644
  %v1646 = vrot.slane %v1645, 1
  %v1647 = vadd.f32 %v1645, %v1646
  %vm1648 = vcmask 1040384
  %v1649 = vsel %vm1648, %v1634, %v1647
  %1650 = vst [vmem:[%s3] sm:$0x3] %v1649
  // Predicated region
  $region10: #{discriminator_forward.8} parent=0 // pred_check
    _
  $region11: #{discriminator_forward.8} parent=0 // pred_check_branch
    %1652 = sbr.rel (0) target = $region13
  $region12: #{discriminator_forward.8} parent=0 // pred_region
    _
  $region13: #{discriminator_forward.8} parent=0 // pred_fallthru
    _
  // Predicated region
  $region14: #{discriminator_forward.8} parent=0 // pred_check
    _
  $region15: #{discriminator_forward.8} parent=0 // pred_check_branch
    %1654 = sbr.rel (0) target = $region17
  $region16: #{discriminator_forward.8} parent=0 // pred_region
    _
  $region17: #{discriminator_forward.8} parent=0 // pred_fallthru
    _
  // Predicated region
  $region18: #{discriminator_forward.8} parent=0 // pred_check
    _
  $region19: #{discriminator_forward.8} parent=0 // pred_check_branch
    %1656 = sbr.rel (0) target = $region21
  $region20: #{discriminator_forward.8} parent=0 // pred_region
    _
  $region21: #{discriminator_forward.8} parent=0 // pred_fallthru
    _
  // Predicated region
  $region22: #{discriminator_forward.8} parent=0 // pred_check
    _
  $region23: #{discriminator_forward.8} parent=0 // pred_check_branch
    %1658 = sbr.rel (0) target = $region25
  $region24: #{discriminator_forward.8} parent=0 // pred_region
    _
  $region25: #{discriminator_forward.8} parent=0 // pred_fallthru
    _

</llo_original>
